<compile_context>
chip_gen: v7x
topology: tpu7x:2x2x1
jax: 0.10.0
libtpu: 0.0.40
codegen_flags: <defaults>
</compile_context>

<pallas_src>
import numpy as np
import jax
import jax.numpy as jnp
from jax.experimental import pallas as pl
from jax.experimental.pallas import tpu as pltpu

NEG_SLOPE = 1.0          # `negative_slope` from the PyTorch script
CIN, COUT, K = 3, 8, 3   # ConvTranspose2d(3, 8, 3, stride=1, padding=1)
NG = 2                   # output-channel groups (2nd parallel grid axis)
CG = COUT // NG          # channels per group

# TODO(synk): the original torch.where(x > 0, v1, v1 * neg_slope) is an
# invalid broadcast in PyTorch (3 input channels vs 8 output channels).  It is
# only well defined here because neg_slope == 1 makes the select a no-op, so
# the compare/select is elided at trace time.  Guard against silent misuse.
assert NEG_SLOPE == 1.0, "kernel elides the where(); only valid for slope == 1"


def _convt_kernel(xr_ref, w_ref, b_ref, out_ref):
    # xr_ref:  f32[CIN, HB, 2W]  row-pair packed input (lanes [0:W]=row 2h, [W:2W]=row 2h+1)
    # w_ref:   f32[CG, CIN*K*K, 2W]  lane-splatted flipped weights for this channel group
    # b_ref:   f32[CG, 2W]           lane-splatted bias for this channel group
    # out_ref: f32[CG, HB, 2W]       row-pair packed output
    cg, hb, lanes = out_ref.shape
    wh = lanes // 2
    f32 = jnp.float32

    col = jax.lax.broadcasted_iota(jnp.int32, (hb, lanes), 1)
    first_half = col < wh
    left_edge = (col == 0) | (col == wh)                # column -1 of each half -> pad
    right_edge = (col == wh - 1) | (col == lanes - 1)   # column W of each half  -> pad

    zrow = jnp.zeros((1, lanes), f32)
    zcol = jnp.zeros((hb, 1), f32)

    # Accumulators initialized straight from the bias broadcast.
    accs = [jnp.broadcast_to(b_ref[co, :], (hb, lanes)) for co in range(cg)]

    for ci in range(CIN):
        # base_kh[h, t*W + w] = x[ci, 2h + t + kh - 1, w]   (zero outside the image)
        base1 = xr_ref[ci]                                             # rows (2h, 2h+1)
        swapped = jnp.concatenate([base1[:, wh:], base1[:, :wh]], axis=-1)
        sw_up = jnp.concatenate([swapped[1:], zrow], axis=0)           # swapped[h+1]
        sw_dn = jnp.concatenate([zrow, swapped[:-1]], axis=0)          # swapped[h-1]
        bases = (
            jnp.where(first_half, sw_dn, swapped),    # kh=0: rows (2h-1, 2h)
            base1,                                    # kh=1: rows (2h,   2h+1)
            jnp.where(first_half, swapped, sw_up),    # kh=2: rows (2h+1, 2h+2)
        )
        for kh in range(K):
            b_kh = bases[kh]
            for kw in range(K):
                if kw == 1:                       # column shift 0: free
                    slab = b_kh
                elif kw == 0:                     # slab[.., w] = base[.., w-1]
                    s = jnp.concatenate([zcol, b_kh[:, :-1]], axis=-1)
                    slab = jnp.where(left_edge, 0.0, s)
                else:                             # kw == 2: slab[.., w] = base[.., w+1]
                    s = jnp.concatenate([b_kh[:, 1:], zcol], axis=-1)
                    slab = jnp.where(right_edge, 0.0, s)
                f = (ci * K + kh) * K + kw
                for co in range(cg):              # reuse each slab for all channels in group
                    accs[co] = accs[co] + w_ref[co, f, :] * slab

    # negative_slope == 1  ->  where(x > 0, v1, v1) == v1 : select elided.
    for co in range(cg):
        out_ref[co] = accs[co]                    # full 128-lane stores


def convt_leaky_where(x, weight, bias):
    """x: (N, CIN, H, W) f32; weight: (CIN, COUT, K, K) PyTorch ConvTranspose2d
    layout; bias: (COUT,). Returns (N, COUT, H, W)."""
    N, Cin, H, W = x.shape
    assert Cin == CIN and COUT % NG == 0
    assert H % 2 == 0 and 2 * W == 128, "row-pair lane packing assumes even H and W == 64"
    HB, LANES = H // 2, 2 * W

    x = x.astype(jnp.float32)
    weight = weight.astype(jnp.float32)
    bias = bias.astype(jnp.float32)

    # Free row-major reshape (bitcast): lanes [0:W] = even row, [W:2W] = odd row.
    xr = x.reshape(N, CIN, HB, LANES)

    # ConvTranspose2d(stride=1, pad=1) == correlation with the spatially flipped kernel.
    w_flip = weight[:, :, ::-1, ::-1]
    wt = jnp.transpose(w_flip, (1, 0, 2, 3)).reshape(COUT, CIN * K * K)   # [co, f]
    w_pack = jnp.broadcast_to(wt[:, :, None], (COUT, CIN * K * K, LANES))
    b_pack = jnp.broadcast_to(bias.reshape(NG, CG, 1), (NG, CG, LANES))

    out_pk = pl.pallas_call(
        _convt_kernel,
        out_shape=jax.ShapeDtypeStruct((N, COUT, HB, LANES), jnp.float32),
        grid=(N, NG),
        in_specs=[
            pl.BlockSpec((None, CIN, HB, LANES), lambda n, g: (n, 0, 0, 0)),
            pl.BlockSpec((CG, CIN * K * K, LANES), lambda n, g: (g, 0, 0)),
            pl.BlockSpec((None, CG, LANES), lambda n, g: (g, 0, 0)),
        ],
        out_specs=pl.BlockSpec((None, CG, HB, LANES), lambda n, g: (n, g, 0, 0)),
        compiler_params=pltpu.CompilerParams(
            dimension_semantics=("parallel", "parallel")),
    )(xr, w_pack, b_pack)

    # Row-pair unpack is a pure row-major reshape: (HB, 2W) -> (H, W) is contiguous.
    return out_pk.reshape(N, COUT, H, W)


def _ref_forward(x, weight, bias):
    """Independent numpy reference using the defining scatter form of
    ConvTranspose2d (stride=1, padding=1).  With negative_slope == 1 the
    where() is the identity, so v3 == v1."""
    x = np.asarray(x, np.float32)
    w = np.asarray(weight, np.float32)
    b = np.asarray(bias, np.float32)
    N, Cin, H, W = x.shape
    y_full = np.zeros((N, COUT, H + K - 1, W + K - 1), np.float32)
    for n in range(N):
        for i in range(H):
            for j in range(W):
                y_full[n, :, i:i + K, j:j + K] += np.einsum(
                    "i,iokl->okl", x[n, :, i, j], w)
    v1 = y_full[:, :, 1:1 + H, 1:1 + W] + b[None, :, None, None]
    return v1


if __name__ == "__main__":
    key = jax.random.PRNGKey(0)
    k1, k2, k3 = jax.random.split(key, 3)

    N, H, W = 2, 64, 64   # module uses 64x64 spatial; N=2 exercises the grid
    x = jax.random.normal(k1, (N, CIN, H, W), jnp.float32)

    # Deterministic parameter init (PyTorch-style uniform bounds).
    fan_in = COUT * K * K
    bound = 1.0 / np.sqrt(fan_in)
    weight = jax.random.uniform(k2, (CIN, COUT, K, K), jnp.float32,
                                minval=-bound, maxval=bound)
    bias = jax.random.uniform(k3, (COUT,), jnp.float32,
                              minval=-bound, maxval=bound)

    fwd = jax.jit(convt_leaky_where)
    out = fwd(x, weight, bias)
    out = jax.block_until_ready(out)

    ref = _ref_forward(np.asarray(x), np.asarray(weight), np.asarray(bias))
    np.testing.assert_allclose(np.asarray(out), ref, rtol=1e-4, atol=1e-4)

    print("KERNEL_OK")
</pallas_src>

<mosaic_0001>
module attributes {stable_mosaic.version = 11 : i64} {
  func.func @_convt_kernel(%arg0: i32, %arg1: i32, %arg2: memref<1x3x32x128xf32, #tpu.memory_space<vmem>>, %arg3: memref<4x27x128xf32, #tpu.memory_space<vmem>>, %arg4: memref<1x4x128xf32, #tpu.memory_space<vmem>>, %arg5: memref<1x4x32x128xf32, #tpu.memory_space<vmem>>) attributes {dimension_semantics = [#tpu.dimension_semantics<parallel>, #tpu.dimension_semantics<parallel>], iteration_bounds = array<i64: 2, 2>, scalar_prefetch = 0 : i64, scratch_operands = 0 : i64, tpu.core_type = #tpu.core_type<tc>, window_params = [{transform_indices = @transform_0, window_bounds = array<i64: 1, 3, 32, 128>}, {transform_indices = @transform_1, window_bounds = array<i64: 4, 27, 128>}, {transform_indices = @transform_2, window_bounds = array<i64: 1, 4, 128>}, {transform_indices = @transform_3, window_bounds = array<i64: 1, 4, 32, 128>}]} {
    %0 = tpu.iota {dimensions = array<i32: 1>} : vector<32x128xi32>
    %c64_i32 = arith.constant 64 : i32
    %1 = vector.broadcast %c64_i32 : i32 to vector<32x128xi32>
    %2 = arith.cmpi slt, %0, %1 : vector<32x128xi32>
    %c0_i32 = arith.constant 0 : i32
    %3 = vector.broadcast %c0_i32 : i32 to vector<32x128xi32>
    %4 = arith.cmpi eq, %0, %3 : vector<32x128xi32>
    %c64_i32_0 = arith.constant 64 : i32
    %5 = vector.broadcast %c64_i32_0 : i32 to vector<32x128xi32>
    %6 = arith.cmpi eq, %0, %5 : vector<32x128xi32>
    %7 = arith.ori %4, %6 : vector<32x128xi1>
    %c63_i32 = arith.constant 63 : i32
    %8 = vector.broadcast %c63_i32 : i32 to vector<32x128xi32>
    %9 = arith.cmpi eq, %0, %8 : vector<32x128xi32>
    %c127_i32 = arith.constant 127 : i32
    %10 = vector.broadcast %c127_i32 : i32 to vector<32x128xi32>
    %11 = arith.cmpi eq, %0, %10 : vector<32x128xi32>
    %12 = arith.ori %9, %11 : vector<32x128xi1>
    %cst = arith.constant 0.000000e+00 : f32
    %13 = vector.broadcast %cst : f32 to vector<1x128xf32>
    %cst_1 = arith.constant 0.000000e+00 : f32
    %14 = vector.broadcast %cst_1 : f32 to vector<32x1xf32>
    %c0 = arith.constant 0 : index
    %c0_2 = arith.constant 0 : index
    %c0_3 = arith.constant 0 : index
    %15 = vector.load %arg4[%c0, %c0_2, %c0_3] : memref<1x4x128xf32, #tpu.memory_space<vmem>>, vector<1x1x128xf32>
    %16 = vector.shape_cast %15 : vector<1x1x128xf32> to vector<128xf32>
    %17 = vector.shape_cast %16 : vector<128xf32> to vector<1x128xf32>
    %18 = vector.broadcast %17 : vector<1x128xf32> to vector<32x128xf32>
    %c0_4 = arith.constant 0 : index
    %c1 = arith.constant 1 : index
    %c0_5 = arith.constant 0 : index
    %19 = vector.load %arg4[%c0_4, %c1, %c0_5] : memref<1x4x128xf32, #tpu.memory_space<vmem>>, vector<1x1x128xf32>
    %20 = vector.shape_cast %19 : vector<1x1x128xf32> to vector<128xf32>
    %21 = vector.shape_cast %20 : vector<128xf32> to vector<1x128xf32>
    %22 = vector.broadcast %21 : vector<1x128xf32> to vector<32x128xf32>
    %c0_6 = arith.constant 0 : index
    %c2 = arith.constant 2 : index
    %c0_7 = arith.constant 0 : index
    %23 = vector.load %arg4[%c0_6, %c2, %c0_7] : memref<1x4x128xf32, #tpu.memory_space<vmem>>, vector<1x1x128xf32>
    %24 = vector.shape_cast %23 : vector<1x1x128xf32> to vector<128xf32>
    %25 = vector.shape_cast %24 : vector<128xf32> to vector<1x128xf32>
    %26 = vector.broadcast %25 : vector<1x128xf32> to vector<32x128xf32>
    %c0_8 = arith.constant 0 : index
    %c3 = arith.constant 3 : index
    %c0_9 = arith.constant 0 : index
    %27 = vector.load %arg4[%c0_8, %c3, %c0_9] : memref<1x4x128xf32, #tpu.memory_space<vmem>>, vector<1x1x128xf32>
    %28 = vector.shape_cast %27 : vector<1x1x128xf32> to vector<128xf32>
    %29 = vector.shape_cast %28 : vector<128xf32> to vector<1x128xf32>
    %30 = vector.broadcast %29 : vector<1x128xf32> to vector<32x128xf32>
    %c0_10 = arith.constant 0 : index
    %c0_11 = arith.constant 0 : index
    %c0_12 = arith.constant 0 : index
    %c0_13 = arith.constant 0 : index
    %31 = vector.load %arg2[%c0_10, %c0_11, %c0_12, %c0_13] : memref<1x3x32x128xf32, #tpu.memory_space<vmem>>, vector<1x1x32x128xf32>
    %32 = vector.shape_cast %31 : vector<1x1x32x128xf32> to vector<32x128xf32>
    %33 = vector.extract_strided_slice %32 {offsets = [0, 64], sizes = [32, 64], strides = [1, 1]} : vector<32x128xf32> to vector<32x64xf32>
    %34 = vector.extract_strided_slice %32 {offsets = [0, 0], sizes = [32, 64], strides = [1, 1]} : vector<32x128xf32> to vector<32x64xf32>
    %35 = tpu.concatenate %33, %34 in 1 : vector<32x64xf32>, vector<32x64xf32> -> vector<32x128xf32>
    %36 = vector.extract_strided_slice %35 {offsets = [1, 0], sizes = [31, 128], strides = [1, 1]} : vector<32x128xf32> to vector<31x128xf32>
    %37 = tpu.concatenate %36, %13 in 0 : vector<31x128xf32>, vector<1x128xf32> -> vector<32x128xf32>
    %38 = vector.extract_strided_slice %35 {offsets = [0, 0], sizes = [31, 128], strides = [1, 1]} : vector<32x128xf32> to vector<31x128xf32>
    %39 = tpu.concatenate %13, %38 in 0 : vector<1x128xf32>, vector<31x128xf32> -> vector<32x128xf32>
    %40 = arith.select %2, %39, %35 : vector<32x128xi1>, vector<32x128xf32>
    %41 = arith.select %2, %35, %37 : vector<32x128xi1>, vector<32x128xf32>
    %42 = vector.extract_strided_slice %40 {offsets = [0, 0], sizes = [32, 127], strides = [1, 1]} : vector<32x128xf32> to vector<32x127xf32>
    %43 = tpu.concatenate %14, %42 in 1 : vector<32x1xf32>, vector<32x127xf32> -> vector<32x128xf32>
    %cst_14 = arith.constant 0.000000e+00 : f32
    %44 = vector.broadcast %cst_14 : f32 to vector<32x128xf32>
    %45 = arith.select %7, %44, %43 : vector<32x128xi1>, vector<32x128xf32>
    %c0_15 = arith.constant 0 : index
    %c0_16 = arith.constant 0 : index
    %c0_17 = arith.constant 0 : index
    %46 = vector.load %arg3[%c0_15, %c0_16, %c0_17] : memref<4x27x128xf32, #tpu.memory_space<vmem>>, vector<1x1x128xf32>
    %47 = vector.shape_cast %46 : vector<1x1x128xf32> to vector<128xf32>
    %48 = vector.shape_cast %47 : vector<128xf32> to vector<1x128xf32>
    %49 = vector.broadcast %48 : vector<1x128xf32> to vector<32x128xf32>
    %50 = arith.mulf %49, %45 : vector<32x128xf32>
    %51 = arith.addf %18, %50 : vector<32x128xf32>
    %c1_18 = arith.constant 1 : index
    %c0_19 = arith.constant 0 : index
    %c0_20 = arith.constant 0 : index
    %52 = vector.load %arg3[%c1_18, %c0_19, %c0_20] : memref<4x27x128xf32, #tpu.memory_space<vmem>>, vector<1x1x128xf32>
    %53 = vector.shape_cast %52 : vector<1x1x128xf32> to vector<128xf32>
    %54 = vector.shape_cast %53 : vector<128xf32> to vector<1x128xf32>
    %55 = vector.broadcast %54 : vector<1x128xf32> to vector<32x128xf32>
    %56 = arith.mulf %55, %45 : vector<32x128xf32>
    %57 = arith.addf %22, %56 : vector<32x128xf32>
    %c2_21 = arith.constant 2 : index
    %c0_22 = arith.constant 0 : index
    %c0_23 = arith.constant 0 : index
    %58 = vector.load %arg3[%c2_21, %c0_22, %c0_23] : memref<4x27x128xf32, #tpu.memory_space<vmem>>, vector<1x1x128xf32>
    %59 = vector.shape_cast %58 : vector<1x1x128xf32> to vector<128xf32>
    %60 = vector.shape_cast %59 : vector<128xf32> to vector<1x128xf32>
    %61 = vector.broadcast %60 : vector<1x128xf32> to vector<32x128xf32>
    %62 = arith.mulf %61, %45 : vector<32x128xf32>
    %63 = arith.addf %26, %62 : vector<32x128xf32>
    %c3_24 = arith.constant 3 : index
    %c0_25 = arith.constant 0 : index
    %c0_26 = arith.constant 0 : index
    %64 = vector.load %arg3[%c3_24, %c0_25, %c0_26] : memref<4x27x128xf32, #tpu.memory_space<vmem>>, vector<1x1x128xf32>
    %65 = vector.shape_cast %64 : vector<1x1x128xf32> to vector<128xf32>
    %66 = vector.shape_cast %65 : vector<128xf32> to vector<1x128xf32>
    %67 = vector.broadcast %66 : vector<1x128xf32> to vector<32x128xf32>
    %68 = arith.mulf %67, %45 : vector<32x128xf32>
    %69 = arith.addf %30, %68 : vector<32x128xf32>
    %c0_27 = arith.constant 0 : index
    %c1_28 = arith.constant 1 : index
    %c0_29 = arith.constant 0 : index
    %70 = vector.load %arg3[%c0_27, %c1_28, %c0_29] : memref<4x27x128xf32, #tpu.memory_space<vmem>>, vector<1x1x128xf32>
    %71 = vector.shape_cast %70 : vector<1x1x128xf32> to vector<128xf32>
    %72 = vector.shape_cast %71 : vector<128xf32> to vector<1x128xf32>
    %73 = vector.broadcast %72 : vector<1x128xf32> to vector<32x128xf32>
    %74 = arith.mulf %73, %40 : vector<32x128xf32>
    %75 = arith.addf %51, %74 : vector<32x128xf32>
    %c1_30 = arith.constant 1 : index
    %c1_31 = arith.constant 1 : index
    %c0_32 = arith.constant 0 : index
    %76 = vector.load %arg3[%c1_30, %c1_31, %c0_32] : memref<4x27x128xf32, #tpu.memory_space<vmem>>, vector<1x1x128xf32>
    %77 = vector.shape_cast %76 : vector<1x1x128xf32> to vector<128xf32>
    %78 = vector.shape_cast %77 : vector<128xf32> to vector<1x128xf32>
    %79 = vector.broadcast %78 : vector<1x128xf32> to vector<32x128xf32>
    %80 = arith.mulf %79, %40 : vector<32x128xf32>
    %81 = arith.addf %57, %80 : vector<32x128xf32>
    %c2_33 = arith.constant 2 : index
    %c1_34 = arith.constant 1 : index
    %c0_35 = arith.constant 0 : index
    %82 = vector.load %arg3[%c2_33, %c1_34, %c0_35] : memref<4x27x128xf32, #tpu.memory_space<vmem>>, vector<1x1x128xf32>
    %83 = vector.shape_cast %82 : vector<1x1x128xf32> to vector<128xf32>
    %84 = vector.shape_cast %83 : vector<128xf32> to vector<1x128xf32>
    %85 = vector.broadcast %84 : vector<1x128xf32> to vector<32x128xf32>
    %86 = arith.mulf %85, %40 : vector<32x128xf32>
    %87 = arith.addf %63, %86 : vector<32x128xf32>
    %c3_36 = arith.constant 3 : index
    %c1_37 = arith.constant 1 : index
    %c0_38 = arith.constant 0 : index
    %88 = vector.load %arg3[%c3_36, %c1_37, %c0_38] : memref<4x27x128xf32, #tpu.memory_space<vmem>>, vector<1x1x128xf32>
    %89 = vector.shape_cast %88 : vector<1x1x128xf32> to vector<128xf32>
    %90 = vector.shape_cast %89 : vector<128xf32> to vector<1x128xf32>
    %91 = vector.broadcast %90 : vector<1x128xf32> to vector<32x128xf32>
    %92 = arith.mulf %91, %40 : vector<32x128xf32>
    %93 = arith.addf %69, %92 : vector<32x128xf32>
    %94 = vector.extract_strided_slice %40 {offsets = [0, 1], sizes = [32, 127], strides = [1, 1]} : vector<32x128xf32> to vector<32x127xf32>
    %95 = tpu.concatenate %94, %14 in 1 : vector<32x127xf32>, vector<32x1xf32> -> vector<32x128xf32>
    %cst_39 = arith.constant 0.000000e+00 : f32
    %96 = vector.broadcast %cst_39 : f32 to vector<32x128xf32>
    %97 = arith.select %12, %96, %95 : vector<32x128xi1>, vector<32x128xf32>
    %c0_40 = arith.constant 0 : index
    %c2_41 = arith.constant 2 : index
    %c0_42 = arith.constant 0 : index
    %98 = vector.load %arg3[%c0_40, %c2_41, %c0_42] : memref<4x27x128xf32, #tpu.memory_space<vmem>>, vector<1x1x128xf32>
    %99 = vector.shape_cast %98 : vector<1x1x128xf32> to vector<128xf32>
    %100 = vector.shape_cast %99 : vector<128xf32> to vector<1x128xf32>
    %101 = vector.broadcast %100 : vector<1x128xf32> to vector<32x128xf32>
    %102 = arith.mulf %101, %97 : vector<32x128xf32>
    %103 = arith.addf %75, %102 : vector<32x128xf32>
    %c1_43 = arith.constant 1 : index
    %c2_44 = arith.constant 2 : index
    %c0_45 = arith.constant 0 : index
    %104 = vector.load %arg3[%c1_43, %c2_44, %c0_45] : memref<4x27x128xf32, #tpu.memory_space<vmem>>, vector<1x1x128xf32>
    %105 = vector.shape_cast %104 : vector<1x1x128xf32> to vector<128xf32>
    %106 = vector.shape_cast %105 : vector<128xf32> to vector<1x128xf32>
    %107 = vector.broadcast %106 : vector<1x128xf32> to vector<32x128xf32>
    %108 = arith.mulf %107, %97 : vector<32x128xf32>
    %109 = arith.addf %81, %108 : vector<32x128xf32>
    %c2_46 = arith.constant 2 : index
    %c2_47 = arith.constant 2 : index
    %c0_48 = arith.constant 0 : index
    %110 = vector.load %arg3[%c2_46, %c2_47, %c0_48] : memref<4x27x128xf32, #tpu.memory_space<vmem>>, vector<1x1x128xf32>
    %111 = vector.shape_cast %110 : vector<1x1x128xf32> to vector<128xf32>
    %112 = vector.shape_cast %111 : vector<128xf32> to vector<1x128xf32>
    %113 = vector.broadcast %112 : vector<1x128xf32> to vector<32x128xf32>
    %114 = arith.mulf %113, %97 : vector<32x128xf32>
    %115 = arith.addf %87, %114 : vector<32x128xf32>
    %c3_49 = arith.constant 3 : index
    %c2_50 = arith.constant 2 : index
    %c0_51 = arith.constant 0 : index
    %116 = vector.load %arg3[%c3_49, %c2_50, %c0_51] : memref<4x27x128xf32, #tpu.memory_space<vmem>>, vector<1x1x128xf32>
    %117 = vector.shape_cast %116 : vector<1x1x128xf32> to vector<128xf32>
    %118 = vector.shape_cast %117 : vector<128xf32> to vector<1x128xf32>
    %119 = vector.broadcast %118 : vector<1x128xf32> to vector<32x128xf32>
    %120 = arith.mulf %119, %97 : vector<32x128xf32>
    %121 = arith.addf %93, %120 : vector<32x128xf32>
    %122 = vector.extract_strided_slice %32 {offsets = [0, 0], sizes = [32, 127], strides = [1, 1]} : vector<32x128xf32> to vector<32x127xf32>
    %123 = tpu.concatenate %14, %122 in 1 : vector<32x1xf32>, vector<32x127xf32> -> vector<32x128xf32>
    %cst_52 = arith.constant 0.000000e+00 : f32
    %124 = vector.broadcast %cst_52 : f32 to vector<32x128xf32>
    %125 = arith.select %7, %124, %123 : vector<32x128xi1>, vector<32x128xf32>
    %c0_53 = arith.constant 0 : index
    %c3_54 = arith.constant 3 : index
    %c0_55 = arith.constant 0 : index
    %126 = vector.load %arg3[%c0_53, %c3_54, %c0_55] : memref<4x27x128xf32, #tpu.memory_space<vmem>>, vector<1x1x128xf32>
    %127 = vector.shape_cast %126 : vector<1x1x128xf32> to vector<128xf32>
    %128 = vector.shape_cast %127 : vector<128xf32> to vector<1x128xf32>
    %129 = vector.broadcast %128 : vector<1x128xf32> to vector<32x128xf32>
    %130 = arith.mulf %129, %125 : vector<32x128xf32>
    %131 = arith.addf %103, %130 : vector<32x128xf32>
    %c1_56 = arith.constant 1 : index
    %c3_57 = arith.constant 3 : index
    %c0_58 = arith.constant 0 : index
    %132 = vector.load %arg3[%c1_56, %c3_57, %c0_58] : memref<4x27x128xf32, #tpu.memory_space<vmem>>, vector<1x1x128xf32>
    %133 = vector.shape_cast %132 : vector<1x1x128xf32> to vector<128xf32>
    %134 = vector.shape_cast %133 : vector<128xf32> to vector<1x128xf32>
    %135 = vector.broadcast %134 : vector<1x128xf32> to vector<32x128xf32>
    %136 = arith.mulf %135, %125 : vector<32x128xf32>
    %137 = arith.addf %109, %136 : vector<32x128xf32>
    %c2_59 = arith.constant 2 : index
    %c3_60 = arith.constant 3 : index
    %c0_61 = arith.constant 0 : index
    %138 = vector.load %arg3[%c2_59, %c3_60, %c0_61] : memref<4x27x128xf32, #tpu.memory_space<vmem>>, vector<1x1x128xf32>
    %139 = vector.shape_cast %138 : vector<1x1x128xf32> to vector<128xf32>
    %140 = vector.shape_cast %139 : vector<128xf32> to vector<1x128xf32>
    %141 = vector.broadcast %140 : vector<1x128xf32> to vector<32x128xf32>
    %142 = arith.mulf %141, %125 : vector<32x128xf32>
    %143 = arith.addf %115, %142 : vector<32x128xf32>
    %c3_62 = arith.constant 3 : index
    %c3_63 = arith.constant 3 : index
    %c0_64 = arith.constant 0 : index
    %144 = vector.load %arg3[%c3_62, %c3_63, %c0_64] : memref<4x27x128xf32, #tpu.memory_space<vmem>>, vector<1x1x128xf32>
    %145 = vector.shape_cast %144 : vector<1x1x128xf32> to vector<128xf32>
    %146 = vector.shape_cast %145 : vector<128xf32> to vector<1x128xf32>
    %147 = vector.broadcast %146 : vector<1x128xf32> to vector<32x128xf32>
    %148 = arith.mulf %147, %125 : vector<32x128xf32>
    %149 = arith.addf %121, %148 : vector<32x128xf32>
    %c0_65 = arith.constant 0 : index
    %c4 = arith.constant 4 : index
    %c0_66 = arith.constant 0 : index
    %150 = vector.load %arg3[%c0_65, %c4, %c0_66] : memref<4x27x128xf32, #tpu.memory_space<vmem>>, vector<1x1x128xf32>
    %151 = vector.shape_cast %150 : vector<1x1x128xf32> to vector<128xf32>
    %152 = vector.shape_cast %151 : vector<128xf32> to vector<1x128xf32>
    %153 = vector.broadcast %152 : vector<1x128xf32> to vector<32x128xf32>
    %154 = arith.mulf %153, %32 : vector<32x128xf32>
    %155 = arith.addf %131, %154 : vector<32x128xf32>
    %c1_67 = arith.constant 1 : index
    %c4_68 = arith.constant 4 : index
    %c0_69 = arith.constant 0 : index
    %156 = vector.load %arg3[%c1_67, %c4_68, %c0_69] : memref<4x27x128xf32, #tpu.memory_space<vmem>>, vector<1x1x128xf32>
    %157 = vector.shape_cast %156 : vector<1x1x128xf32> to vector<128xf32>
    %158 = vector.shape_cast %157 : vector<128xf32> to vector<1x128xf32>
    %159 = vector.broadcast %158 : vector<1x128xf32> to vector<32x128xf32>
    %160 = arith.mulf %159, %32 : vector<32x128xf32>
    %161 = arith.addf %137, %160 : vector<32x128xf32>
    %c2_70 = arith.constant 2 : index
    %c4_71 = arith.constant 4 : index
    %c0_72 = arith.constant 0 : index
    %162 = vector.load %arg3[%c2_70, %c4_71, %c0_72] : memref<4x27x128xf32, #tpu.memory_space<vmem>>, vector<1x1x128xf32>
    %163 = vector.shape_cast %162 : vector<1x1x128xf32> to vector<128xf32>
    %164 = vector.shape_cast %163 : vector<128xf32> to vector<1x128xf32>
    %165 = vector.broadcast %164 : vector<1x128xf32> to vector<32x128xf32>
    %166 = arith.mulf %165, %32 : vector<32x128xf32>
    %167 = arith.addf %143, %166 : vector<32x128xf32>
    %c3_73 = arith.constant 3 : index
    %c4_74 = arith.constant 4 : index
    %c0_75 = arith.constant 0 : index
    %168 = vector.load %arg3[%c3_73, %c4_74, %c0_75] : memref<4x27x128xf32, #tpu.memory_space<vmem>>, vector<1x1x128xf32>
    %169 = vector.shape_cast %168 : vector<1x1x128xf32> to vector<128xf32>
    %170 = vector.shape_cast %169 : vector<128xf32> to vector<1x128xf32>
    %171 = vector.broadcast %170 : vector<1x128xf32> to vector<32x128xf32>
    %172 = arith.mulf %171, %32 : vector<32x128xf32>
    %173 = arith.addf %149, %172 : vector<32x128xf32>
    %174 = vector.extract_strided_slice %32 {offsets = [0, 1], sizes = [32, 127], strides = [1, 1]} : vector<32x128xf32> to vector<32x127xf32>
    %175 = tpu.concatenate %174, %14 in 1 : vector<32x127xf32>, vector<32x1xf32> -> vector<32x128xf32>
    %cst_76 = arith.constant 0.000000e+00 : f32
    %176 = vector.broadcast %cst_76 : f32 to vector<32x128xf32>
    %177 = arith.select %12, %176, %175 : vector<32x128xi1>, vector<32x128xf32>
    %c0_77 = arith.constant 0 : index
    %c5 = arith.constant 5 : index
    %c0_78 = arith.constant 0 : index
    %178 = vector.load %arg3[%c0_77, %c5, %c0_78] : memref<4x27x128xf32, #tpu.memory_space<vmem>>, vector<1x1x128xf32>
    %179 = vector.shape_cast %178 : vector<1x1x128xf32> to vector<128xf32>
    %180 = vector.shape_cast %179 : vector<128xf32> to vector<1x128xf32>
    %181 = vector.broadcast %180 : vector<1x128xf32> to vector<32x128xf32>
    %182 = arith.mulf %181, %177 : vector<32x128xf32>
    %183 = arith.addf %155, %182 : vector<32x128xf32>
    %c1_79 = arith.constant 1 : index
    %c5_80 = arith.constant 5 : index
    %c0_81 = arith.constant 0 : index
    %184 = vector.load %arg3[%c1_79, %c5_80, %c0_81] : memref<4x27x128xf32, #tpu.memory_space<vmem>>, vector<1x1x128xf32>
    %185 = vector.shape_cast %184 : vector<1x1x128xf32> to vector<128xf32>
    %186 = vector.shape_cast %185 : vector<128xf32> to vector<1x128xf32>
    %187 = vector.broadcast %186 : vector<1x128xf32> to vector<32x128xf32>
    %188 = arith.mulf %187, %177 : vector<32x128xf32>
    %189 = arith.addf %161, %188 : vector<32x128xf32>
    %c2_82 = arith.constant 2 : index
    %c5_83 = arith.constant 5 : index
    %c0_84 = arith.constant 0 : index
    %190 = vector.load %arg3[%c2_82, %c5_83, %c0_84] : memref<4x27x128xf32, #tpu.memory_space<vmem>>, vector<1x1x128xf32>
    %191 = vector.shape_cast %190 : vector<1x1x128xf32> to vector<128xf32>
    %192 = vector.shape_cast %191 : vector<128xf32> to vector<1x128xf32>
    %193 = vector.broadcast %192 : vector<1x128xf32> to vector<32x128xf32>
    %194 = arith.mulf %193, %177 : vector<32x128xf32>
    %195 = arith.addf %167, %194 : vector<32x128xf32>
    %c3_85 = arith.constant 3 : index
    %c5_86 = arith.constant 5 : index
    %c0_87 = arith.constant 0 : index
    %196 = vector.load %arg3[%c3_85, %c5_86, %c0_87] : memref<4x27x128xf32, #tpu.memory_space<vmem>>, vector<1x1x128xf32>
    %197 = vector.shape_cast %196 : vector<1x1x128xf32> to vector<128xf32>
    %198 = vector.shape_cast %197 : vector<128xf32> to vector<1x128xf32>
    %199 = vector.broadcast %198 : vector<1x128xf32> to vector<32x128xf32>
    %200 = arith.mulf %199, %177 : vector<32x128xf32>
    %201 = arith.addf %173, %200 : vector<32x128xf32>
    %202 = vector.extract_strided_slice %41 {offsets = [0, 0], sizes = [32, 127], strides = [1, 1]} : vector<32x128xf32> to vector<32x127xf32>
    %203 = tpu.concatenate %14, %202 in 1 : vector<32x1xf32>, vector<32x127xf32> -> vector<32x128xf32>
    %cst_88 = arith.constant 0.000000e+00 : f32
    %204 = vector.broadcast %cst_88 : f32 to vector<32x128xf32>
    %205 = arith.select %7, %204, %203 : vector<32x128xi1>, vector<32x128xf32>
    %c0_89 = arith.constant 0 : index
    %c6 = arith.constant 6 : index
    %c0_90 = arith.constant 0 : index
    %206 = vector.load %arg3[%c0_89, %c6, %c0_90] : memref<4x27x128xf32, #tpu.memory_space<vmem>>, vector<1x1x128xf32>
    %207 = vector.shape_cast %206 : vector<1x1x128xf32> to vector<128xf32>
    %208 = vector.shape_cast %207 : vector<128xf32> to vector<1x128xf32>
    %209 = vector.broadcast %208 : vector<1x128xf32> to vector<32x128xf32>
    %210 = arith.mulf %209, %205 : vector<32x128xf32>
    %211 = arith.addf %183, %210 : vector<32x128xf32>
    %c1_91 = arith.constant 1 : index
    %c6_92 = arith.constant 6 : index
    %c0_93 = arith.constant 0 : index
    %212 = vector.load %arg3[%c1_91, %c6_92, %c0_93] : memref<4x27x128xf32, #tpu.memory_space<vmem>>, vector<1x1x128xf32>
    %213 = vector.shape_cast %212 : vector<1x1x128xf32> to vector<128xf32>
    %214 = vector.shape_cast %213 : vector<128xf32> to vector<1x128xf32>
    %215 = vector.broadcast %214 : vector<1x128xf32> to vector<32x128xf32>
    %216 = arith.mulf %215, %205 : vector<32x128xf32>
    %217 = arith.addf %189, %216 : vector<32x128xf32>
    %c2_94 = arith.constant 2 : index
    %c6_95 = arith.constant 6 : index
    %c0_96 = arith.constant 0 : index
    %218 = vector.load %arg3[%c2_94, %c6_95, %c0_96] : memref<4x27x128xf32, #tpu.memory_space<vmem>>, vector<1x1x128xf32>
    %219 = vector.shape_cast %218 : vector<1x1x128xf32> to vector<128xf32>
    %220 = vector.shape_cast %219 : vector<128xf32> to vector<1x128xf32>
    %221 = vector.broadcast %220 : vector<1x128xf32> to vector<32x128xf32>
    %222 = arith.mulf %221, %205 : vector<32x128xf32>
    %223 = arith.addf %195, %222 : vector<32x128xf32>
    %c3_97 = arith.constant 3 : index
    %c6_98 = arith.constant 6 : index
    %c0_99 = arith.constant 0 : index
    %224 = vector.load %arg3[%c3_97, %c6_98, %c0_99] : memref<4x27x128xf32, #tpu.memory_space<vmem>>, vector<1x1x128xf32>
    %225 = vector.shape_cast %224 : vector<1x1x128xf32> to vector<128xf32>
    %226 = vector.shape_cast %225 : vector<128xf32> to vector<1x128xf32>
    %227 = vector.broadcast %226 : vector<1x128xf32> to vector<32x128xf32>
    %228 = arith.mulf %227, %205 : vector<32x128xf32>
    %229 = arith.addf %201, %228 : vector<32x128xf32>
    %c0_100 = arith.constant 0 : index
    %c7 = arith.constant 7 : index
    %c0_101 = arith.constant 0 : index
    %230 = vector.load %arg3[%c0_100, %c7, %c0_101] : memref<4x27x128xf32, #tpu.memory_space<vmem>>, vector<1x1x128xf32>
    %231 = vector.shape_cast %230 : vector<1x1x128xf32> to vector<128xf32>
    %232 = vector.shape_cast %231 : vector<128xf32> to vector<1x128xf32>
    %233 = vector.broadcast %232 : vector<1x128xf32> to vector<32x128xf32>
    %234 = arith.mulf %233, %41 : vector<32x128xf32>
    %235 = arith.addf %211, %234 : vector<32x128xf32>
    %c1_102 = arith.constant 1 : index
    %c7_103 = arith.constant 7 : index
    %c0_104 = arith.constant 0 : index
    %236 = vector.load %arg3[%c1_102, %c7_103, %c0_104] : memref<4x27x128xf32, #tpu.memory_space<vmem>>, vector<1x1x128xf32>
    %237 = vector.shape_cast %236 : vector<1x1x128xf32> to vector<128xf32>
    %238 = vector.shape_cast %237 : vector<128xf32> to vector<1x128xf32>
    %239 = vector.broadcast %238 : vector<1x128xf32> to vector<32x128xf32>
    %240 = arith.mulf %239, %41 : vector<32x128xf32>
    %241 = arith.addf %217, %240 : vector<32x128xf32>
    %c2_105 = arith.constant 2 : index
    %c7_106 = arith.constant 7 : index
    %c0_107 = arith.constant 0 : index
    %242 = vector.load %arg3[%c2_105, %c7_106, %c0_107] : memref<4x27x128xf32, #tpu.memory_space<vmem>>, vector<1x1x128xf32>
    %243 = vector.shape_cast %242 : vector<1x1x128xf32> to vector<128xf32>
    %244 = vector.shape_cast %243 : vector<128xf32> to vector<1x128xf32>
    %245 = vector.broadcast %244 : vector<1x128xf32> to vector<32x128xf32>
    %246 = arith.mulf %245, %41 : vector<32x128xf32>
    %247 = arith.addf %223, %246 : vector<32x128xf32>
    %c3_108 = arith.constant 3 : index
    %c7_109 = arith.constant 7 : index
    %c0_110 = arith.constant 0 : index
    %248 = vector.load %arg3[%c3_108, %c7_109, %c0_110] : memref<4x27x128xf32, #tpu.memory_space<vmem>>, vector<1x1x128xf32>
    %249 = vector.shape_cast %248 : vector<1x1x128xf32> to vector<128xf32>
    %250 = vector.shape_cast %249 : vector<128xf32> to vector<1x128xf32>
    %251 = vector.broadcast %250 : vector<1x128xf32> to vector<32x128xf32>
    %252 = arith.mulf %251, %41 : vector<32x128xf32>
    %253 = arith.addf %229, %252 : vector<32x128xf32>
    %254 = vector.extract_strided_slice %41 {offsets = [0, 1], sizes = [32, 127], strides = [1, 1]} : vector<32x128xf32> to vector<32x127xf32>
    %255 = tpu.concatenate %254, %14 in 1 : vector<32x127xf32>, vector<32x1xf32> -> vector<32x128xf32>
    %cst_111 = arith.constant 0.000000e+00 : f32
    %256 = vector.broadcast %cst_111 : f32 to vector<32x128xf32>
    %257 = arith.select %12, %256, %255 : vector<32x128xi1>, vector<32x128xf32>
    %c0_112 = arith.constant 0 : index
    %c8 = arith.constant 8 : index
    %c0_113 = arith.constant 0 : index
    %258 = vector.load %arg3[%c0_112, %c8, %c0_113] : memref<4x27x128xf32, #tpu.memory_space<vmem>>, vector<1x1x128xf32>
    %259 = vector.shape_cast %258 : vector<1x1x128xf32> to vector<128xf32>
    %260 = vector.shape_cast %259 : vector<128xf32> to vector<1x128xf32>
    %261 = vector.broadcast %260 : vector<1x128xf32> to vector<32x128xf32>
    %262 = arith.mulf %261, %257 : vector<32x128xf32>
    %263 = arith.addf %235, %262 : vector<32x128xf32>
    %c1_114 = arith.constant 1 : index
    %c8_115 = arith.constant 8 : index
    %c0_116 = arith.constant 0 : index
    %264 = vector.load %arg3[%c1_114, %c8_115, %c0_116] : memref<4x27x128xf32, #tpu.memory_space<vmem>>, vector<1x1x128xf32>
    %265 = vector.shape_cast %264 : vector<1x1x128xf32> to vector<128xf32>
    %266 = vector.shape_cast %265 : vector<128xf32> to vector<1x128xf32>
    %267 = vector.broadcast %266 : vector<1x128xf32> to vector<32x128xf32>
    %268 = arith.mulf %267, %257 : vector<32x128xf32>
    %269 = arith.addf %241, %268 : vector<32x128xf32>
    %c2_117 = arith.constant 2 : index
    %c8_118 = arith.constant 8 : index
    %c0_119 = arith.constant 0 : index
    %270 = vector.load %arg3[%c2_117, %c8_118, %c0_119] : memref<4x27x128xf32, #tpu.memory_space<vmem>>, vector<1x1x128xf32>
    %271 = vector.shape_cast %270 : vector<1x1x128xf32> to vector<128xf32>
    %272 = vector.shape_cast %271 : vector<128xf32> to vector<1x128xf32>
    %273 = vector.broadcast %272 : vector<1x128xf32> to vector<32x128xf32>
    %274 = arith.mulf %273, %257 : vector<32x128xf32>
    %275 = arith.addf %247, %274 : vector<32x128xf32>
    %c3_120 = arith.constant 3 : index
    %c8_121 = arith.constant 8 : index
    %c0_122 = arith.constant 0 : index
    %276 = vector.load %arg3[%c3_120, %c8_121, %c0_122] : memref<4x27x128xf32, #tpu.memory_space<vmem>>, vector<1x1x128xf32>
    %277 = vector.shape_cast %276 : vector<1x1x128xf32> to vector<128xf32>
    %278 = vector.shape_cast %277 : vector<128xf32> to vector<1x128xf32>
    %279 = vector.broadcast %278 : vector<1x128xf32> to vector<32x128xf32>
    %280 = arith.mulf %279, %257 : vector<32x128xf32>
    %281 = arith.addf %253, %280 : vector<32x128xf32>
    %c0_123 = arith.constant 0 : index
    %c1_124 = arith.constant 1 : index
    %c0_125 = arith.constant 0 : index
    %c0_126 = arith.constant 0 : index
    %282 = vector.load %arg2[%c0_123, %c1_124, %c0_125, %c0_126] : memref<1x3x32x128xf32, #tpu.memory_space<vmem>>, vector<1x1x32x128xf32>
    %283 = vector.shape_cast %282 : vector<1x1x32x128xf32> to vector<32x128xf32>
    %284 = vector.extract_strided_slice %283 {offsets = [0, 64], sizes = [32, 64], strides = [1, 1]} : vector<32x128xf32> to vector<32x64xf32>
    %285 = vector.extract_strided_slice %283 {offsets = [0, 0], sizes = [32, 64], strides = [1, 1]} : vector<32x128xf32> to vector<32x64xf32>
    %286 = tpu.concatenate %284, %285 in 1 : vector<32x64xf32>, vector<32x64xf32> -> vector<32x128xf32>
    %287 = vector.extract_strided_slice %286 {offsets = [1, 0], sizes = [31, 128], strides = [1, 1]} : vector<32x128xf32> to vector<31x128xf32>
    %288 = tpu.concatenate %287, %13 in 0 : vector<31x128xf32>, vector<1x128xf32> -> vector<32x128xf32>
    %289 = vector.extract_strided_slice %286 {offsets = [0, 0], sizes = [31, 128], strides = [1, 1]} : vector<32x128xf32> to vector<31x128xf32>
    %290 = tpu.concatenate %13, %289 in 0 : vector<1x128xf32>, vector<31x128xf32> -> vector<32x128xf32>
    %291 = arith.select %2, %290, %286 : vector<32x128xi1>, vector<32x128xf32>
    %292 = arith.select %2, %286, %288 : vector<32x128xi1>, vector<32x128xf32>
    %293 = vector.extract_strided_slice %291 {offsets = [0, 0], sizes = [32, 127], strides = [1, 1]} : vector<32x128xf32> to vector<32x127xf32>
    %294 = tpu.concatenate %14, %293 in 1 : vector<32x1xf32>, vector<32x127xf32> -> vector<32x128xf32>
    %cst_127 = arith.constant 0.000000e+00 : f32
    %295 = vector.broadcast %cst_127 : f32 to vector<32x128xf32>
    %296 = arith.select %7, %295, %294 : vector<32x128xi1>, vector<32x128xf32>
    %c0_128 = arith.constant 0 : index
    %c9 = arith.constant 9 : index
    %c0_129 = arith.constant 0 : index
    %297 = vector.load %arg3[%c0_128, %c9, %c0_129] : memref<4x27x128xf32, #tpu.memory_space<vmem>>, vector<1x1x128xf32>
    %298 = vector.shape_cast %297 : vector<1x1x128xf32> to vector<128xf32>
    %299 = vector.shape_cast %298 : vector<128xf32> to vector<1x128xf32>
    %300 = vector.broadcast %299 : vector<1x128xf32> to vector<32x128xf32>
    %301 = arith.mulf %300, %296 : vector<32x128xf32>
    %302 = arith.addf %263, %301 : vector<32x128xf32>
    %c1_130 = arith.constant 1 : index
    %c9_131 = arith.constant 9 : index
    %c0_132 = arith.constant 0 : index
    %303 = vector.load %arg3[%c1_130, %c9_131, %c0_132] : memref<4x27x128xf32, #tpu.memory_space<vmem>>, vector<1x1x128xf32>
    %304 = vector.shape_cast %303 : vector<1x1x128xf32> to vector<128xf32>
    %305 = vector.shape_cast %304 : vector<128xf32> to vector<1x128xf32>
    %306 = vector.broadcast %305 : vector<1x128xf32> to vector<32x128xf32>
    %307 = arith.mulf %306, %296 : vector<32x128xf32>
    %308 = arith.addf %269, %307 : vector<32x128xf32>
    %c2_133 = arith.constant 2 : index
    %c9_134 = arith.constant 9 : index
    %c0_135 = arith.constant 0 : index
    %309 = vector.load %arg3[%c2_133, %c9_134, %c0_135] : memref<4x27x128xf32, #tpu.memory_space<vmem>>, vector<1x1x128xf32>
    %310 = vector.shape_cast %309 : vector<1x1x128xf32> to vector<128xf32>
    %311 = vector.shape_cast %310 : vector<128xf32> to vector<1x128xf32>
    %312 = vector.broadcast %311 : vector<1x128xf32> to vector<32x128xf32>
    %313 = arith.mulf %312, %296 : vector<32x128xf32>
    %314 = arith.addf %275, %313 : vector<32x128xf32>
    %c3_136 = arith.constant 3 : index
    %c9_137 = arith.constant 9 : index
    %c0_138 = arith.constant 0 : index
    %315 = vector.load %arg3[%c3_136, %c9_137, %c0_138] : memref<4x27x128xf32, #tpu.memory_space<vmem>>, vector<1x1x128xf32>
    %316 = vector.shape_cast %315 : vector<1x1x128xf32> to vector<128xf32>
    %317 = vector.shape_cast %316 : vector<128xf32> to vector<1x128xf32>
    %318 = vector.broadcast %317 : vector<1x128xf32> to vector<32x128xf32>
    %319 = arith.mulf %318, %296 : vector<32x128xf32>
    %320 = arith.addf %281, %319 : vector<32x128xf32>
    %c0_139 = arith.constant 0 : index
    %c10 = arith.constant 10 : index
    %c0_140 = arith.constant 0 : index
    %321 = vector.load %arg3[%c0_139, %c10, %c0_140] : memref<4x27x128xf32, #tpu.memory_space<vmem>>, vector<1x1x128xf32>
    %322 = vector.shape_cast %321 : vector<1x1x128xf32> to vector<128xf32>
    %323 = vector.shape_cast %322 : vector<128xf32> to vector<1x128xf32>
    %324 = vector.broadcast %323 : vector<1x128xf32> to vector<32x128xf32>
    %325 = arith.mulf %324, %291 : vector<32x128xf32>
    %326 = arith.addf %302, %325 : vector<32x128xf32>
    %c1_141 = arith.constant 1 : index
    %c10_142 = arith.constant 10 : index
    %c0_143 = arith.constant 0 : index
    %327 = vector.load %arg3[%c1_141, %c10_142, %c0_143] : memref<4x27x128xf32, #tpu.memory_space<vmem>>, vector<1x1x128xf32>
    %328 = vector.shape_cast %327 : vector<1x1x128xf32> to vector<128xf32>
    %329 = vector.shape_cast %328 : vector<128xf32> to vector<1x128xf32>
    %330 = vector.broadcast %329 : vector<1x128xf32> to vector<32x128xf32>
    %331 = arith.mulf %330, %291 : vector<32x128xf32>
    %332 = arith.addf %308, %331 : vector<32x128xf32>
    %c2_144 = arith.constant 2 : index
    %c10_145 = arith.constant 10 : index
    %c0_146 = arith.constant 0 : index
    %333 = vector.load %arg3[%c2_144, %c10_145, %c0_146] : memref<4x27x128xf32, #tpu.memory_space<vmem>>, vector<1x1x128xf32>
    %334 = vector.shape_cast %333 : vector<1x1x128xf32> to vector<128xf32>
    %335 = vector.shape_cast %334 : vector<128xf32> to vector<1x128xf32>
    %336 = vector.broadcast %335 : vector<1x128xf32> to vector<32x128xf32>
    %337 = arith.mulf %336, %291 : vector<32x128xf32>
    %338 = arith.addf %314, %337 : vector<32x128xf32>
    %c3_147 = arith.constant 3 : index
    %c10_148 = arith.constant 10 : index
    %c0_149 = arith.constant 0 : index
    %339 = vector.load %arg3[%c3_147, %c10_148, %c0_149] : memref<4x27x128xf32, #tpu.memory_space<vmem>>, vector<1x1x128xf32>
    %340 = vector.shape_cast %339 : vector<1x1x128xf32> to vector<128xf32>
    %341 = vector.shape_cast %340 : vector<128xf32> to vector<1x128xf32>
    %342 = vector.broadcast %341 : vector<1x128xf32> to vector<32x128xf32>
    %343 = arith.mulf %342, %291 : vector<32x128xf32>
    %344 = arith.addf %320, %343 : vector<32x128xf32>
    %345 = vector.extract_strided_slice %291 {offsets = [0, 1], sizes = [32, 127], strides = [1, 1]} : vector<32x128xf32> to vector<32x127xf32>
    %346 = tpu.concatenate %345, %14 in 1 : vector<32x127xf32>, vector<32x1xf32> -> vector<32x128xf32>
    %cst_150 = arith.constant 0.000000e+00 : f32
    %347 = vector.broadcast %cst_150 : f32 to vector<32x128xf32>
    %348 = arith.select %12, %347, %346 : vector<32x128xi1>, vector<32x128xf32>
    %c0_151 = arith.constant 0 : index
    %c11 = arith.constant 11 : index
    %c0_152 = arith.constant 0 : index
    %349 = vector.load %arg3[%c0_151, %c11, %c0_152] : memref<4x27x128xf32, #tpu.memory_space<vmem>>, vector<1x1x128xf32>
    %350 = vector.shape_cast %349 : vector<1x1x128xf32> to vector<128xf32>
    %351 = vector.shape_cast %350 : vector<128xf32> to vector<1x128xf32>
    %352 = vector.broadcast %351 : vector<1x128xf32> to vector<32x128xf32>
    %353 = arith.mulf %352, %348 : vector<32x128xf32>
    %354 = arith.addf %326, %353 : vector<32x128xf32>
    %c1_153 = arith.constant 1 : index
    %c11_154 = arith.constant 11 : index
    %c0_155 = arith.constant 0 : index
    %355 = vector.load %arg3[%c1_153, %c11_154, %c0_155] : memref<4x27x128xf32, #tpu.memory_space<vmem>>, vector<1x1x128xf32>
    %356 = vector.shape_cast %355 : vector<1x1x128xf32> to vector<128xf32>
    %357 = vector.shape_cast %356 : vector<128xf32> to vector<1x128xf32>
    %358 = vector.broadcast %357 : vector<1x128xf32> to vector<32x128xf32>
    %359 = arith.mulf %358, %348 : vector<32x128xf32>
    %360 = arith.addf %332, %359 : vector<32x128xf32>
    %c2_156 = arith.constant 2 : index
    %c11_157 = arith.constant 11 : index
    %c0_158 = arith.constant 0 : index
    %361 = vector.load %arg3[%c2_156, %c11_157, %c0_158] : memref<4x27x128xf32, #tpu.memory_space<vmem>>, vector<1x1x128xf32>
    %362 = vector.shape_cast %361 : vector<1x1x128xf32> to vector<128xf32>
    %363 = vector.shape_cast %362 : vector<128xf32> to vector<1x128xf32>
    %364 = vector.broadcast %363 : vector<1x128xf32> to vector<32x128xf32>
    %365 = arith.mulf %364, %348 : vector<32x128xf32>
    %366 = arith.addf %338, %365 : vector<32x128xf32>
    %c3_159 = arith.constant 3 : index
    %c11_160 = arith.constant 11 : index
    %c0_161 = arith.constant 0 : index
    %367 = vector.load %arg3[%c3_159, %c11_160, %c0_161] : memref<4x27x128xf32, #tpu.memory_space<vmem>>, vector<1x1x128xf32>
    %368 = vector.shape_cast %367 : vector<1x1x128xf32> to vector<128xf32>
    %369 = vector.shape_cast %368 : vector<128xf32> to vector<1x128xf32>
    %370 = vector.broadcast %369 : vector<1x128xf32> to vector<32x128xf32>
    %371 = arith.mulf %370, %348 : vector<32x128xf32>
    %372 = arith.addf %344, %371 : vector<32x128xf32>
    %373 = vector.extract_strided_slice %283 {offsets = [0, 0], sizes = [32, 127], strides = [1, 1]} : vector<32x128xf32> to vector<32x127xf32>
    %374 = tpu.concatenate %14, %373 in 1 : vector<32x1xf32>, vector<32x127xf32> -> vector<32x128xf32>
    %cst_162 = arith.constant 0.000000e+00 : f32
    %375 = vector.broadcast %cst_162 : f32 to vector<32x128xf32>
    %376 = arith.select %7, %375, %374 : vector<32x128xi1>, vector<32x128xf32>
    %c0_163 = arith.constant 0 : index
    %c12 = arith.constant 12 : index
    %c0_164 = arith.constant 0 : index
    %377 = vector.load %arg3[%c0_163, %c12, %c0_164] : memref<4x27x128xf32, #tpu.memory_space<vmem>>, vector<1x1x128xf32>
    %378 = vector.shape_cast %377 : vector<1x1x128xf32> to vector<128xf32>
    %379 = vector.shape_cast %378 : vector<128xf32> to vector<1x128xf32>
    %380 = vector.broadcast %379 : vector<1x128xf32> to vector<32x128xf32>
    %381 = arith.mulf %380, %376 : vector<32x128xf32>
    %382 = arith.addf %354, %381 : vector<32x128xf32>
    %c1_165 = arith.constant 1 : index
    %c12_166 = arith.constant 12 : index
    %c0_167 = arith.constant 0 : index
    %383 = vector.load %arg3[%c1_165, %c12_166, %c0_167] : memref<4x27x128xf32, #tpu.memory_space<vmem>>, vector<1x1x128xf32>
    %384 = vector.shape_cast %383 : vector<1x1x128xf32> to vector<128xf32>
    %385 = vector.shape_cast %384 : vector<128xf32> to vector<1x128xf32>
    %386 = vector.broadcast %385 : vector<1x128xf32> to vector<32x128xf32>
    %387 = arith.mulf %386, %376 : vector<32x128xf32>
    %388 = arith.addf %360, %387 : vector<32x128xf32>
    %c2_168 = arith.constant 2 : index
    %c12_169 = arith.constant 12 : index
    %c0_170 = arith.constant 0 : index
    %389 = vector.load %arg3[%c2_168, %c12_169, %c0_170] : memref<4x27x128xf32, #tpu.memory_space<vmem>>, vector<1x1x128xf32>
    %390 = vector.shape_cast %389 : vector<1x1x128xf32> to vector<128xf32>
    %391 = vector.shape_cast %390 : vector<128xf32> to vector<1x128xf32>
    %392 = vector.broadcast %391 : vector<1x128xf32> to vector<32x128xf32>
    %393 = arith.mulf %392, %376 : vector<32x128xf32>
    %394 = arith.addf %366, %393 : vector<32x128xf32>
    %c3_171 = arith.constant 3 : index
    %c12_172 = arith.constant 12 : index
    %c0_173 = arith.constant 0 : index
    %395 = vector.load %arg3[%c3_171, %c12_172, %c0_173] : memref<4x27x128xf32, #tpu.memory_space<vmem>>, vector<1x1x128xf32>
    %396 = vector.shape_cast %395 : vector<1x1x128xf32> to vector<128xf32>
    %397 = vector.shape_cast %396 : vector<128xf32> to vector<1x128xf32>
    %398 = vector.broadcast %397 : vector<1x128xf32> to vector<32x128xf32>
    %399 = arith.mulf %398, %376 : vector<32x128xf32>
    %400 = arith.addf %372, %399 : vector<32x128xf32>
    %c0_174 = arith.constant 0 : index
    %c13 = arith.constant 13 : index
    %c0_175 = arith.constant 0 : index
    %401 = vector.load %arg3[%c0_174, %c13, %c0_175] : memref<4x27x128xf32, #tpu.memory_space<vmem>>, vector<1x1x128xf32>
    %402 = vector.shape_cast %401 : vector<1x1x128xf32> to vector<128xf32>
    %403 = vector.shape_cast %402 : vector<128xf32> to vector<1x128xf32>
    %404 = vector.broadcast %403 : vector<1x128xf32> to vector<32x128xf32>
    %405 = arith.mulf %404, %283 : vector<32x128xf32>
    %406 = arith.addf %382, %405 : vector<32x128xf32>
    %c1_176 = arith.constant 1 : index
    %c13_177 = arith.constant 13 : index
    %c0_178 = arith.constant 0 : index
    %407 = vector.load %arg3[%c1_176, %c13_177, %c0_178] : memref<4x27x128xf32, #tpu.memory_space<vmem>>, vector<1x1x128xf32>
    %408 = vector.shape_cast %407 : vector<1x1x128xf32> to vector<128xf32>
    %409 = vector.shape_cast %408 : vector<128xf32> to vector<1x128xf32>
    %410 = vector.broadcast %409 : vector<1x128xf32> to vector<32x128xf32>
    %411 = arith.mulf %410, %283 : vector<32x128xf32>
    %412 = arith.addf %388, %411 : vector<32x128xf32>
    %c2_179 = arith.constant 2 : index
    %c13_180 = arith.constant 13 : index
    %c0_181 = arith.constant 0 : index
    %413 = vector.load %arg3[%c2_179, %c13_180, %c0_181] : memref<4x27x128xf32, #tpu.memory_space<vmem>>, vector<1x1x128xf32>
    %414 = vector.shape_cast %413 : vector<1x1x128xf32> to vector<128xf32>
    %415 = vector.shape_cast %414 : vector<128xf32> to vector<1x128xf32>
    %416 = vector.broadcast %415 : vector<1x128xf32> to vector<32x128xf32>
    %417 = arith.mulf %416, %283 : vector<32x128xf32>
    %418 = arith.addf %394, %417 : vector<32x128xf32>
    %c3_182 = arith.constant 3 : index
    %c13_183 = arith.constant 13 : index
    %c0_184 = arith.constant 0 : index
    %419 = vector.load %arg3[%c3_182, %c13_183, %c0_184] : memref<4x27x128xf32, #tpu.memory_space<vmem>>, vector<1x1x128xf32>
    %420 = vector.shape_cast %419 : vector<1x1x128xf32> to vector<128xf32>
    %421 = vector.shape_cast %420 : vector<128xf32> to vector<1x128xf32>
    %422 = vector.broadcast %421 : vector<1x128xf32> to vector<32x128xf32>
    %423 = arith.mulf %422, %283 : vector<32x128xf32>
    %424 = arith.addf %400, %423 : vector<32x128xf32>
    %425 = vector.extract_strided_slice %283 {offsets = [0, 1], sizes = [32, 127], strides = [1, 1]} : vector<32x128xf32> to vector<32x127xf32>
    %426 = tpu.concatenate %425, %14 in 1 : vector<32x127xf32>, vector<32x1xf32> -> vector<32x128xf32>
    %cst_185 = arith.constant 0.000000e+00 : f32
    %427 = vector.broadcast %cst_185 : f32 to vector<32x128xf32>
    %428 = arith.select %12, %427, %426 : vector<32x128xi1>, vector<32x128xf32>
    %c0_186 = arith.constant 0 : index
    %c14 = arith.constant 14 : index
    %c0_187 = arith.constant 0 : index
    %429 = vector.load %arg3[%c0_186, %c14, %c0_187] : memref<4x27x128xf32, #tpu.memory_space<vmem>>, vector<1x1x128xf32>
    %430 = vector.shape_cast %429 : vector<1x1x128xf32> to vector<128xf32>
    %431 = vector.shape_cast %430 : vector<128xf32> to vector<1x128xf32>
    %432 = vector.broadcast %431 : vector<1x128xf32> to vector<32x128xf32>
    %433 = arith.mulf %432, %428 : vector<32x128xf32>
    %434 = arith.addf %406, %433 : vector<32x128xf32>
    %c1_188 = arith.constant 1 : index
    %c14_189 = arith.constant 14 : index
    %c0_190 = arith.constant 0 : index
    %435 = vector.load %arg3[%c1_188, %c14_189, %c0_190] : memref<4x27x128xf32, #tpu.memory_space<vmem>>, vector<1x1x128xf32>
    %436 = vector.shape_cast %435 : vector<1x1x128xf32> to vector<128xf32>
    %437 = vector.shape_cast %436 : vector<128xf32> to vector<1x128xf32>
    %438 = vector.broadcast %437 : vector<1x128xf32> to vector<32x128xf32>
    %439 = arith.mulf %438, %428 : vector<32x128xf32>
    %440 = arith.addf %412, %439 : vector<32x128xf32>
    %c2_191 = arith.constant 2 : index
    %c14_192 = arith.constant 14 : index
    %c0_193 = arith.constant 0 : index
    %441 = vector.load %arg3[%c2_191, %c14_192, %c0_193] : memref<4x27x128xf32, #tpu.memory_space<vmem>>, vector<1x1x128xf32>
    %442 = vector.shape_cast %441 : vector<1x1x128xf32> to vector<128xf32>
    %443 = vector.shape_cast %442 : vector<128xf32> to vector<1x128xf32>
    %444 = vector.broadcast %443 : vector<1x128xf32> to vector<32x128xf32>
    %445 = arith.mulf %444, %428 : vector<32x128xf32>
    %446 = arith.addf %418, %445 : vector<32x128xf32>
    %c3_194 = arith.constant 3 : index
    %c14_195 = arith.constant 14 : index
    %c0_196 = arith.constant 0 : index
    %447 = vector.load %arg3[%c3_194, %c14_195, %c0_196] : memref<4x27x128xf32, #tpu.memory_space<vmem>>, vector<1x1x128xf32>
    %448 = vector.shape_cast %447 : vector<1x1x128xf32> to vector<128xf32>
    %449 = vector.shape_cast %448 : vector<128xf32> to vector<1x128xf32>
    %450 = vector.broadcast %449 : vector<1x128xf32> to vector<32x128xf32>
    %451 = arith.mulf %450, %428 : vector<32x128xf32>
    %452 = arith.addf %424, %451 : vector<32x128xf32>
    %453 = vector.extract_strided_slice %292 {offsets = [0, 0], sizes = [32, 127], strides = [1, 1]} : vector<32x128xf32> to vector<32x127xf32>
    %454 = tpu.concatenate %14, %453 in 1 : vector<32x1xf32>, vector<32x127xf32> -> vector<32x128xf32>
    %cst_197 = arith.constant 0.000000e+00 : f32
    %455 = vector.broadcast %cst_197 : f32 to vector<32x128xf32>
    %456 = arith.select %7, %455, %454 : vector<32x128xi1>, vector<32x128xf32>
    %c0_198 = arith.constant 0 : index
    %c15 = arith.constant 15 : index
    %c0_199 = arith.constant 0 : index
    %457 = vector.load %arg3[%c0_198, %c15, %c0_199] : memref<4x27x128xf32, #tpu.memory_space<vmem>>, vector<1x1x128xf32>
    %458 = vector.shape_cast %457 : vector<1x1x128xf32> to vector<128xf32>
    %459 = vector.shape_cast %458 : vector<128xf32> to vector<1x128xf32>
    %460 = vector.broadcast %459 : vector<1x128xf32> to vector<32x128xf32>
    %461 = arith.mulf %460, %456 : vector<32x128xf32>
    %462 = arith.addf %434, %461 : vector<32x128xf32>
    %c1_200 = arith.constant 1 : index
    %c15_201 = arith.constant 15 : index
    %c0_202 = arith.constant 0 : index
    %463 = vector.load %arg3[%c1_200, %c15_201, %c0_202] : memref<4x27x128xf32, #tpu.memory_space<vmem>>, vector<1x1x128xf32>
    %464 = vector.shape_cast %463 : vector<1x1x128xf32> to vector<128xf32>
    %465 = vector.shape_cast %464 : vector<128xf32> to vector<1x128xf32>
    %466 = vector.broadcast %465 : vector<1x128xf32> to vector<32x128xf32>
    %467 = arith.mulf %466, %456 : vector<32x128xf32>
    %468 = arith.addf %440, %467 : vector<32x128xf32>
    %c2_203 = arith.constant 2 : index
    %c15_204 = arith.constant 15 : index
    %c0_205 = arith.constant 0 : index
    %469 = vector.load %arg3[%c2_203, %c15_204, %c0_205] : memref<4x27x128xf32, #tpu.memory_space<vmem>>, vector<1x1x128xf32>
    %470 = vector.shape_cast %469 : vector<1x1x128xf32> to vector<128xf32>
    %471 = vector.shape_cast %470 : vector<128xf32> to vector<1x128xf32>
    %472 = vector.broadcast %471 : vector<1x128xf32> to vector<32x128xf32>
    %473 = arith.mulf %472, %456 : vector<32x128xf32>
    %474 = arith.addf %446, %473 : vector<32x128xf32>
    %c3_206 = arith.constant 3 : index
    %c15_207 = arith.constant 15 : index
    %c0_208 = arith.constant 0 : index
    %475 = vector.load %arg3[%c3_206, %c15_207, %c0_208] : memref<4x27x128xf32, #tpu.memory_space<vmem>>, vector<1x1x128xf32>
    %476 = vector.shape_cast %475 : vector<1x1x128xf32> to vector<128xf32>
    %477 = vector.shape_cast %476 : vector<128xf32> to vector<1x128xf32>
    %478 = vector.broadcast %477 : vector<1x128xf32> to vector<32x128xf32>
    %479 = arith.mulf %478, %456 : vector<32x128xf32>
    %480 = arith.addf %452, %479 : vector<32x128xf32>
    %c0_209 = arith.constant 0 : index
    %c16 = arith.constant 16 : index
    %c0_210 = arith.constant 0 : index
    %481 = vector.load %arg3[%c0_209, %c16, %c0_210] : memref<4x27x128xf32, #tpu.memory_space<vmem>>, vector<1x1x128xf32>
    %482 = vector.shape_cast %481 : vector<1x1x128xf32> to vector<128xf32>
    %483 = vector.shape_cast %482 : vector<128xf32> to vector<1x128xf32>
    %484 = vector.broadcast %483 : vector<1x128xf32> to vector<32x128xf32>
    %485 = arith.mulf %484, %292 : vector<32x128xf32>
    %486 = arith.addf %462, %485 : vector<32x128xf32>
    %c1_211 = arith.constant 1 : index
    %c16_212 = arith.constant 16 : index
    %c0_213 = arith.constant 0 : index
    %487 = vector.load %arg3[%c1_211, %c16_212, %c0_213] : memref<4x27x128xf32, #tpu.memory_space<vmem>>, vector<1x1x128xf32>
    %488 = vector.shape_cast %487 : vector<1x1x128xf32> to vector<128xf32>
    %489 = vector.shape_cast %488 : vector<128xf32> to vector<1x128xf32>
    %490 = vector.broadcast %489 : vector<1x128xf32> to vector<32x128xf32>
    %491 = arith.mulf %490, %292 : vector<32x128xf32>
    %492 = arith.addf %468, %491 : vector<32x128xf32>
    %c2_214 = arith.constant 2 : index
    %c16_215 = arith.constant 16 : index
    %c0_216 = arith.constant 0 : index
    %493 = vector.load %arg3[%c2_214, %c16_215, %c0_216] : memref<4x27x128xf32, #tpu.memory_space<vmem>>, vector<1x1x128xf32>
    %494 = vector.shape_cast %493 : vector<1x1x128xf32> to vector<128xf32>
    %495 = vector.shape_cast %494 : vector<128xf32> to vector<1x128xf32>
    %496 = vector.broadcast %495 : vector<1x128xf32> to vector<32x128xf32>
    %497 = arith.mulf %496, %292 : vector<32x128xf32>
    %498 = arith.addf %474, %497 : vector<32x128xf32>
    %c3_217 = arith.constant 3 : index
    %c16_218 = arith.constant 16 : index
    %c0_219 = arith.constant 0 : index
    %499 = vector.load %arg3[%c3_217, %c16_218, %c0_219] : memref<4x27x128xf32, #tpu.memory_space<vmem>>, vector<1x1x128xf32>
    %500 = vector.shape_cast %499 : vector<1x1x128xf32> to vector<128xf32>
    %501 = vector.shape_cast %500 : vector<128xf32> to vector<1x128xf32>
    %502 = vector.broadcast %501 : vector<1x128xf32> to vector<32x128xf32>
    %503 = arith.mulf %502, %292 : vector<32x128xf32>
    %504 = arith.addf %480, %503 : vector<32x128xf32>
    %505 = vector.extract_strided_slice %292 {offsets = [0, 1], sizes = [32, 127], strides = [1, 1]} : vector<32x128xf32> to vector<32x127xf32>
    %506 = tpu.concatenate %505, %14 in 1 : vector<32x127xf32>, vector<32x1xf32> -> vector<32x128xf32>
    %cst_220 = arith.constant 0.000000e+00 : f32
    %507 = vector.broadcast %cst_220 : f32 to vector<32x128xf32>
    %508 = arith.select %12, %507, %506 : vector<32x128xi1>, vector<32x128xf32>
    %c0_221 = arith.constant 0 : index
    %c17 = arith.constant 17 : index
    %c0_222 = arith.constant 0 : index
    %509 = vector.load %arg3[%c0_221, %c17, %c0_222] : memref<4x27x128xf32, #tpu.memory_space<vmem>>, vector<1x1x128xf32>
    %510 = vector.shape_cast %509 : vector<1x1x128xf32> to vector<128xf32>
    %511 = vector.shape_cast %510 : vector<128xf32> to vector<1x128xf32>
    %512 = vector.broadcast %511 : vector<1x128xf32> to vector<32x128xf32>
    %513 = arith.mulf %512, %508 : vector<32x128xf32>
    %514 = arith.addf %486, %513 : vector<32x128xf32>
    %c1_223 = arith.constant 1 : index
    %c17_224 = arith.constant 17 : index
    %c0_225 = arith.constant 0 : index
    %515 = vector.load %arg3[%c1_223, %c17_224, %c0_225] : memref<4x27x128xf32, #tpu.memory_space<vmem>>, vector<1x1x128xf32>
    %516 = vector.shape_cast %515 : vector<1x1x128xf32> to vector<128xf32>
    %517 = vector.shape_cast %516 : vector<128xf32> to vector<1x128xf32>
    %518 = vector.broadcast %517 : vector<1x128xf32> to vector<32x128xf32>
    %519 = arith.mulf %518, %508 : vector<32x128xf32>
    %520 = arith.addf %492, %519 : vector<32x128xf32>
    %c2_226 = arith.constant 2 : index
    %c17_227 = arith.constant 17 : index
    %c0_228 = arith.constant 0 : index
    %521 = vector.load %arg3[%c2_226, %c17_227, %c0_228] : memref<4x27x128xf32, #tpu.memory_space<vmem>>, vector<1x1x128xf32>
    %522 = vector.shape_cast %521 : vector<1x1x128xf32> to vector<128xf32>
    %523 = vector.shape_cast %522 : vector<128xf32> to vector<1x128xf32>
    %524 = vector.broadcast %523 : vector<1x128xf32> to vector<32x128xf32>
    %525 = arith.mulf %524, %508 : vector<32x128xf32>
    %526 = arith.addf %498, %525 : vector<32x128xf32>
    %c3_229 = arith.constant 3 : index
    %c17_230 = arith.constant 17 : index
    %c0_231 = arith.constant 0 : index
    %527 = vector.load %arg3[%c3_229, %c17_230, %c0_231] : memref<4x27x128xf32, #tpu.memory_space<vmem>>, vector<1x1x128xf32>
    %528 = vector.shape_cast %527 : vector<1x1x128xf32> to vector<128xf32>
    %529 = vector.shape_cast %528 : vector<128xf32> to vector<1x128xf32>
    %530 = vector.broadcast %529 : vector<1x128xf32> to vector<32x128xf32>
    %531 = arith.mulf %530, %508 : vector<32x128xf32>
    %532 = arith.addf %504, %531 : vector<32x128xf32>
    %c0_232 = arith.constant 0 : index
    %c2_233 = arith.constant 2 : index
    %c0_234 = arith.constant 0 : index
    %c0_235 = arith.constant 0 : index
    %533 = vector.load %arg2[%c0_232, %c2_233, %c0_234, %c0_235] : memref<1x3x32x128xf32, #tpu.memory_space<vmem>>, vector<1x1x32x128xf32>
    %534 = vector.shape_cast %533 : vector<1x1x32x128xf32> to vector<32x128xf32>
    %535 = vector.extract_strided_slice %534 {offsets = [0, 64], sizes = [32, 64], strides = [1, 1]} : vector<32x128xf32> to vector<32x64xf32>
    %536 = vector.extract_strided_slice %534 {offsets = [0, 0], sizes = [32, 64], strides = [1, 1]} : vector<32x128xf32> to vector<32x64xf32>
    %537 = tpu.concatenate %535, %536 in 1 : vector<32x64xf32>, vector<32x64xf32> -> vector<32x128xf32>
    %538 = vector.extract_strided_slice %537 {offsets = [1, 0], sizes = [31, 128], strides = [1, 1]} : vector<32x128xf32> to vector<31x128xf32>
    %539 = tpu.concatenate %538, %13 in 0 : vector<31x128xf32>, vector<1x128xf32> -> vector<32x128xf32>
    %540 = vector.extract_strided_slice %537 {offsets = [0, 0], sizes = [31, 128], strides = [1, 1]} : vector<32x128xf32> to vector<31x128xf32>
    %541 = tpu.concatenate %13, %540 in 0 : vector<1x128xf32>, vector<31x128xf32> -> vector<32x128xf32>
    %542 = arith.select %2, %541, %537 : vector<32x128xi1>, vector<32x128xf32>
    %543 = arith.select %2, %537, %539 : vector<32x128xi1>, vector<32x128xf32>
    %544 = vector.extract_strided_slice %542 {offsets = [0, 0], sizes = [32, 127], strides = [1, 1]} : vector<32x128xf32> to vector<32x127xf32>
    %545 = tpu.concatenate %14, %544 in 1 : vector<32x1xf32>, vector<32x127xf32> -> vector<32x128xf32>
    %cst_236 = arith.constant 0.000000e+00 : f32
    %546 = vector.broadcast %cst_236 : f32 to vector<32x128xf32>
    %547 = arith.select %7, %546, %545 : vector<32x128xi1>, vector<32x128xf32>
    %c0_237 = arith.constant 0 : index
    %c18 = arith.constant 18 : index
    %c0_238 = arith.constant 0 : index
    %548 = vector.load %arg3[%c0_237, %c18, %c0_238] : memref<4x27x128xf32, #tpu.memory_space<vmem>>, vector<1x1x128xf32>
    %549 = vector.shape_cast %548 : vector<1x1x128xf32> to vector<128xf32>
    %550 = vector.shape_cast %549 : vector<128xf32> to vector<1x128xf32>
    %551 = vector.broadcast %550 : vector<1x128xf32> to vector<32x128xf32>
    %552 = arith.mulf %551, %547 : vector<32x128xf32>
    %553 = arith.addf %514, %552 : vector<32x128xf32>
    %c1_239 = arith.constant 1 : index
    %c18_240 = arith.constant 18 : index
    %c0_241 = arith.constant 0 : index
    %554 = vector.load %arg3[%c1_239, %c18_240, %c0_241] : memref<4x27x128xf32, #tpu.memory_space<vmem>>, vector<1x1x128xf32>
    %555 = vector.shape_cast %554 : vector<1x1x128xf32> to vector<128xf32>
    %556 = vector.shape_cast %555 : vector<128xf32> to vector<1x128xf32>
    %557 = vector.broadcast %556 : vector<1x128xf32> to vector<32x128xf32>
    %558 = arith.mulf %557, %547 : vector<32x128xf32>
    %559 = arith.addf %520, %558 : vector<32x128xf32>
    %c2_242 = arith.constant 2 : index
    %c18_243 = arith.constant 18 : index
    %c0_244 = arith.constant 0 : index
    %560 = vector.load %arg3[%c2_242, %c18_243, %c0_244] : memref<4x27x128xf32, #tpu.memory_space<vmem>>, vector<1x1x128xf32>
    %561 = vector.shape_cast %560 : vector<1x1x128xf32> to vector<128xf32>
    %562 = vector.shape_cast %561 : vector<128xf32> to vector<1x128xf32>
    %563 = vector.broadcast %562 : vector<1x128xf32> to vector<32x128xf32>
    %564 = arith.mulf %563, %547 : vector<32x128xf32>
    %565 = arith.addf %526, %564 : vector<32x128xf32>
    %c3_245 = arith.constant 3 : index
    %c18_246 = arith.constant 18 : index
    %c0_247 = arith.constant 0 : index
    %566 = vector.load %arg3[%c3_245, %c18_246, %c0_247] : memref<4x27x128xf32, #tpu.memory_space<vmem>>, vector<1x1x128xf32>
    %567 = vector.shape_cast %566 : vector<1x1x128xf32> to vector<128xf32>
    %568 = vector.shape_cast %567 : vector<128xf32> to vector<1x128xf32>
    %569 = vector.broadcast %568 : vector<1x128xf32> to vector<32x128xf32>
    %570 = arith.mulf %569, %547 : vector<32x128xf32>
    %571 = arith.addf %532, %570 : vector<32x128xf32>
    %c0_248 = arith.constant 0 : index
    %c19 = arith.constant 19 : index
    %c0_249 = arith.constant 0 : index
    %572 = vector.load %arg3[%c0_248, %c19, %c0_249] : memref<4x27x128xf32, #tpu.memory_space<vmem>>, vector<1x1x128xf32>
    %573 = vector.shape_cast %572 : vector<1x1x128xf32> to vector<128xf32>
    %574 = vector.shape_cast %573 : vector<128xf32> to vector<1x128xf32>
    %575 = vector.broadcast %574 : vector<1x128xf32> to vector<32x128xf32>
    %576 = arith.mulf %575, %542 : vector<32x128xf32>
    %577 = arith.addf %553, %576 : vector<32x128xf32>
    %c1_250 = arith.constant 1 : index
    %c19_251 = arith.constant 19 : index
    %c0_252 = arith.constant 0 : index
    %578 = vector.load %arg3[%c1_250, %c19_251, %c0_252] : memref<4x27x128xf32, #tpu.memory_space<vmem>>, vector<1x1x128xf32>
    %579 = vector.shape_cast %578 : vector<1x1x128xf32> to vector<128xf32>
    %580 = vector.shape_cast %579 : vector<128xf32> to vector<1x128xf32>
    %581 = vector.broadcast %580 : vector<1x128xf32> to vector<32x128xf32>
    %582 = arith.mulf %581, %542 : vector<32x128xf32>
    %583 = arith.addf %559, %582 : vector<32x128xf32>
    %c2_253 = arith.constant 2 : index
    %c19_254 = arith.constant 19 : index
    %c0_255 = arith.constant 0 : index
    %584 = vector.load %arg3[%c2_253, %c19_254, %c0_255] : memref<4x27x128xf32, #tpu.memory_space<vmem>>, vector<1x1x128xf32>
    %585 = vector.shape_cast %584 : vector<1x1x128xf32> to vector<128xf32>
    %586 = vector.shape_cast %585 : vector<128xf32> to vector<1x128xf32>
    %587 = vector.broadcast %586 : vector<1x128xf32> to vector<32x128xf32>
    %588 = arith.mulf %587, %542 : vector<32x128xf32>
    %589 = arith.addf %565, %588 : vector<32x128xf32>
    %c3_256 = arith.constant 3 : index
    %c19_257 = arith.constant 19 : index
    %c0_258 = arith.constant 0 : index
    %590 = vector.load %arg3[%c3_256, %c19_257, %c0_258] : memref<4x27x128xf32, #tpu.memory_space<vmem>>, vector<1x1x128xf32>
    %591 = vector.shape_cast %590 : vector<1x1x128xf32> to vector<128xf32>
    %592 = vector.shape_cast %591 : vector<128xf32> to vector<1x128xf32>
    %593 = vector.broadcast %592 : vector<1x128xf32> to vector<32x128xf32>
    %594 = arith.mulf %593, %542 : vector<32x128xf32>
    %595 = arith.addf %571, %594 : vector<32x128xf32>
    %596 = vector.extract_strided_slice %542 {offsets = [0, 1], sizes = [32, 127], strides = [1, 1]} : vector<32x128xf32> to vector<32x127xf32>
    %597 = tpu.concatenate %596, %14 in 1 : vector<32x127xf32>, vector<32x1xf32> -> vector<32x128xf32>
    %cst_259 = arith.constant 0.000000e+00 : f32
    %598 = vector.broadcast %cst_259 : f32 to vector<32x128xf32>
    %599 = arith.select %12, %598, %597 : vector<32x128xi1>, vector<32x128xf32>
    %c0_260 = arith.constant 0 : index
    %c20 = arith.constant 20 : index
    %c0_261 = arith.constant 0 : index
    %600 = vector.load %arg3[%c0_260, %c20, %c0_261] : memref<4x27x128xf32, #tpu.memory_space<vmem>>, vector<1x1x128xf32>
    %601 = vector.shape_cast %600 : vector<1x1x128xf32> to vector<128xf32>
    %602 = vector.shape_cast %601 : vector<128xf32> to vector<1x128xf32>
    %603 = vector.broadcast %602 : vector<1x128xf32> to vector<32x128xf32>
    %604 = arith.mulf %603, %599 : vector<32x128xf32>
    %605 = arith.addf %577, %604 : vector<32x128xf32>
    %c1_262 = arith.constant 1 : index
    %c20_263 = arith.constant 20 : index
    %c0_264 = arith.constant 0 : index
    %606 = vector.load %arg3[%c1_262, %c20_263, %c0_264] : memref<4x27x128xf32, #tpu.memory_space<vmem>>, vector<1x1x128xf32>
    %607 = vector.shape_cast %606 : vector<1x1x128xf32> to vector<128xf32>
    %608 = vector.shape_cast %607 : vector<128xf32> to vector<1x128xf32>
    %609 = vector.broadcast %608 : vector<1x128xf32> to vector<32x128xf32>
    %610 = arith.mulf %609, %599 : vector<32x128xf32>
    %611 = arith.addf %583, %610 : vector<32x128xf32>
    %c2_265 = arith.constant 2 : index
    %c20_266 = arith.constant 20 : index
    %c0_267 = arith.constant 0 : index
    %612 = vector.load %arg3[%c2_265, %c20_266, %c0_267] : memref<4x27x128xf32, #tpu.memory_space<vmem>>, vector<1x1x128xf32>
    %613 = vector.shape_cast %612 : vector<1x1x128xf32> to vector<128xf32>
    %614 = vector.shape_cast %613 : vector<128xf32> to vector<1x128xf32>
    %615 = vector.broadcast %614 : vector<1x128xf32> to vector<32x128xf32>
    %616 = arith.mulf %615, %599 : vector<32x128xf32>
    %617 = arith.addf %589, %616 : vector<32x128xf32>
    %c3_268 = arith.constant 3 : index
    %c20_269 = arith.constant 20 : index
    %c0_270 = arith.constant 0 : index
    %618 = vector.load %arg3[%c3_268, %c20_269, %c0_270] : memref<4x27x128xf32, #tpu.memory_space<vmem>>, vector<1x1x128xf32>
    %619 = vector.shape_cast %618 : vector<1x1x128xf32> to vector<128xf32>
    %620 = vector.shape_cast %619 : vector<128xf32> to vector<1x128xf32>
    %621 = vector.broadcast %620 : vector<1x128xf32> to vector<32x128xf32>
    %622 = arith.mulf %621, %599 : vector<32x128xf32>
    %623 = arith.addf %595, %622 : vector<32x128xf32>
    %624 = vector.extract_strided_slice %534 {offsets = [0, 0], sizes = [32, 127], strides = [1, 1]} : vector<32x128xf32> to vector<32x127xf32>
    %625 = tpu.concatenate %14, %624 in 1 : vector<32x1xf32>, vector<32x127xf32> -> vector<32x128xf32>
    %cst_271 = arith.constant 0.000000e+00 : f32
    %626 = vector.broadcast %cst_271 : f32 to vector<32x128xf32>
    %627 = arith.select %7, %626, %625 : vector<32x128xi1>, vector<32x128xf32>
    %c0_272 = arith.constant 0 : index
    %c21 = arith.constant 21 : index
    %c0_273 = arith.constant 0 : index
    %628 = vector.load %arg3[%c0_272, %c21, %c0_273] : memref<4x27x128xf32, #tpu.memory_space<vmem>>, vector<1x1x128xf32>
    %629 = vector.shape_cast %628 : vector<1x1x128xf32> to vector<128xf32>
    %630 = vector.shape_cast %629 : vector<128xf32> to vector<1x128xf32>
    %631 = vector.broadcast %630 : vector<1x128xf32> to vector<32x128xf32>
    %632 = arith.mulf %631, %627 : vector<32x128xf32>
    %633 = arith.addf %605, %632 : vector<32x128xf32>
    %c1_274 = arith.constant 1 : index
    %c21_275 = arith.constant 21 : index
    %c0_276 = arith.constant 0 : index
    %634 = vector.load %arg3[%c1_274, %c21_275, %c0_276] : memref<4x27x128xf32, #tpu.memory_space<vmem>>, vector<1x1x128xf32>
    %635 = vector.shape_cast %634 : vector<1x1x128xf32> to vector<128xf32>
    %636 = vector.shape_cast %635 : vector<128xf32> to vector<1x128xf32>
    %637 = vector.broadcast %636 : vector<1x128xf32> to vector<32x128xf32>
    %638 = arith.mulf %637, %627 : vector<32x128xf32>
    %639 = arith.addf %611, %638 : vector<32x128xf32>
    %c2_277 = arith.constant 2 : index
    %c21_278 = arith.constant 21 : index
    %c0_279 = arith.constant 0 : index
    %640 = vector.load %arg3[%c2_277, %c21_278, %c0_279] : memref<4x27x128xf32, #tpu.memory_space<vmem>>, vector<1x1x128xf32>
    %641 = vector.shape_cast %640 : vector<1x1x128xf32> to vector<128xf32>
    %642 = vector.shape_cast %641 : vector<128xf32> to vector<1x128xf32>
    %643 = vector.broadcast %642 : vector<1x128xf32> to vector<32x128xf32>
    %644 = arith.mulf %643, %627 : vector<32x128xf32>
    %645 = arith.addf %617, %644 : vector<32x128xf32>
    %c3_280 = arith.constant 3 : index
    %c21_281 = arith.constant 21 : index
    %c0_282 = arith.constant 0 : index
    %646 = vector.load %arg3[%c3_280, %c21_281, %c0_282] : memref<4x27x128xf32, #tpu.memory_space<vmem>>, vector<1x1x128xf32>
    %647 = vector.shape_cast %646 : vector<1x1x128xf32> to vector<128xf32>
    %648 = vector.shape_cast %647 : vector<128xf32> to vector<1x128xf32>
    %649 = vector.broadcast %648 : vector<1x128xf32> to vector<32x128xf32>
    %650 = arith.mulf %649, %627 : vector<32x128xf32>
    %651 = arith.addf %623, %650 : vector<32x128xf32>
    %c0_283 = arith.constant 0 : index
    %c22 = arith.constant 22 : index
    %c0_284 = arith.constant 0 : index
    %652 = vector.load %arg3[%c0_283, %c22, %c0_284] : memref<4x27x128xf32, #tpu.memory_space<vmem>>, vector<1x1x128xf32>
    %653 = vector.shape_cast %652 : vector<1x1x128xf32> to vector<128xf32>
    %654 = vector.shape_cast %653 : vector<128xf32> to vector<1x128xf32>
    %655 = vector.broadcast %654 : vector<1x128xf32> to vector<32x128xf32>
    %656 = arith.mulf %655, %534 : vector<32x128xf32>
    %657 = arith.addf %633, %656 : vector<32x128xf32>
    %c1_285 = arith.constant 1 : index
    %c22_286 = arith.constant 22 : index
    %c0_287 = arith.constant 0 : index
    %658 = vector.load %arg3[%c1_285, %c22_286, %c0_287] : memref<4x27x128xf32, #tpu.memory_space<vmem>>, vector<1x1x128xf32>
    %659 = vector.shape_cast %658 : vector<1x1x128xf32> to vector<128xf32>
    %660 = vector.shape_cast %659 : vector<128xf32> to vector<1x128xf32>
    %661 = vector.broadcast %660 : vector<1x128xf32> to vector<32x128xf32>
    %662 = arith.mulf %661, %534 : vector<32x128xf32>
    %663 = arith.addf %639, %662 : vector<32x128xf32>
    %c2_288 = arith.constant 2 : index
    %c22_289 = arith.constant 22 : index
    %c0_290 = arith.constant 0 : index
    %664 = vector.load %arg3[%c2_288, %c22_289, %c0_290] : memref<4x27x128xf32, #tpu.memory_space<vmem>>, vector<1x1x128xf32>
    %665 = vector.shape_cast %664 : vector<1x1x128xf32> to vector<128xf32>
    %666 = vector.shape_cast %665 : vector<128xf32> to vector<1x128xf32>
    %667 = vector.broadcast %666 : vector<1x128xf32> to vector<32x128xf32>
    %668 = arith.mulf %667, %534 : vector<32x128xf32>
    %669 = arith.addf %645, %668 : vector<32x128xf32>
    %c3_291 = arith.constant 3 : index
    %c22_292 = arith.constant 22 : index
    %c0_293 = arith.constant 0 : index
    %670 = vector.load %arg3[%c3_291, %c22_292, %c0_293] : memref<4x27x128xf32, #tpu.memory_space<vmem>>, vector<1x1x128xf32>
    %671 = vector.shape_cast %670 : vector<1x1x128xf32> to vector<128xf32>
    %672 = vector.shape_cast %671 : vector<128xf32> to vector<1x128xf32>
    %673 = vector.broadcast %672 : vector<1x128xf32> to vector<32x128xf32>
    %674 = arith.mulf %673, %534 : vector<32x128xf32>
    %675 = arith.addf %651, %674 : vector<32x128xf32>
    %676 = vector.extract_strided_slice %534 {offsets = [0, 1], sizes = [32, 127], strides = [1, 1]} : vector<32x128xf32> to vector<32x127xf32>
    %677 = tpu.concatenate %676, %14 in 1 : vector<32x127xf32>, vector<32x1xf32> -> vector<32x128xf32>
    %cst_294 = arith.constant 0.000000e+00 : f32
    %678 = vector.broadcast %cst_294 : f32 to vector<32x128xf32>
    %679 = arith.select %12, %678, %677 : vector<32x128xi1>, vector<32x128xf32>
    %c0_295 = arith.constant 0 : index
    %c23 = arith.constant 23 : index
    %c0_296 = arith.constant 0 : index
    %680 = vector.load %arg3[%c0_295, %c23, %c0_296] : memref<4x27x128xf32, #tpu.memory_space<vmem>>, vector<1x1x128xf32>
    %681 = vector.shape_cast %680 : vector<1x1x128xf32> to vector<128xf32>
    %682 = vector.shape_cast %681 : vector<128xf32> to vector<1x128xf32>
    %683 = vector.broadcast %682 : vector<1x128xf32> to vector<32x128xf32>
    %684 = arith.mulf %683, %679 : vector<32x128xf32>
    %685 = arith.addf %657, %684 : vector<32x128xf32>
    %c1_297 = arith.constant 1 : index
    %c23_298 = arith.constant 23 : index
    %c0_299 = arith.constant 0 : index
    %686 = vector.load %arg3[%c1_297, %c23_298, %c0_299] : memref<4x27x128xf32, #tpu.memory_space<vmem>>, vector<1x1x128xf32>
    %687 = vector.shape_cast %686 : vector<1x1x128xf32> to vector<128xf32>
    %688 = vector.shape_cast %687 : vector<128xf32> to vector<1x128xf32>
    %689 = vector.broadcast %688 : vector<1x128xf32> to vector<32x128xf32>
    %690 = arith.mulf %689, %679 : vector<32x128xf32>
    %691 = arith.addf %663, %690 : vector<32x128xf32>
    %c2_300 = arith.constant 2 : index
    %c23_301 = arith.constant 23 : index
    %c0_302 = arith.constant 0 : index
    %692 = vector.load %arg3[%c2_300, %c23_301, %c0_302] : memref<4x27x128xf32, #tpu.memory_space<vmem>>, vector<1x1x128xf32>
    %693 = vector.shape_cast %692 : vector<1x1x128xf32> to vector<128xf32>
    %694 = vector.shape_cast %693 : vector<128xf32> to vector<1x128xf32>
    %695 = vector.broadcast %694 : vector<1x128xf32> to vector<32x128xf32>
    %696 = arith.mulf %695, %679 : vector<32x128xf32>
    %697 = arith.addf %669, %696 : vector<32x128xf32>
    %c3_303 = arith.constant 3 : index
    %c23_304 = arith.constant 23 : index
    %c0_305 = arith.constant 0 : index
    %698 = vector.load %arg3[%c3_303, %c23_304, %c0_305] : memref<4x27x128xf32, #tpu.memory_space<vmem>>, vector<1x1x128xf32>
    %699 = vector.shape_cast %698 : vector<1x1x128xf32> to vector<128xf32>
    %700 = vector.shape_cast %699 : vector<128xf32> to vector<1x128xf32>
    %701 = vector.broadcast %700 : vector<1x128xf32> to vector<32x128xf32>
    %702 = arith.mulf %701, %679 : vector<32x128xf32>
    %703 = arith.addf %675, %702 : vector<32x128xf32>
    %704 = vector.extract_strided_slice %543 {offsets = [0, 0], sizes = [32, 127], strides = [1, 1]} : vector<32x128xf32> to vector<32x127xf32>
    %705 = tpu.concatenate %14, %704 in 1 : vector<32x1xf32>, vector<32x127xf32> -> vector<32x128xf32>
    %cst_306 = arith.constant 0.000000e+00 : f32
    %706 = vector.broadcast %cst_306 : f32 to vector<32x128xf32>
    %707 = arith.select %7, %706, %705 : vector<32x128xi1>, vector<32x128xf32>
    %c0_307 = arith.constant 0 : index
    %c24 = arith.constant 24 : index
    %c0_308 = arith.constant 0 : index
    %708 = vector.load %arg3[%c0_307, %c24, %c0_308] : memref<4x27x128xf32, #tpu.memory_space<vmem>>, vector<1x1x128xf32>
    %709 = vector.shape_cast %708 : vector<1x1x128xf32> to vector<128xf32>
    %710 = vector.shape_cast %709 : vector<128xf32> to vector<1x128xf32>
    %711 = vector.broadcast %710 : vector<1x128xf32> to vector<32x128xf32>
    %712 = arith.mulf %711, %707 : vector<32x128xf32>
    %713 = arith.addf %685, %712 : vector<32x128xf32>
    %c1_309 = arith.constant 1 : index
    %c24_310 = arith.constant 24 : index
    %c0_311 = arith.constant 0 : index
    %714 = vector.load %arg3[%c1_309, %c24_310, %c0_311] : memref<4x27x128xf32, #tpu.memory_space<vmem>>, vector<1x1x128xf32>
    %715 = vector.shape_cast %714 : vector<1x1x128xf32> to vector<128xf32>
    %716 = vector.shape_cast %715 : vector<128xf32> to vector<1x128xf32>
    %717 = vector.broadcast %716 : vector<1x128xf32> to vector<32x128xf32>
    %718 = arith.mulf %717, %707 : vector<32x128xf32>
    %719 = arith.addf %691, %718 : vector<32x128xf32>
    %c2_312 = arith.constant 2 : index
    %c24_313 = arith.constant 24 : index
    %c0_314 = arith.constant 0 : index
    %720 = vector.load %arg3[%c2_312, %c24_313, %c0_314] : memref<4x27x128xf32, #tpu.memory_space<vmem>>, vector<1x1x128xf32>
    %721 = vector.shape_cast %720 : vector<1x1x128xf32> to vector<128xf32>
    %722 = vector.shape_cast %721 : vector<128xf32> to vector<1x128xf32>
    %723 = vector.broadcast %722 : vector<1x128xf32> to vector<32x128xf32>
    %724 = arith.mulf %723, %707 : vector<32x128xf32>
    %725 = arith.addf %697, %724 : vector<32x128xf32>
    %c3_315 = arith.constant 3 : index
    %c24_316 = arith.constant 24 : index
    %c0_317 = arith.constant 0 : index
    %726 = vector.load %arg3[%c3_315, %c24_316, %c0_317] : memref<4x27x128xf32, #tpu.memory_space<vmem>>, vector<1x1x128xf32>
    %727 = vector.shape_cast %726 : vector<1x1x128xf32> to vector<128xf32>
    %728 = vector.shape_cast %727 : vector<128xf32> to vector<1x128xf32>
    %729 = vector.broadcast %728 : vector<1x128xf32> to vector<32x128xf32>
    %730 = arith.mulf %729, %707 : vector<32x128xf32>
    %731 = arith.addf %703, %730 : vector<32x128xf32>
    %c0_318 = arith.constant 0 : index
    %c25 = arith.constant 25 : index
    %c0_319 = arith.constant 0 : index
    %732 = vector.load %arg3[%c0_318, %c25, %c0_319] : memref<4x27x128xf32, #tpu.memory_space<vmem>>, vector<1x1x128xf32>
    %733 = vector.shape_cast %732 : vector<1x1x128xf32> to vector<128xf32>
    %734 = vector.shape_cast %733 : vector<128xf32> to vector<1x128xf32>
    %735 = vector.broadcast %734 : vector<1x128xf32> to vector<32x128xf32>
    %736 = arith.mulf %735, %543 : vector<32x128xf32>
    %737 = arith.addf %713, %736 : vector<32x128xf32>
    %c1_320 = arith.constant 1 : index
    %c25_321 = arith.constant 25 : index
    %c0_322 = arith.constant 0 : index
    %738 = vector.load %arg3[%c1_320, %c25_321, %c0_322] : memref<4x27x128xf32, #tpu.memory_space<vmem>>, vector<1x1x128xf32>
    %739 = vector.shape_cast %738 : vector<1x1x128xf32> to vector<128xf32>
    %740 = vector.shape_cast %739 : vector<128xf32> to vector<1x128xf32>
    %741 = vector.broadcast %740 : vector<1x128xf32> to vector<32x128xf32>
    %742 = arith.mulf %741, %543 : vector<32x128xf32>
    %743 = arith.addf %719, %742 : vector<32x128xf32>
    %c2_323 = arith.constant 2 : index
    %c25_324 = arith.constant 25 : index
    %c0_325 = arith.constant 0 : index
    %744 = vector.load %arg3[%c2_323, %c25_324, %c0_325] : memref<4x27x128xf32, #tpu.memory_space<vmem>>, vector<1x1x128xf32>
    %745 = vector.shape_cast %744 : vector<1x1x128xf32> to vector<128xf32>
    %746 = vector.shape_cast %745 : vector<128xf32> to vector<1x128xf32>
    %747 = vector.broadcast %746 : vector<1x128xf32> to vector<32x128xf32>
    %748 = arith.mulf %747, %543 : vector<32x128xf32>
    %749 = arith.addf %725, %748 : vector<32x128xf32>
    %c3_326 = arith.constant 3 : index
    %c25_327 = arith.constant 25 : index
    %c0_328 = arith.constant 0 : index
    %750 = vector.load %arg3[%c3_326, %c25_327, %c0_328] : memref<4x27x128xf32, #tpu.memory_space<vmem>>, vector<1x1x128xf32>
    %751 = vector.shape_cast %750 : vector<1x1x128xf32> to vector<128xf32>
    %752 = vector.shape_cast %751 : vector<128xf32> to vector<1x128xf32>
    %753 = vector.broadcast %752 : vector<1x128xf32> to vector<32x128xf32>
    %754 = arith.mulf %753, %543 : vector<32x128xf32>
    %755 = arith.addf %731, %754 : vector<32x128xf32>
    %756 = vector.extract_strided_slice %543 {offsets = [0, 1], sizes = [32, 127], strides = [1, 1]} : vector<32x128xf32> to vector<32x127xf32>
    %757 = tpu.concatenate %756, %14 in 1 : vector<32x127xf32>, vector<32x1xf32> -> vector<32x128xf32>
    %cst_329 = arith.constant 0.000000e+00 : f32
    %758 = vector.broadcast %cst_329 : f32 to vector<32x128xf32>
    %759 = arith.select %12, %758, %757 : vector<32x128xi1>, vector<32x128xf32>
    %c0_330 = arith.constant 0 : index
    %c26 = arith.constant 26 : index
    %c0_331 = arith.constant 0 : index
    %760 = vector.load %arg3[%c0_330, %c26, %c0_331] : memref<4x27x128xf32, #tpu.memory_space<vmem>>, vector<1x1x128xf32>
    %761 = vector.shape_cast %760 : vector<1x1x128xf32> to vector<128xf32>
    %762 = vector.shape_cast %761 : vector<128xf32> to vector<1x128xf32>
    %763 = vector.broadcast %762 : vector<1x128xf32> to vector<32x128xf32>
    %764 = arith.mulf %763, %759 : vector<32x128xf32>
    %765 = arith.addf %737, %764 : vector<32x128xf32>
    %c1_332 = arith.constant 1 : index
    %c26_333 = arith.constant 26 : index
    %c0_334 = arith.constant 0 : index
    %766 = vector.load %arg3[%c1_332, %c26_333, %c0_334] : memref<4x27x128xf32, #tpu.memory_space<vmem>>, vector<1x1x128xf32>
    %767 = vector.shape_cast %766 : vector<1x1x128xf32> to vector<128xf32>
    %768 = vector.shape_cast %767 : vector<128xf32> to vector<1x128xf32>
    %769 = vector.broadcast %768 : vector<1x128xf32> to vector<32x128xf32>
    %770 = arith.mulf %769, %759 : vector<32x128xf32>
    %771 = arith.addf %743, %770 : vector<32x128xf32>
    %c2_335 = arith.constant 2 : index
    %c26_336 = arith.constant 26 : index
    %c0_337 = arith.constant 0 : index
    %772 = vector.load %arg3[%c2_335, %c26_336, %c0_337] : memref<4x27x128xf32, #tpu.memory_space<vmem>>, vector<1x1x128xf32>
    %773 = vector.shape_cast %772 : vector<1x1x128xf32> to vector<128xf32>
    %774 = vector.shape_cast %773 : vector<128xf32> to vector<1x128xf32>
    %775 = vector.broadcast %774 : vector<1x128xf32> to vector<32x128xf32>
    %776 = arith.mulf %775, %759 : vector<32x128xf32>
    %777 = arith.addf %749, %776 : vector<32x128xf32>
    %c3_338 = arith.constant 3 : index
    %c26_339 = arith.constant 26 : index
    %c0_340 = arith.constant 0 : index
    %778 = vector.load %arg3[%c3_338, %c26_339, %c0_340] : memref<4x27x128xf32, #tpu.memory_space<vmem>>, vector<1x1x128xf32>
    %779 = vector.shape_cast %778 : vector<1x1x128xf32> to vector<128xf32>
    %780 = vector.shape_cast %779 : vector<128xf32> to vector<1x128xf32>
    %781 = vector.broadcast %780 : vector<1x128xf32> to vector<32x128xf32>
    %782 = arith.mulf %781, %759 : vector<32x128xf32>
    %783 = arith.addf %755, %782 : vector<32x128xf32>
    %c0_341 = arith.constant 0 : index
    %c0_342 = arith.constant 0 : index
    %c0_343 = arith.constant 0 : index
    %c0_344 = arith.constant 0 : index
    %784 = vector.load %arg5[%c0_341, %c0_342, %c0_343, %c0_344] : memref<1x4x32x128xf32, #tpu.memory_space<vmem>>, vector<1x1x32x128xf32>
    %785 = vector.shape_cast %784 : vector<1x1x32x128xf32> to vector<32x128xf32>
    %786 = vector.shape_cast %765 : vector<32x128xf32> to vector<1x1x32x128xf32>
    tpu.vector_store %arg5[%c0_341, %c0_342, %c0_343, %c0_344], %786 {strides = array<i32>} : memref<1x4x32x128xf32, #tpu.memory_space<vmem>>, vector<1x1x32x128xf32>,
    %c0_345 = arith.constant 0 : index
    %c1_346 = arith.constant 1 : index
    %c0_347 = arith.constant 0 : index
    %c0_348 = arith.constant 0 : index
    %787 = vector.load %arg5[%c0_345, %c1_346, %c0_347, %c0_348] : memref<1x4x32x128xf32, #tpu.memory_space<vmem>>, vector<1x1x32x128xf32>
    %788 = vector.shape_cast %787 : vector<1x1x32x128xf32> to vector<32x128xf32>
    %789 = vector.shape_cast %771 : vector<32x128xf32> to vector<1x1x32x128xf32>
    tpu.vector_store %arg5[%c0_345, %c1_346, %c0_347, %c0_348], %789 {strides = array<i32>} : memref<1x4x32x128xf32, #tpu.memory_space<vmem>>, vector<1x1x32x128xf32>,
    %c0_349 = arith.constant 0 : index
    %c2_350 = arith.constant 2 : index
    %c0_351 = arith.constant 0 : index
    %c0_352 = arith.constant 0 : index
    %790 = vector.load %arg5[%c0_349, %c2_350, %c0_351, %c0_352] : memref<1x4x32x128xf32, #tpu.memory_space<vmem>>, vector<1x1x32x128xf32>
    %791 = vector.shape_cast %790 : vector<1x1x32x128xf32> to vector<32x128xf32>
    %792 = vector.shape_cast %777 : vector<32x128xf32> to vector<1x1x32x128xf32>
    tpu.vector_store %arg5[%c0_349, %c2_350, %c0_351, %c0_352], %792 {strides = array<i32>} : memref<1x4x32x128xf32, #tpu.memory_space<vmem>>, vector<1x1x32x128xf32>,
    %c0_353 = arith.constant 0 : index
    %c3_354 = arith.constant 3 : index
    %c0_355 = arith.constant 0 : index
    %c0_356 = arith.constant 0 : index
    %793 = vector.load %arg5[%c0_353, %c3_354, %c0_355, %c0_356] : memref<1x4x32x128xf32, #tpu.memory_space<vmem>>, vector<1x1x32x128xf32>
    %794 = vector.shape_cast %793 : vector<1x1x32x128xf32> to vector<32x128xf32>
    %795 = vector.shape_cast %783 : vector<32x128xf32> to vector<1x1x32x128xf32>
    tpu.vector_store %arg5[%c0_353, %c3_354, %c0_355, %c0_356], %795 {strides = array<i32>} : memref<1x4x32x128xf32, #tpu.memory_space<vmem>>, vector<1x1x32x128xf32>,
    return
  }
  func.func @transform_0(%arg0: i32, %arg1: i32) -> (i32, i32, i32, i32) {
    %c0_i32 = arith.constant 0 : i32
    %c0_i32_0 = arith.constant 0 : i32
    %c0_i32_1 = arith.constant 0 : i32
    %c0_i32_2 = arith.constant 0 : i32
    return %arg0, %c0_i32, %c0_i32_0, %c0_i32_1 : i32, i32, i32, i32
  }
  func.func @transform_1(%arg0: i32, %arg1: i32) -> (i32, i32, i32) {
    %c0_i32 = arith.constant 0 : i32
    %c0_i32_0 = arith.constant 0 : i32
    %c0_i32_1 = arith.constant 0 : i32
    return %arg1, %c0_i32, %c0_i32_0 : i32, i32, i32
  }
  func.func @transform_2(%arg0: i32, %arg1: i32) -> (i32, i32, i32) {
    %c0_i32 = arith.constant 0 : i32
    %c0_i32_0 = arith.constant 0 : i32
    %c0_i32_1 = arith.constant 0 : i32
    return %arg1, %c0_i32, %c0_i32_0 : i32, i32, i32
  }
  func.func @transform_3(%arg0: i32, %arg1: i32) -> (i32, i32, i32, i32) {
    %c0_i32 = arith.constant 0 : i32
    %c0_i32_0 = arith.constant 0 : i32
    %c0_i32_1 = arith.constant 0 : i32
    return %arg0, %arg1, %c0_i32, %c0_i32_0 : i32, i32, i32, i32
  }
}

</mosaic_0001>

<llo_original>
// kernel: convt_leaky_where.1
$region0: #{convt_leaky_where.1}
  #allocation0 [shape = 'u32[]', space=smem, size = 0x4, offset = 0x4, fixed_abs, tag = 'smem constant byte address 0x4 - core index']
  #allocation1 [shape = 'u32[144,128]{1,0:T(1,128)}', space=vmem, size = 0x12000, scoped, tag = 'internal scratch']
  %s0 = inlined_call_operand.vmem [shape: f32[2,3,32,128], index: 0, kind: input, shape index: {}]
  %s1 = inlined_call_operand.vmem [shape: f32[8,27,128], index: 1, kind: input, shape index: {}]
  %s2 = inlined_call_operand.vmem [shape: f32[2,4,128], index: 2, kind: input, shape index: {}]
  %s3 = inlined_call_operand.vmem [shape: f32[2,8,32,128], index: 3, kind: output, shape index: {}]
  %s4 = sld [smem:[#allocation0]]
  $region45: #{convt_leaky_where.1} parent=0
    _
  %s6 = ssub.s32 1, %s4
  %s7 = scalar_select 0, %s6, %s4
  loop: start=0, step=1, limit=6
  $region2: #{convt_leaky_where.1} parent=0 // loop_pre_header
    _
  $region3: #{convt_leaky_where.1} parent=0 // loop_header
    %s9 = sphi 0, %s13
    %p10 = scmp.ge.s32.totalorder %s9, 6
    %s16 = sphi 0, %s28
    %s17 = sphi 0, %s24
    %s18 = sphi 0, %s16
    %s19 = sphi 0, %s17
    %s20 = sphi 0, %s18
    %s21 = sphi 0, %s19
    %s31 = sphi 0, %s33
    %s34 = sphi 0, %s31
    %s35 = sphi 0, %s34
    %s51 = sphi 0, %s35
    %s57 = sphi 0, %s59
    %s60 = sphi 0, %s57
    %s61 = sphi 0, %s60
    %s77 = sphi 0, %s61
    %s83 = sphi 0, %s85
    %s86 = sphi 0, %s83
    %s87 = sphi 0, %s86
    %s103 = sphi 0, %s87
    %s111 = sphi 0, %s113
    %s114 = sphi 0, %s111
    %s115 = sphi 0, %s114
    %s131 = sphi 0, %s115
  $region4: #{convt_leaky_where.1} parent=0 // loop_header_branch
    %12 = sbr.rel (%p10) target = $region8
  $region5: #{convt_leaky_where.1} parent=0 // loop_body
    %s14 = ssub.s32 %s9, 1
    %s15 = ssub.s32 %s9, 2
    %s22 = sadd.s32 1, %s17
    %p23 = scmp.ge.s32.totalorder %s22, 2
    %s24 = scalar_select %p23, 0, %s22
    %s25 = sadd.s32 1, %s16
    %s26 = scalar_select %p23, %s25, %s16
    %p27 = scmp.ge.s32.totalorder %s26, 2
    %s28 = scalar_select %p27, 0, %s26
    %s29 = ssub.s32 %s16, %s28
    %p30 = scmp.eq.s32.totalorder %s29, 0
    %s32 = sadd.s32 %s31, 1
    %s33 = scalar_select %p30, %s31, %s32
    %p36 = pneg %p30
    %p37 = scmp.eq.s32.totalorder %s9, 3
    %p38 = por %p36, %p37
    %p39 = scmp.ne.s32.totalorder %s31, %s34
    %p40 = scmp.eq.s32.totalorder %s9, 0
    %p41 = por %p39, %p40
    %p42 = scmp.ne.s32.totalorder %s31, %s34
    %p43 = scmp.eq.s32.totalorder %s14, 3
    %p44 = por %p42, %p43
    %p45 = scmp.ne.s32.totalorder %s34, %s35
    %p46 = scmp.eq.s32.totalorder %s14, 0
    %p47 = por %p45, %p46
    %p48 = scmp.ne.s32.totalorder %s34, %s35
    %p49 = scmp.eq.s32.totalorder %s15, 3
    %p50 = por %p48, %p49
    %p52 = scmp.ne.s32.totalorder %s35, %s51
    %p53 = scmp.eq.s32.totalorder %s15, 0
    %p54 = por %p52, %p53
    %s55 = ssub.s32 %s17, %s24
    %p56 = scmp.eq.s32.totalorder %s55, 0
    %s58 = sadd.s32 %s57, 1
    %s59 = scalar_select %p56, %s57, %s58
    %p62 = pneg %p56
    %p63 = scmp.eq.s32.totalorder %s9, 3
    %p64 = por %p62, %p63
    %p65 = scmp.ne.s32.totalorder %s57, %s60
    %p66 = scmp.eq.s32.totalorder %s9, 0
    %p67 = por %p65, %p66
    %p68 = scmp.ne.s32.totalorder %s57, %s60
    %p69 = scmp.eq.s32.totalorder %s14, 3
    %p70 = por %p68, %p69
    %p71 = scmp.ne.s32.totalorder %s60, %s61
    %p72 = scmp.eq.s32.totalorder %s14, 0
    %p73 = por %p71, %p72
    %p74 = scmp.ne.s32.totalorder %s60, %s61
    %p75 = scmp.eq.s32.totalorder %s15, 3
    %p76 = por %p74, %p75
    %p78 = scmp.ne.s32.totalorder %s61, %s77
    %p79 = scmp.eq.s32.totalorder %s15, 0
    %p80 = por %p78, %p79
    %s81 = ssub.s32 %s17, %s24
    %p82 = scmp.eq.s32.totalorder %s81, 0
    %s84 = sadd.s32 %s83, 1
    %s85 = scalar_select %p82, %s83, %s84
    %p88 = pneg %p82
    %p89 = scmp.eq.s32.totalorder %s9, 3
    %p90 = por %p88, %p89
    %p91 = scmp.ne.s32.totalorder %s83, %s86
    %p92 = scmp.eq.s32.totalorder %s9, 0
    %p93 = por %p91, %p92
    %p94 = scmp.ne.s32.totalorder %s83, %s86
    %p95 = scmp.eq.s32.totalorder %s14, 3
    %p96 = por %p94, %p95
    %p97 = scmp.ne.s32.totalorder %s86, %s87
    %p98 = scmp.eq.s32.totalorder %s14, 0
    %p99 = por %p97, %p98
    %p100 = scmp.ne.s32.totalorder %s86, %s87
    %p101 = scmp.eq.s32.totalorder %s15, 3
    %p102 = por %p100, %p101
    %p104 = scmp.ne.s32.totalorder %s87, %s103
    %p105 = scmp.eq.s32.totalorder %s15, 0
    %p106 = por %p104, %p105
    %s107 = ssub.s32 %s16, %s28
    %s108 = ssub.s32 %s17, %s24
    %s109 = sor.u32 %s107, %s108
    %p110 = scmp.eq.s32.totalorder %s109, 0
    %s112 = sadd.s32 %s111, 1
    %s113 = scalar_select %p110, %s111, %s112
    %p116 = pneg %p110
    %p117 = scmp.eq.s32.totalorder %s9, 3
    %p118 = por %p116, %p117
    %p119 = scmp.ne.s32.totalorder %s111, %s114
    %p120 = scmp.eq.s32.totalorder %s9, 0
    %p121 = por %p119, %p120
    %p122 = scmp.ne.s32.totalorder %s111, %s114
    %p123 = scmp.eq.s32.totalorder %s14, 3
    %p124 = por %p122, %p123
    %p125 = scmp.ne.s32.totalorder %s114, %s115
    %p126 = scmp.eq.s32.totalorder %s14, 0
    %p127 = por %p125, %p126
    %p128 = scmp.ne.s32.totalorder %s114, %s115
    %p129 = scmp.eq.s32.totalorder %s15, 3
    %p130 = por %p128, %p129
    %p132 = scmp.ne.s32.totalorder %s115, %s131
    %p133 = scmp.eq.s32.totalorder %s15, 0
    %p134 = por %p132, %p133
    %p135 = scmp.le.s32.totalorder 1, %s9
    %p136 = scmp.lt.s32.totalorder %s9, 5
    %p137 = pnand %p135, %p136
    %p138 = pneg %p137
    // Predicated region
    $region9: #{convt_leaky_where.1} parent=5 // pred_check
      _
    $region10: #{convt_leaky_where.1} parent=5 // pred_check_branch
      %140 = sbr.rel (%p137) target = $region12
    $region11: #{convt_leaky_where.1} parent=5 // pred_region
      %s141 = ssub.s32 %s9, 1
    $region12: #{convt_leaky_where.1} parent=5 // pred_fallthru
      _
    %p142 = scmp.lt.s32.totalorder %s9, 4
    // Predicated region
    $region13: #{convt_leaky_where.1} parent=5 // pred_check
      %p143 = pneg %p142
    $region14: #{convt_leaky_where.1} parent=5 // pred_check_branch
      %145 = sbr.rel (%p143) target = $region16
    $region15: #{convt_leaky_where.1} parent=5 // pred_region
      // Predicated region
      $region17: #{convt_leaky_where.1} parent=15 // pred_check
        %p146 = pneg %p41
      $region18: #{convt_leaky_where.1} parent=15 // pred_check_branch
        %148 = sbr.rel (%p146) target = $region20
      $region19: #{convt_leaky_where.1} parent=15 // pred_region
        %p149 = scmp.lt.s32.totalorder %s16, 1
        %s150 = scalar_select %p149, %s16, 1
        %s151 = smul.addr %s150, 12
        %s152 = smul.addr %s151, 8
        %s153 = scalar_lea.vmem %s0, %s152
      $region20: #{convt_leaky_where.1} parent=15 // pred_fallthru
        _
      // Predicated region
      $region21: #{convt_leaky_where.1} parent=15 // pred_check
        %p154 = pneg %p67
      $region22: #{convt_leaky_where.1} parent=15 // pred_check_branch
        %156 = sbr.rel (%p154) target = $region24
      $region23: #{convt_leaky_where.1} parent=15 // pred_region
        %s157 = smul.u32 4, %s17
        %p158 = scmp.lt.s32.totalorder %s157, 7
        %s159 = scalar_select %p158, %s157, 7
        %s160 = smul.addr %s159, 4
        %s161 = smul.addr %s160, 8
        %s162 = scalar_lea.vmem %s1, %s161
        %s163 = smul.u32 4, %s17
      $region24: #{convt_leaky_where.1} parent=15 // pred_fallthru
        _
      // Predicated region
      $region25: #{convt_leaky_where.1} parent=15 // pred_check
        %p164 = pneg %p93
      $region26: #{convt_leaky_where.1} parent=15 // pred_check_branch
        %166 = sbr.rel (%p164) target = $region28
      $region27: #{convt_leaky_where.1} parent=15 // pred_region
        %p167 = scmp.lt.s32.totalorder %s17, 1
        %s168 = scalar_select %p167, %s17, 1
        %s169 = smul.addr %s168, 4
        %s170 = scalar_lea.vmem %s2, %s169
      $region28: #{convt_leaky_where.1} parent=15 // pred_fallthru
        _
    $region16: #{convt_leaky_where.1} parent=5 // pred_fallthru
      _
    %p171 = scmp.le.s32.totalorder 1, %s9
    %p172 = scmp.lt.s32.totalorder %s9, 5
    %p173 = pnand %p171, %p172
    %p174 = pneg %p173
    // Predicated region
    $region29: #{convt_leaky_where.1} parent=5 // pred_check
      _
    $region30: #{convt_leaky_where.1} parent=5 // pred_check_branch
      %176 = sbr.rel (%p173) target = $region32
    $region31: #{convt_leaky_where.1} parent=5 // pred_region
      %s177 = ssub.s32 %s9, 1
      %p178 = scmp.lt.s32.totalorder %s18, 1
      %s179 = scalar_select %p178, %s18, 1
      %s180 = smul.addr %s179, 12
      %s181 = smul.addr %s180, 8
      %s182 = scalar_lea.vmem %s0, %s181
      %p183 = pneg %p47
      %p184 = pneg %p44
      %s185 = smul.u32 4, %s19
      %p186 = scmp.lt.s32.totalorder %s185, 7
      %s187 = scalar_select %p186, %s185, 7
      %s188 = smul.addr %s187, 4
      %s189 = smul.addr %s188, 8
      %s190 = scalar_lea.vmem %s1, %s189
      %p191 = pneg %p73
      %p192 = pneg %p70
      %p193 = scmp.lt.s32.totalorder %s19, 1
      %s194 = scalar_select %p193, %s19, 1
      %s195 = smul.addr %s194, 4
      %s196 = scalar_lea.vmem %s2, %s195
      %p197 = pneg %p99
      %p198 = pneg %p96
      %p199 = pneg %p127
      %p200 = pneg %p124
      %s201 = smul.u32 4, %s19
      %p202 = scmp.lt.s32.totalorder %s18, 1
      %s203 = scalar_select %p202, %s18, 1
      %p204 = scmp.lt.s32.totalorder %s201, 7
      %s205 = scalar_select %p204, %s201, 7
      %s206 = smul.addr %s205, 4
      %s207 = smul.addr %s203, 32
      %s208 = sadd.s32 %s206, %s207
      %s209 = smul.addr %s208, 8
      %s210 = scalar_lea.vmem %s3, %s209
      %p211 = scmp.lt.s32.totalorder %s18, 1
      %s212 = scalar_select %p211, %s18, 1
      %s213 = smul.addr %s212, 12
      %s214 = smul.addr %s213, 8
      %s215 = scalar_lea.vmem %s0, %s214
      %s216 = smul.u32 4, %s19
      %p217 = scmp.lt.s32.totalorder %s216, 7
      %s218 = scalar_select %p217, %s216, 7
      %s219 = smul.addr %s218, 4
      %s220 = smul.addr %s219, 8
      %s221 = scalar_lea.vmem %s1, %s220
      %s222 = smul.u32 4, %s19
      %p223 = scmp.lt.s32.totalorder %s19, 1
      %s224 = scalar_select %p223, %s19, 1
      %s225 = smul.addr %s224, 4
      %s226 = scalar_lea.vmem %s2, %s225
      %s227 = smul.u32 4, %s19
      %p228 = scmp.lt.s32.totalorder %s18, 1
      %s229 = scalar_select %p228, %s18, 1
      %p230 = scmp.lt.s32.totalorder %s227, 7
      %s231 = scalar_select %p230, %s227, 7
      %s232 = smul.addr %s231, 4
      %s233 = smul.addr %s229, 32
      %s234 = sadd.s32 %s232, %s233
      %s235 = smul.addr %s234, 8
      %s236 = scalar_lea.vmem %s3, %s235
      %s237 = smul.u32 4, %s19
      %v238 = vlaneseq
      %v239 = vand.u32 %v238, 127
      %vm240 = vcmp.lt.s32.totalorder %v239, 64
      %vm241 = vcmp.eq.s32.totalorder %v239, 0
      %vm242 = vcmp.eq.s32.totalorder %v239, 64
      %vm243 = vmor %vm241, %vm242
      %vm244 = vcmp.eq.s32.totalorder %v239, 63
      %vm245 = vcmp.eq.s32.totalorder %v239, 127
      %vm246 = vmor %vm244, %vm245
      %v247 = vld [vmem:[%s226] sm:$0x1]
      %v248 = vlaneseq
      %v249 = vshrl.u32 %v248, 7
      %v250 = vsub.s32 0, %v249
      %v251 = vrot.slane %v247, %v250
      %v252 = vld [vmem:[%s226 + $0x1] sm:$0x1]
      %v253 = vlaneseq
      %v254 = vshrl.u32 %v253, 7
      %v255 = vsub.s32 0, %v254
      %v256 = vrot.slane %v252, %v255
      %v257 = vld [vmem:[%s226 + $0x2] sm:$0x1]
      %v258 = vlaneseq
      %v259 = vshrl.u32 %v258, 7
      %v260 = vsub.s32 0, %v259
      %v261 = vrot.slane %v257, %v260
      %v262 = vld [vmem:[%s226 + $0x3] sm:$0x1]
      %v263 = vlaneseq
      %v264 = vshrl.u32 %v263, 7
      %v265 = vsub.s32 0, %v264
      %v266 = vrot.slane %v262, %v265
      %v267 = vld [vmem:[%s215] sm:$0xff]
      %v268 = vld [vmem:[%s215 + $0x8] sm:$0xff]
      %v269 = vld [vmem:[%s215 + $0x10] sm:$0xff]
      %v270 = vld [vmem:[%s215 + $0x18] sm:$0xff]
      %275 = vrot.lane.b32.xlu0 %v267, 64
      %v276 = vpop.permute.xlu0 %275
      %277 = vrot.lane.b32.xlu0 %v268, 64
      %v278 = vpop.permute.xlu0 %277
      %279 = vrot.lane.b32.xlu0 %v269, 64
      %v280 = vpop.permute.xlu0 %279
      %281 = vrot.lane.b32.xlu0 %v270, 64
      %v282 = vpop.permute.xlu0 %281
      %vm291 = vcmask 1046528
      %v292 = vrot.slane %v276, 1
      %v293 = vrot.slane %v278, 1
      %v294 = vsel %vm291, %v292, %v293
      %v295 = vrot.slane %v280, 1
      %v296 = vsel %vm291, %v293, %v295
      %v297 = vrot.slane %v282, 1
      %v298 = vsel %vm291, %v295, %v297
      %v303 = vsel %vm291, %v297, 0.0
      %vm304 = vcmask 1040384
      %v305 = vrot.slane %v276, 7
      %v306 = vrot.slane %v278, 7
      %v307 = vsel %vm304, %v305, %v306
      %v308 = vrot.slane %v280, 7
      %v309 = vsel %vm304, %v306, %v308
      %v310 = vrot.slane %v282, 7
      %v311 = vsel %vm304, %v308, %v310
      %v316 = vsel %vm304, 0.0, %v305
      %v317 = vsel %vm240, %v316, %v276
      %v318 = vsel %vm240, %v307, %v278
      %v319 = vsel %vm240, %v309, %v280
      %v320 = vsel %vm240, %v311, %v282
      %v321 = vsel %vm240, %v276, %v294
      %v322 = vsel %vm240, %v278, %v296
      %v323 = vsel %vm240, %v280, %v298
      %v324 = vsel %vm240, %v282, %v303
      %329 = vrot.lane.b32.xlu0 %v317, 1
      %v330 = vpop.permute.xlu0 %329
      %331 = vrot.lane.b32.xlu0 %v318, 1
      %v332 = vpop.permute.xlu0 %331
      %333 = vrot.lane.b32.xlu0 %v319, 1
      %v334 = vpop.permute.xlu0 %333
      %335 = vrot.lane.b32.xlu0 %v320, 1
      %v336 = vpop.permute.xlu0 %335
      %vm341 = vcmask 7168
      %v342 = vsel %vm341, 0.0, %v330
      %v343 = vsel %vm341, 0.0, %v332
      %v344 = vsel %vm341, 0.0, %v334
      %v345 = vsel %vm341, 0.0, %v336
      %v346 = vsel %vm243, 0.0, %v342
      %v347 = vsel %vm243, 0.0, %v343
      %v348 = vsel %vm243, 0.0, %v344
      %v349 = vsel %vm243, 0.0, %v345
      %v350 = vld [vmem:[%s221] sm:$0x1]
      %v351 = vlaneseq
      %v352 = vshrl.u32 %v351, 7
      %v353 = vsub.s32 0, %v352
      %v354 = vrot.slane %v350, %v353
      %v355 = vmul.f32 %v354, %v346
      %v356 = vmul.f32 %v354, %v347
      %v357 = vmul.f32 %v354, %v348
      %v358 = vmul.f32 %v354, %v349
      %v359 = vadd.f32 %v251, %v355
      %v360 = vadd.f32 %v251, %v356
      %v361 = vadd.f32 %v251, %v357
      %v362 = vadd.f32 %v251, %v358
      %s363 = scalar_lea.vmem %s221, 32
      %v364 = vld [vmem:[%s363] sm:$0x1]
      %v365 = vlaneseq
      %v366 = vshrl.u32 %v365, 7
      %v367 = vsub.s32 0, %v366
      %v368 = vrot.slane %v364, %v367
      %v369 = vmul.f32 %v368, %v346
      %v370 = vmul.f32 %v368, %v347
      %v371 = vmul.f32 %v368, %v348
      %v372 = vmul.f32 %v368, %v349
      %v373 = vadd.f32 %v256, %v369
      %v374 = vadd.f32 %v256, %v370
      %v375 = vadd.f32 %v256, %v371
      %v376 = vadd.f32 %v256, %v372
      %s377 = scalar_lea.vmem %s221, 64
      %v378 = vld [vmem:[%s377] sm:$0x1]
      %v379 = vlaneseq
      %v380 = vshrl.u32 %v379, 7
      %v381 = vsub.s32 0, %v380
      %v382 = vrot.slane %v378, %v381
      %v383 = vmul.f32 %v382, %v346
      %v384 = vmul.f32 %v382, %v347
      %v385 = vmul.f32 %v382, %v348
      %v386 = vmul.f32 %v382, %v349
      %v387 = vadd.f32 %v261, %v383
      %v388 = vadd.f32 %v261, %v384
      %v389 = vadd.f32 %v261, %v385
      %v390 = vadd.f32 %v261, %v386
      %s391 = scalar_lea.vmem %s221, 96
      %v392 = vld [vmem:[%s391] sm:$0x1]
      %v393 = vlaneseq
      %v394 = vshrl.u32 %v393, 7
      %v395 = vsub.s32 0, %v394
      %v396 = vrot.slane %v392, %v395
      %v397 = vmul.f32 %v396, %v346
      %v398 = vmul.f32 %v396, %v347
      %v399 = vmul.f32 %v396, %v348
      %v400 = vmul.f32 %v396, %v349
      %v401 = vadd.f32 %v266, %v397
      %v402 = vadd.f32 %v266, %v398
      %v403 = vadd.f32 %v266, %v399
      %v404 = vadd.f32 %v266, %v400
      %v405 = vld [vmem:[%s221 + $0x1] sm:$0x1]
      %v406 = vlaneseq
      %v407 = vshrl.u32 %v406, 7
      %v408 = vsub.s32 0, %v407
      %v409 = vrot.slane %v405, %v408
      %v410 = vmul.f32 %v409, %v317
      %v411 = vmul.f32 %v409, %v318
      %v412 = vmul.f32 %v409, %v319
      %v413 = vmul.f32 %v409, %v320
      %v414 = vadd.f32 %v359, %v410
      %v415 = vadd.f32 %v360, %v411
      %v416 = vadd.f32 %v361, %v412
      %v417 = vadd.f32 %v362, %v413
      %v418 = vld [vmem:[%s363 + $0x1] sm:$0x1]
      %v419 = vlaneseq
      %v420 = vshrl.u32 %v419, 7
      %v421 = vsub.s32 0, %v420
      %v422 = vrot.slane %v418, %v421
      %v423 = vmul.f32 %v422, %v317
      %v424 = vmul.f32 %v422, %v318
      %v425 = vmul.f32 %v422, %v319
      %v426 = vmul.f32 %v422, %v320
      %v427 = vadd.f32 %v373, %v423
      %v428 = vadd.f32 %v374, %v424
      %v429 = vadd.f32 %v375, %v425
      %v430 = vadd.f32 %v376, %v426
      %v431 = vld [vmem:[%s377 + $0x1] sm:$0x1]
      %v432 = vlaneseq
      %v433 = vshrl.u32 %v432, 7
      %v434 = vsub.s32 0, %v433
      %v435 = vrot.slane %v431, %v434
      %v436 = vmul.f32 %v435, %v317
      %v437 = vmul.f32 %v435, %v318
      %v438 = vmul.f32 %v435, %v319
      %v439 = vmul.f32 %v435, %v320
      %v440 = vadd.f32 %v387, %v436
      %v441 = vadd.f32 %v388, %v437
      %v442 = vadd.f32 %v389, %v438
      %v443 = vadd.f32 %v390, %v439
      %v444 = vld [vmem:[%s391 + $0x1] sm:$0x1]
      %v445 = vlaneseq
      %v446 = vshrl.u32 %v445, 7
      %v447 = vsub.s32 0, %v446
      %v448 = vrot.slane %v444, %v447
      %v449 = vmul.f32 %v448, %v317
      %v450 = vmul.f32 %v448, %v318
      %v451 = vmul.f32 %v448, %v319
      %v452 = vmul.f32 %v448, %v320
      %v453 = vadd.f32 %v401, %v449
      %v454 = vadd.f32 %v402, %v450
      %v455 = vadd.f32 %v403, %v451
      %v456 = vadd.f32 %v404, %v452
      %457 = vrot.lane.b32.xlu0 %v317, 127
      %v458 = vpop.permute.xlu0 %457
      %459 = vrot.lane.b32.xlu0 %v318, 127
      %v460 = vpop.permute.xlu0 %459
      %461 = vrot.lane.b32.xlu0 %v319, 127
      %v462 = vpop.permute.xlu0 %461
      %463 = vrot.lane.b32.xlu0 %v320, 127
      %v464 = vpop.permute.xlu0 %463
      %vm469 = vcmask 1039360
      %v470 = vsel %vm469, %v458, 0.0
      %v471 = vsel %vm469, %v460, 0.0
      %v472 = vsel %vm469, %v462, 0.0
      %v473 = vsel %vm469, %v464, 0.0
      %v474 = vsel %vm246, 0.0, %v470
      %v475 = vsel %vm246, 0.0, %v471
      %v476 = vsel %vm246, 0.0, %v472
      %v477 = vsel %vm246, 0.0, %v473
      %v478 = vld [vmem:[%s221 + $0x2] sm:$0x1]
      %v479 = vlaneseq
      %v480 = vshrl.u32 %v479, 7
      %v481 = vsub.s32 0, %v480
      %v482 = vrot.slane %v478, %v481
      %v483 = vmul.f32 %v482, %v474
      %v484 = vmul.f32 %v482, %v475
      %v485 = vmul.f32 %v482, %v476
      %v486 = vmul.f32 %v482, %v477
      %v487 = vadd.f32 %v414, %v483
      %v488 = vadd.f32 %v415, %v484
      %v489 = vadd.f32 %v416, %v485
      %v490 = vadd.f32 %v417, %v486
      %v491 = vld [vmem:[%s363 + $0x2] sm:$0x1]
      %v492 = vlaneseq
      %v493 = vshrl.u32 %v492, 7
      %v494 = vsub.s32 0, %v493
      %v495 = vrot.slane %v491, %v494
      %v496 = vmul.f32 %v495, %v474
      %v497 = vmul.f32 %v495, %v475
      %v498 = vmul.f32 %v495, %v476
      %v499 = vmul.f32 %v495, %v477
      %v500 = vadd.f32 %v427, %v496
      %v501 = vadd.f32 %v428, %v497
      %v502 = vadd.f32 %v429, %v498
      %v503 = vadd.f32 %v430, %v499
      %v504 = vld [vmem:[%s377 + $0x2] sm:$0x1]
      %v505 = vlaneseq
      %v506 = vshrl.u32 %v505, 7
      %v507 = vsub.s32 0, %v506
      %v508 = vrot.slane %v504, %v507
      %v509 = vmul.f32 %v508, %v474
      %v510 = vmul.f32 %v508, %v475
      %v511 = vmul.f32 %v508, %v476
      %v512 = vmul.f32 %v508, %v477
      %v513 = vadd.f32 %v440, %v509
      %v514 = vadd.f32 %v441, %v510
      %v515 = vadd.f32 %v442, %v511
      %v516 = vadd.f32 %v443, %v512
      %v517 = vld [vmem:[%s391 + $0x2] sm:$0x1]
      %v518 = vlaneseq
      %v519 = vshrl.u32 %v518, 7
      %v520 = vsub.s32 0, %v519
      %v521 = vrot.slane %v517, %v520
      %v522 = vmul.f32 %v521, %v474
      %v523 = vmul.f32 %v521, %v475
      %v524 = vmul.f32 %v521, %v476
      %v525 = vmul.f32 %v521, %v477
      %v526 = vadd.f32 %v453, %v522
      %v527 = vadd.f32 %v454, %v523
      %v528 = vadd.f32 %v455, %v524
      %v529 = vadd.f32 %v456, %v525
      %530 = vrot.lane.b32.xlu0 %v267, 1
      %v531 = vpop.permute.xlu0 %530
      %532 = vrot.lane.b32.xlu0 %v268, 1
      %v533 = vpop.permute.xlu0 %532
      %534 = vrot.lane.b32.xlu0 %v269, 1
      %v535 = vpop.permute.xlu0 %534
      %536 = vrot.lane.b32.xlu0 %v270, 1
      %v537 = vpop.permute.xlu0 %536
      %v542 = vsel %vm341, 0.0, %v531
      %v543 = vsel %vm341, 0.0, %v533
      %v544 = vsel %vm341, 0.0, %v535
      %v545 = vsel %vm341, 0.0, %v537
      %v546 = vsel %vm243, 0.0, %v542
      %v547 = vsel %vm243, 0.0, %v543
      %v548 = vsel %vm243, 0.0, %v544
      %v549 = vsel %vm243, 0.0, %v545
      %v550 = vld [vmem:[%s221 + $0x3] sm:$0x1]
      %v551 = vlaneseq
      %v552 = vshrl.u32 %v551, 7
      %v553 = vsub.s32 0, %v552
      %v554 = vrot.slane %v550, %v553
      %v555 = vmul.f32 %v554, %v546
      %v556 = vmul.f32 %v554, %v547
      %v557 = vmul.f32 %v554, %v548
      %v558 = vmul.f32 %v554, %v549
      %v559 = vadd.f32 %v487, %v555
      %v560 = vadd.f32 %v488, %v556
      %v561 = vadd.f32 %v489, %v557
      %v562 = vadd.f32 %v490, %v558
      %v563 = vld [vmem:[%s363 + $0x3] sm:$0x1]
      %v564 = vlaneseq
      %v565 = vshrl.u32 %v564, 7
      %v566 = vsub.s32 0, %v565
      %v567 = vrot.slane %v563, %v566
      %v568 = vmul.f32 %v567, %v546
      %v569 = vmul.f32 %v567, %v547
      %v570 = vmul.f32 %v567, %v548
      %v571 = vmul.f32 %v567, %v549
      %v572 = vadd.f32 %v500, %v568
      %v573 = vadd.f32 %v501, %v569
      %v574 = vadd.f32 %v502, %v570
      %v575 = vadd.f32 %v503, %v571
      %v576 = vld [vmem:[%s377 + $0x3] sm:$0x1]
      %v577 = vlaneseq
      %v578 = vshrl.u32 %v577, 7
      %v579 = vsub.s32 0, %v578
      %v580 = vrot.slane %v576, %v579
      %v581 = vmul.f32 %v580, %v546
      %v582 = vmul.f32 %v580, %v547
      %v583 = vmul.f32 %v580, %v548
      %v584 = vmul.f32 %v580, %v549
      %v585 = vadd.f32 %v513, %v581
      %v586 = vadd.f32 %v514, %v582
      %v587 = vadd.f32 %v515, %v583
      %v588 = vadd.f32 %v516, %v584
      %v589 = vld [vmem:[%s391 + $0x3] sm:$0x1]
      %v590 = vlaneseq
      %v591 = vshrl.u32 %v590, 7
      %v592 = vsub.s32 0, %v591
      %v593 = vrot.slane %v589, %v592
      %v594 = vmul.f32 %v593, %v546
      %v595 = vmul.f32 %v593, %v547
      %v596 = vmul.f32 %v593, %v548
      %v597 = vmul.f32 %v593, %v549
      %v598 = vadd.f32 %v526, %v594
      %v599 = vadd.f32 %v527, %v595
      %v600 = vadd.f32 %v528, %v596
      %v601 = vadd.f32 %v529, %v597
      %v602 = vld [vmem:[%s221 + $0x4] sm:$0x1]
      %v603 = vlaneseq
      %v604 = vshrl.u32 %v603, 7
      %v605 = vsub.s32 0, %v604
      %v606 = vrot.slane %v602, %v605
      %v607 = vmul.f32 %v606, %v267
      %v608 = vmul.f32 %v606, %v268
      %v609 = vmul.f32 %v606, %v269
      %v610 = vmul.f32 %v606, %v270
      %v611 = vadd.f32 %v559, %v607
      %v612 = vadd.f32 %v560, %v608
      %v613 = vadd.f32 %v561, %v609
      %v614 = vadd.f32 %v562, %v610
      %v615 = vld [vmem:[%s363 + $0x4] sm:$0x1]
      %v616 = vlaneseq
      %v617 = vshrl.u32 %v616, 7
      %v618 = vsub.s32 0, %v617
      %v619 = vrot.slane %v615, %v618
      %v620 = vmul.f32 %v619, %v267
      %v621 = vmul.f32 %v619, %v268
      %v622 = vmul.f32 %v619, %v269
      %v623 = vmul.f32 %v619, %v270
      %v624 = vadd.f32 %v572, %v620
      %v625 = vadd.f32 %v573, %v621
      %v626 = vadd.f32 %v574, %v622
      %v627 = vadd.f32 %v575, %v623
      %v628 = vld [vmem:[%s377 + $0x4] sm:$0x1]
      %v629 = vlaneseq
      %v630 = vshrl.u32 %v629, 7
      %v631 = vsub.s32 0, %v630
      %v632 = vrot.slane %v628, %v631
      %v633 = vmul.f32 %v632, %v267
      %v634 = vmul.f32 %v632, %v268
      %v635 = vmul.f32 %v632, %v269
      %v636 = vmul.f32 %v632, %v270
      %v637 = vadd.f32 %v585, %v633
      %v638 = vadd.f32 %v586, %v634
      %v639 = vadd.f32 %v587, %v635
      %v640 = vadd.f32 %v588, %v636
      %v641 = vld [vmem:[%s391 + $0x4] sm:$0x1]
      %v642 = vlaneseq
      %v643 = vshrl.u32 %v642, 7
      %v644 = vsub.s32 0, %v643
      %v645 = vrot.slane %v641, %v644
      %v646 = vmul.f32 %v645, %v267
      %v647 = vmul.f32 %v645, %v268
      %v648 = vmul.f32 %v645, %v269
      %v649 = vmul.f32 %v645, %v270
      %v650 = vadd.f32 %v598, %v646
      %v651 = vadd.f32 %v599, %v647
      %v652 = vadd.f32 %v600, %v648
      %v653 = vadd.f32 %v601, %v649
      %654 = vrot.lane.b32.xlu0 %v267, 127
      %v655 = vpop.permute.xlu0 %654
      %656 = vrot.lane.b32.xlu0 %v268, 127
      %v657 = vpop.permute.xlu0 %656
      %658 = vrot.lane.b32.xlu0 %v269, 127
      %v659 = vpop.permute.xlu0 %658
      %660 = vrot.lane.b32.xlu0 %v270, 127
      %v661 = vpop.permute.xlu0 %660
      %v666 = vsel %vm469, %v655, 0.0
      %v667 = vsel %vm469, %v657, 0.0
      %v668 = vsel %vm469, %v659, 0.0
      %v669 = vsel %vm469, %v661, 0.0
      %v670 = vsel %vm246, 0.0, %v666
      %v671 = vsel %vm246, 0.0, %v667
      %v672 = vsel %vm246, 0.0, %v668
      %v673 = vsel %vm246, 0.0, %v669
      %v674 = vld [vmem:[%s221 + $0x5] sm:$0x1]
      %v675 = vlaneseq
      %v676 = vshrl.u32 %v675, 7
      %v677 = vsub.s32 0, %v676
      %v678 = vrot.slane %v674, %v677
      %v679 = vmul.f32 %v678, %v670
      %v680 = vmul.f32 %v678, %v671
      %v681 = vmul.f32 %v678, %v672
      %v682 = vmul.f32 %v678, %v673
      %v683 = vadd.f32 %v611, %v679
      %v684 = vadd.f32 %v612, %v680
      %v685 = vadd.f32 %v613, %v681
      %v686 = vadd.f32 %v614, %v682
      %v687 = vld [vmem:[%s363 + $0x5] sm:$0x1]
      %v688 = vlaneseq
      %v689 = vshrl.u32 %v688, 7
      %v690 = vsub.s32 0, %v689
      %v691 = vrot.slane %v687, %v690
      %v692 = vmul.f32 %v691, %v670
      %v693 = vmul.f32 %v691, %v671
      %v694 = vmul.f32 %v691, %v672
      %v695 = vmul.f32 %v691, %v673
      %v696 = vadd.f32 %v624, %v692
      %v697 = vadd.f32 %v625, %v693
      %v698 = vadd.f32 %v626, %v694
      %v699 = vadd.f32 %v627, %v695
      %v700 = vld [vmem:[%s377 + $0x5] sm:$0x1]
      %v701 = vlaneseq
      %v702 = vshrl.u32 %v701, 7
      %v703 = vsub.s32 0, %v702
      %v704 = vrot.slane %v700, %v703
      %v705 = vmul.f32 %v704, %v670
      %v706 = vmul.f32 %v704, %v671
      %v707 = vmul.f32 %v704, %v672
      %v708 = vmul.f32 %v704, %v673
      %v709 = vadd.f32 %v637, %v705
      %v710 = vadd.f32 %v638, %v706
      %v711 = vadd.f32 %v639, %v707
      %v712 = vadd.f32 %v640, %v708
      %v713 = vld [vmem:[%s391 + $0x5] sm:$0x1]
      %v714 = vlaneseq
      %v715 = vshrl.u32 %v714, 7
      %v716 = vsub.s32 0, %v715
      %v717 = vrot.slane %v713, %v716
      %v718 = vmul.f32 %v717, %v670
      %v719 = vmul.f32 %v717, %v671
      %v720 = vmul.f32 %v717, %v672
      %v721 = vmul.f32 %v717, %v673
      %v722 = vadd.f32 %v650, %v718
      %v723 = vadd.f32 %v651, %v719
      %v724 = vadd.f32 %v652, %v720
      %v725 = vadd.f32 %v653, %v721
      %730 = vrot.lane.b32.xlu0 %v321, 1
      %v731 = vpop.permute.xlu0 %730
      %732 = vrot.lane.b32.xlu0 %v322, 1
      %v733 = vpop.permute.xlu0 %732
      %734 = vrot.lane.b32.xlu0 %v323, 1
      %v735 = vpop.permute.xlu0 %734
      %736 = vrot.lane.b32.xlu0 %v324, 1
      %v737 = vpop.permute.xlu0 %736
      %v742 = vsel %vm341, 0.0, %v731
      %v743 = vsel %vm341, 0.0, %v733
      %v744 = vsel %vm341, 0.0, %v735
      %v745 = vsel %vm341, 0.0, %v737
      %v746 = vsel %vm243, 0.0, %v742
      %v747 = vsel %vm243, 0.0, %v743
      %v748 = vsel %vm243, 0.0, %v744
      %v749 = vsel %vm243, 0.0, %v745
      %v750 = vld [vmem:[%s221 + $0x6] sm:$0x1]
      %v751 = vlaneseq
      %v752 = vshrl.u32 %v751, 7
      %v753 = vsub.s32 0, %v752
      %v754 = vrot.slane %v750, %v753
      %v755 = vmul.f32 %v754, %v746
      %v756 = vmul.f32 %v754, %v747
      %v757 = vmul.f32 %v754, %v748
      %v758 = vmul.f32 %v754, %v749
      %v759 = vadd.f32 %v683, %v755
      %v760 = vadd.f32 %v684, %v756
      %v761 = vadd.f32 %v685, %v757
      %v762 = vadd.f32 %v686, %v758
      %v763 = vld [vmem:[%s363 + $0x6] sm:$0x1]
      %v764 = vlaneseq
      %v765 = vshrl.u32 %v764, 7
      %v766 = vsub.s32 0, %v765
      %v767 = vrot.slane %v763, %v766
      %v768 = vmul.f32 %v767, %v746
      %v769 = vmul.f32 %v767, %v747
      %v770 = vmul.f32 %v767, %v748
      %v771 = vmul.f32 %v767, %v749
      %v772 = vadd.f32 %v696, %v768
      %v773 = vadd.f32 %v697, %v769
      %v774 = vadd.f32 %v698, %v770
      %v775 = vadd.f32 %v699, %v771
      %v776 = vld [vmem:[%s377 + $0x6] sm:$0x1]
      %v777 = vlaneseq
      %v778 = vshrl.u32 %v777, 7
      %v779 = vsub.s32 0, %v778
      %v780 = vrot.slane %v776, %v779
      %v781 = vmul.f32 %v780, %v746
      %v782 = vmul.f32 %v780, %v747
      %v783 = vmul.f32 %v780, %v748
      %v784 = vmul.f32 %v780, %v749
      %v785 = vadd.f32 %v709, %v781
      %v786 = vadd.f32 %v710, %v782
      %v787 = vadd.f32 %v711, %v783
      %v788 = vadd.f32 %v712, %v784
      %v789 = vld [vmem:[%s391 + $0x6] sm:$0x1]
      %v790 = vlaneseq
      %v791 = vshrl.u32 %v790, 7
      %v792 = vsub.s32 0, %v791
      %v793 = vrot.slane %v789, %v792
      %v794 = vmul.f32 %v793, %v746
      %v795 = vmul.f32 %v793, %v747
      %v796 = vmul.f32 %v793, %v748
      %v797 = vmul.f32 %v793, %v749
      %v798 = vadd.f32 %v722, %v794
      %v799 = vadd.f32 %v723, %v795
      %v800 = vadd.f32 %v724, %v796
      %v801 = vadd.f32 %v725, %v797
      %v802 = vld [vmem:[%s221 + $0x7] sm:$0x1]
      %v803 = vlaneseq
      %v804 = vshrl.u32 %v803, 7
      %v805 = vsub.s32 0, %v804
      %v806 = vrot.slane %v802, %v805
      %v807 = vmul.f32 %v806, %v321
      %v808 = vmul.f32 %v806, %v322
      %v809 = vmul.f32 %v806, %v323
      %v810 = vmul.f32 %v806, %v324
      %v811 = vadd.f32 %v759, %v807
      %v812 = vadd.f32 %v760, %v808
      %v813 = vadd.f32 %v761, %v809
      %v814 = vadd.f32 %v762, %v810
      %v815 = vld [vmem:[%s363 + $0x7] sm:$0x1]
      %v816 = vlaneseq
      %v817 = vshrl.u32 %v816, 7
      %v818 = vsub.s32 0, %v817
      %v819 = vrot.slane %v815, %v818
      %v820 = vmul.f32 %v819, %v321
      %v821 = vmul.f32 %v819, %v322
      %v822 = vmul.f32 %v819, %v323
      %v823 = vmul.f32 %v819, %v324
      %v824 = vadd.f32 %v772, %v820
      %v825 = vadd.f32 %v773, %v821
      %v826 = vadd.f32 %v774, %v822
      %v827 = vadd.f32 %v775, %v823
      %v828 = vld [vmem:[%s377 + $0x7] sm:$0x1]
      %v829 = vlaneseq
      %v830 = vshrl.u32 %v829, 7
      %v831 = vsub.s32 0, %v830
      %v832 = vrot.slane %v828, %v831
      %v833 = vmul.f32 %v832, %v321
      %v834 = vmul.f32 %v832, %v322
      %v835 = vmul.f32 %v832, %v323
      %v836 = vmul.f32 %v832, %v324
      %v837 = vadd.f32 %v785, %v833
      %v838 = vadd.f32 %v786, %v834
      %v839 = vadd.f32 %v787, %v835
      %v840 = vadd.f32 %v788, %v836
      %v841 = vld [vmem:[%s391 + $0x7] sm:$0x1]
      %v842 = vlaneseq
      %v843 = vshrl.u32 %v842, 7
      %v844 = vsub.s32 0, %v843
      %v845 = vrot.slane %v841, %v844
      %v846 = vmul.f32 %v845, %v321
      %v847 = vmul.f32 %v845, %v322
      %v848 = vmul.f32 %v845, %v323
      %v849 = vmul.f32 %v845, %v324
      %v850 = vadd.f32 %v798, %v846
      %v851 = vadd.f32 %v799, %v847
      %v852 = vadd.f32 %v800, %v848
      %v853 = vadd.f32 %v801, %v849
      %854 = vrot.lane.b32.xlu0 %v321, 127
      %v855 = vpop.permute.xlu0 %854
      %856 = vrot.lane.b32.xlu0 %v322, 127
      %v857 = vpop.permute.xlu0 %856
      %858 = vrot.lane.b32.xlu0 %v323, 127
      %v859 = vpop.permute.xlu0 %858
      %860 = vrot.lane.b32.xlu0 %v324, 127
      %v861 = vpop.permute.xlu0 %860
      %v866 = vsel %vm469, %v855, 0.0
      %v867 = vsel %vm469, %v857, 0.0
      %v868 = vsel %vm469, %v859, 0.0
      %v869 = vsel %vm469, %v861, 0.0
      %v870 = vsel %vm246, 0.0, %v866
      %v871 = vsel %vm246, 0.0, %v867
      %v872 = vsel %vm246, 0.0, %v868
      %v873 = vsel %vm246, 0.0, %v869
      %v874 = vld [vmem:[%s221 + $0x8] sm:$0x1]
      %v875 = vlaneseq
      %v876 = vshrl.u32 %v875, 7
      %v877 = vsub.s32 0, %v876
      %v878 = vrot.slane %v874, %v877
      %v879 = vmul.f32 %v878, %v870
      %v880 = vmul.f32 %v878, %v871
      %v881 = vmul.f32 %v878, %v872
      %v882 = vmul.f32 %v878, %v873
      %v883 = vadd.f32 %v811, %v879
      %v884 = vadd.f32 %v812, %v880
      %v885 = vadd.f32 %v813, %v881
      %v886 = vadd.f32 %v814, %v882
      %v887 = vld [vmem:[%s363 + $0x8] sm:$0x1]
      %v888 = vlaneseq
      %v889 = vshrl.u32 %v888, 7
      %v890 = vsub.s32 0, %v889
      %v891 = vrot.slane %v887, %v890
      %v892 = vmul.f32 %v891, %v870
      %v893 = vmul.f32 %v891, %v871
      %v894 = vmul.f32 %v891, %v872
      %v895 = vmul.f32 %v891, %v873
      %v896 = vadd.f32 %v824, %v892
      %v897 = vadd.f32 %v825, %v893
      %v898 = vadd.f32 %v826, %v894
      %v899 = vadd.f32 %v827, %v895
      %v900 = vld [vmem:[%s377 + $0x8] sm:$0x1]
      %v901 = vlaneseq
      %v902 = vshrl.u32 %v901, 7
      %v903 = vsub.s32 0, %v902
      %v904 = vrot.slane %v900, %v903
      %v905 = vmul.f32 %v904, %v870
      %v906 = vmul.f32 %v904, %v871
      %v907 = vmul.f32 %v904, %v872
      %v908 = vmul.f32 %v904, %v873
      %v909 = vadd.f32 %v837, %v905
      %v910 = vadd.f32 %v838, %v906
      %v911 = vadd.f32 %v839, %v907
      %v912 = vadd.f32 %v840, %v908
      %v913 = vld [vmem:[%s391 + $0x8] sm:$0x1]
      %v914 = vlaneseq
      %v915 = vshrl.u32 %v914, 7
      %v916 = vsub.s32 0, %v915
      %v917 = vrot.slane %v913, %v916
      %v918 = vmul.f32 %v917, %v870
      %v919 = vmul.f32 %v917, %v871
      %v920 = vmul.f32 %v917, %v872
      %v921 = vmul.f32 %v917, %v873
      %v922 = vadd.f32 %v850, %v918
      %v923 = vadd.f32 %v851, %v919
      %v924 = vadd.f32 %v852, %v920
      %v925 = vadd.f32 %v853, %v921
      %s926 = scalar_lea.vmem %s215, 32
      %v927 = vld [vmem:[%s926] sm:$0xff]
      %v928 = vld [vmem:[%s926 + $0x8] sm:$0xff]
      %v929 = vld [vmem:[%s926 + $0x10] sm:$0xff]
      %v930 = vld [vmem:[%s926 + $0x18] sm:$0xff]
      %935 = vrot.lane.b32.xlu0 %v927, 64
      %v936 = vpop.permute.xlu0 %935
      %937 = vrot.lane.b32.xlu0 %v928, 64
      %v938 = vpop.permute.xlu0 %937
      %939 = vrot.lane.b32.xlu0 %v929, 64
      %v940 = vpop.permute.xlu0 %939
      %941 = vrot.lane.b32.xlu0 %v930, 64
      %v942 = vpop.permute.xlu0 %941
      %v951 = vrot.slane %v936, 1
      %v952 = vrot.slane %v938, 1
      %v953 = vsel %vm291, %v951, %v952
      %v954 = vrot.slane %v940, 1
      %v955 = vsel %vm291, %v952, %v954
      %v956 = vrot.slane %v942, 1
      %v957 = vsel %vm291, %v954, %v956
      %v962 = vsel %vm291, %v956, 0.0
      %v963 = vrot.slane %v936, 7
      %v964 = vrot.slane %v938, 7
      %v965 = vsel %vm304, %v963, %v964
      %v966 = vrot.slane %v940, 7
      %v967 = vsel %vm304, %v964, %v966
      %v968 = vrot.slane %v942, 7
      %v969 = vsel %vm304, %v966, %v968
      %v974 = vsel %vm304, 0.0, %v963
      %v975 = vsel %vm240, %v974, %v936
      %v976 = vsel %vm240, %v965, %v938
      %v977 = vsel %vm240, %v967, %v940
      %v978 = vsel %vm240, %v969, %v942
      %v979 = vsel %vm240, %v936, %v953
      %v980 = vsel %vm240, %v938, %v955
      %v981 = vsel %vm240, %v940, %v957
      %v982 = vsel %vm240, %v942, %v962
      %987 = vrot.lane.b32.xlu0 %v975, 1
      %v988 = vpop.permute.xlu0 %987
      %989 = vrot.lane.b32.xlu0 %v976, 1
      %v990 = vpop.permute.xlu0 %989
      %991 = vrot.lane.b32.xlu0 %v977, 1
      %v992 = vpop.permute.xlu0 %991
      %993 = vrot.lane.b32.xlu0 %v978, 1
      %v994 = vpop.permute.xlu0 %993
      %v999 = vsel %vm341, 0.0, %v988
      %v1000 = vsel %vm341, 0.0, %v990
      %v1001 = vsel %vm341, 0.0, %v992
      %v1002 = vsel %vm341, 0.0, %v994
      %v1003 = vsel %vm243, 0.0, %v999
      %v1004 = vsel %vm243, 0.0, %v1000
      %v1005 = vsel %vm243, 0.0, %v1001
      %v1006 = vsel %vm243, 0.0, %v1002
      %v1007 = vld [vmem:[%s221 + $0x9] sm:$0x1]
      %v1008 = vlaneseq
      %v1009 = vshrl.u32 %v1008, 7
      %v1010 = vsub.s32 0, %v1009
      %v1011 = vrot.slane %v1007, %v1010
      %v1012 = vmul.f32 %v1011, %v1003
      %v1013 = vmul.f32 %v1011, %v1004
      %v1014 = vmul.f32 %v1011, %v1005
      %v1015 = vmul.f32 %v1011, %v1006
      %v1016 = vadd.f32 %v883, %v1012
      %v1017 = vadd.f32 %v884, %v1013
      %v1018 = vadd.f32 %v885, %v1014
      %v1019 = vadd.f32 %v886, %v1015
      %v1020 = vld [vmem:[%s363 + $0x9] sm:$0x1]
      %v1021 = vlaneseq
      %v1022 = vshrl.u32 %v1021, 7
      %v1023 = vsub.s32 0, %v1022
      %v1024 = vrot.slane %v1020, %v1023
      %v1025 = vmul.f32 %v1024, %v1003
      %v1026 = vmul.f32 %v1024, %v1004
      %v1027 = vmul.f32 %v1024, %v1005
      %v1028 = vmul.f32 %v1024, %v1006
      %v1029 = vadd.f32 %v896, %v1025
      %v1030 = vadd.f32 %v897, %v1026
      %v1031 = vadd.f32 %v898, %v1027
      %v1032 = vadd.f32 %v899, %v1028
      %v1033 = vld [vmem:[%s377 + $0x9] sm:$0x1]
      %v1034 = vlaneseq
      %v1035 = vshrl.u32 %v1034, 7
      %v1036 = vsub.s32 0, %v1035
      %v1037 = vrot.slane %v1033, %v1036
      %v1038 = vmul.f32 %v1037, %v1003
      %v1039 = vmul.f32 %v1037, %v1004
      %v1040 = vmul.f32 %v1037, %v1005
      %v1041 = vmul.f32 %v1037, %v1006
      %v1042 = vadd.f32 %v909, %v1038
      %v1043 = vadd.f32 %v910, %v1039
      %v1044 = vadd.f32 %v911, %v1040
      %v1045 = vadd.f32 %v912, %v1041
      %v1046 = vld [vmem:[%s391 + $0x9] sm:$0x1]
      %v1047 = vlaneseq
      %v1048 = vshrl.u32 %v1047, 7
      %v1049 = vsub.s32 0, %v1048
      %v1050 = vrot.slane %v1046, %v1049
      %v1051 = vmul.f32 %v1050, %v1003
      %v1052 = vmul.f32 %v1050, %v1004
      %v1053 = vmul.f32 %v1050, %v1005
      %v1054 = vmul.f32 %v1050, %v1006
      %v1055 = vadd.f32 %v922, %v1051
      %v1056 = vadd.f32 %v923, %v1052
      %v1057 = vadd.f32 %v924, %v1053
      %v1058 = vadd.f32 %v925, %v1054
      %v1059 = vld [vmem:[%s221 + $0xa] sm:$0x1]
      %v1060 = vlaneseq
      %v1061 = vshrl.u32 %v1060, 7
      %v1062 = vsub.s32 0, %v1061
      %v1063 = vrot.slane %v1059, %v1062
      %v1064 = vmul.f32 %v1063, %v975
      %v1065 = vmul.f32 %v1063, %v976
      %v1066 = vmul.f32 %v1063, %v977
      %v1067 = vmul.f32 %v1063, %v978
      %v1068 = vadd.f32 %v1016, %v1064
      %v1069 = vadd.f32 %v1017, %v1065
      %v1070 = vadd.f32 %v1018, %v1066
      %v1071 = vadd.f32 %v1019, %v1067
      %v1072 = vld [vmem:[%s363 + $0xa] sm:$0x1]
      %v1073 = vlaneseq
      %v1074 = vshrl.u32 %v1073, 7
      %v1075 = vsub.s32 0, %v1074
      %v1076 = vrot.slane %v1072, %v1075
      %v1077 = vmul.f32 %v1076, %v975
      %v1078 = vmul.f32 %v1076, %v976
      %v1079 = vmul.f32 %v1076, %v977
      %v1080 = vmul.f32 %v1076, %v978
      %v1081 = vadd.f32 %v1029, %v1077
      %v1082 = vadd.f32 %v1030, %v1078
      %v1083 = vadd.f32 %v1031, %v1079
      %v1084 = vadd.f32 %v1032, %v1080
      %v1085 = vld [vmem:[%s377 + $0xa] sm:$0x1]
      %v1086 = vlaneseq
      %v1087 = vshrl.u32 %v1086, 7
      %v1088 = vsub.s32 0, %v1087
      %v1089 = vrot.slane %v1085, %v1088
      %v1090 = vmul.f32 %v1089, %v975
      %v1091 = vmul.f32 %v1089, %v976
      %v1092 = vmul.f32 %v1089, %v977
      %v1093 = vmul.f32 %v1089, %v978
      %v1094 = vadd.f32 %v1042, %v1090
      %v1095 = vadd.f32 %v1043, %v1091
      %v1096 = vadd.f32 %v1044, %v1092
      %v1097 = vadd.f32 %v1045, %v1093
      %v1098 = vld [vmem:[%s391 + $0xa] sm:$0x1]
      %v1099 = vlaneseq
      %v1100 = vshrl.u32 %v1099, 7
      %v1101 = vsub.s32 0, %v1100
      %v1102 = vrot.slane %v1098, %v1101
      %v1103 = vmul.f32 %v1102, %v975
      %v1104 = vmul.f32 %v1102, %v976
      %v1105 = vmul.f32 %v1102, %v977
      %v1106 = vmul.f32 %v1102, %v978
      %v1107 = vadd.f32 %v1055, %v1103
      %v1108 = vadd.f32 %v1056, %v1104
      %v1109 = vadd.f32 %v1057, %v1105
      %v1110 = vadd.f32 %v1058, %v1106
      %1111 = vrot.lane.b32.xlu0 %v975, 127
      %v1112 = vpop.permute.xlu0 %1111
      %1113 = vrot.lane.b32.xlu0 %v976, 127
      %v1114 = vpop.permute.xlu0 %1113
      %1115 = vrot.lane.b32.xlu0 %v977, 127
      %v1116 = vpop.permute.xlu0 %1115
      %1117 = vrot.lane.b32.xlu0 %v978, 127
      %v1118 = vpop.permute.xlu0 %1117
      %v1123 = vsel %vm469, %v1112, 0.0
      %v1124 = vsel %vm469, %v1114, 0.0
      %v1125 = vsel %vm469, %v1116, 0.0
      %v1126 = vsel %vm469, %v1118, 0.0
      %v1127 = vsel %vm246, 0.0, %v1123
      %v1128 = vsel %vm246, 0.0, %v1124
      %v1129 = vsel %vm246, 0.0, %v1125
      %v1130 = vsel %vm246, 0.0, %v1126
      %v1131 = vld [vmem:[%s221 + $0xb] sm:$0x1]
      %v1132 = vlaneseq
      %v1133 = vshrl.u32 %v1132, 7
      %v1134 = vsub.s32 0, %v1133
      %v1135 = vrot.slane %v1131, %v1134
      %v1136 = vmul.f32 %v1135, %v1127
      %v1137 = vmul.f32 %v1135, %v1128
      %v1138 = vmul.f32 %v1135, %v1129
      %v1139 = vmul.f32 %v1135, %v1130
      %v1140 = vadd.f32 %v1068, %v1136
      %v1141 = vadd.f32 %v1069, %v1137
      %v1142 = vadd.f32 %v1070, %v1138
      %v1143 = vadd.f32 %v1071, %v1139
      %v1144 = vld [vmem:[%s363 + $0xb] sm:$0x1]
      %v1145 = vlaneseq
      %v1146 = vshrl.u32 %v1145, 7
      %v1147 = vsub.s32 0, %v1146
      %v1148 = vrot.slane %v1144, %v1147
      %v1149 = vmul.f32 %v1148, %v1127
      %v1150 = vmul.f32 %v1148, %v1128
      %v1151 = vmul.f32 %v1148, %v1129
      %v1152 = vmul.f32 %v1148, %v1130
      %v1153 = vadd.f32 %v1081, %v1149
      %v1154 = vadd.f32 %v1082, %v1150
      %v1155 = vadd.f32 %v1083, %v1151
      %v1156 = vadd.f32 %v1084, %v1152
      %v1157 = vld [vmem:[%s377 + $0xb] sm:$0x1]
      %v1158 = vlaneseq
      %v1159 = vshrl.u32 %v1158, 7
      %v1160 = vsub.s32 0, %v1159
      %v1161 = vrot.slane %v1157, %v1160
      %v1162 = vmul.f32 %v1161, %v1127
      %v1163 = vmul.f32 %v1161, %v1128
      %v1164 = vmul.f32 %v1161, %v1129
      %v1165 = vmul.f32 %v1161, %v1130
      %v1166 = vadd.f32 %v1094, %v1162
      %v1167 = vadd.f32 %v1095, %v1163
      %v1168 = vadd.f32 %v1096, %v1164
      %v1169 = vadd.f32 %v1097, %v1165
      %v1170 = vld [vmem:[%s391 + $0xb] sm:$0x1]
      %v1171 = vlaneseq
      %v1172 = vshrl.u32 %v1171, 7
      %v1173 = vsub.s32 0, %v1172
      %v1174 = vrot.slane %v1170, %v1173
      %v1175 = vmul.f32 %v1174, %v1127
      %v1176 = vmul.f32 %v1174, %v1128
      %v1177 = vmul.f32 %v1174, %v1129
      %v1178 = vmul.f32 %v1174, %v1130
      %v1179 = vadd.f32 %v1107, %v1175
      %v1180 = vadd.f32 %v1108, %v1176
      %v1181 = vadd.f32 %v1109, %v1177
      %v1182 = vadd.f32 %v1110, %v1178
      %1183 = vrot.lane.b32.xlu0 %v927, 1
      %v1184 = vpop.permute.xlu0 %1183
      %1185 = vrot.lane.b32.xlu0 %v928, 1
      %v1186 = vpop.permute.xlu0 %1185
      %1187 = vrot.lane.b32.xlu0 %v929, 1
      %v1188 = vpop.permute.xlu0 %1187
      %1189 = vrot.lane.b32.xlu0 %v930, 1
      %v1190 = vpop.permute.xlu0 %1189
      %v1195 = vsel %vm341, 0.0, %v1184
      %v1196 = vsel %vm341, 0.0, %v1186
      %v1197 = vsel %vm341, 0.0, %v1188
      %v1198 = vsel %vm341, 0.0, %v1190
      %v1199 = vsel %vm243, 0.0, %v1195
      %v1200 = vsel %vm243, 0.0, %v1196
      %v1201 = vsel %vm243, 0.0, %v1197
      %v1202 = vsel %vm243, 0.0, %v1198
      %v1203 = vld [vmem:[%s221 + $0xc] sm:$0x1]
      %v1204 = vlaneseq
      %v1205 = vshrl.u32 %v1204, 7
      %v1206 = vsub.s32 0, %v1205
      %v1207 = vrot.slane %v1203, %v1206
      %v1208 = vmul.f32 %v1207, %v1199
      %v1209 = vmul.f32 %v1207, %v1200
      %v1210 = vmul.f32 %v1207, %v1201
      %v1211 = vmul.f32 %v1207, %v1202
      %v1212 = vadd.f32 %v1140, %v1208
      %v1213 = vadd.f32 %v1141, %v1209
      %v1214 = vadd.f32 %v1142, %v1210
      %v1215 = vadd.f32 %v1143, %v1211
      %v1216 = vld [vmem:[%s363 + $0xc] sm:$0x1]
      %v1217 = vlaneseq
      %v1218 = vshrl.u32 %v1217, 7
      %v1219 = vsub.s32 0, %v1218
      %v1220 = vrot.slane %v1216, %v1219
      %v1221 = vmul.f32 %v1220, %v1199
      %v1222 = vmul.f32 %v1220, %v1200
      %v1223 = vmul.f32 %v1220, %v1201
      %v1224 = vmul.f32 %v1220, %v1202
      %v1225 = vadd.f32 %v1153, %v1221
      %v1226 = vadd.f32 %v1154, %v1222
      %v1227 = vadd.f32 %v1155, %v1223
      %v1228 = vadd.f32 %v1156, %v1224
      %v1229 = vld [vmem:[%s377 + $0xc] sm:$0x1]
      %v1230 = vlaneseq
      %v1231 = vshrl.u32 %v1230, 7
      %v1232 = vsub.s32 0, %v1231
      %v1233 = vrot.slane %v1229, %v1232
      %v1234 = vmul.f32 %v1233, %v1199
      %v1235 = vmul.f32 %v1233, %v1200
      %v1236 = vmul.f32 %v1233, %v1201
      %v1237 = vmul.f32 %v1233, %v1202
      %v1238 = vadd.f32 %v1166, %v1234
      %v1239 = vadd.f32 %v1167, %v1235
      %v1240 = vadd.f32 %v1168, %v1236
      %v1241 = vadd.f32 %v1169, %v1237
      %v1242 = vld [vmem:[%s391 + $0xc] sm:$0x1]
      %v1243 = vlaneseq
      %v1244 = vshrl.u32 %v1243, 7
      %v1245 = vsub.s32 0, %v1244
      %v1246 = vrot.slane %v1242, %v1245
      %v1247 = vmul.f32 %v1246, %v1199
      %v1248 = vmul.f32 %v1246, %v1200
      %v1249 = vmul.f32 %v1246, %v1201
      %v1250 = vmul.f32 %v1246, %v1202
      %v1251 = vadd.f32 %v1179, %v1247
      %v1252 = vadd.f32 %v1180, %v1248
      %v1253 = vadd.f32 %v1181, %v1249
      %v1254 = vadd.f32 %v1182, %v1250
      %v1255 = vld [vmem:[%s221 + $0xd] sm:$0x1]
      %v1256 = vlaneseq
      %v1257 = vshrl.u32 %v1256, 7
      %v1258 = vsub.s32 0, %v1257
      %v1259 = vrot.slane %v1255, %v1258
      %v1260 = vmul.f32 %v1259, %v927
      %v1261 = vmul.f32 %v1259, %v928
      %v1262 = vmul.f32 %v1259, %v929
      %v1263 = vmul.f32 %v1259, %v930
      %v1264 = vadd.f32 %v1212, %v1260
      %v1265 = vadd.f32 %v1213, %v1261
      %v1266 = vadd.f32 %v1214, %v1262
      %v1267 = vadd.f32 %v1215, %v1263
      %v1268 = vld [vmem:[%s363 + $0xd] sm:$0x1]
      %v1269 = vlaneseq
      %v1270 = vshrl.u32 %v1269, 7
      %v1271 = vsub.s32 0, %v1270
      %v1272 = vrot.slane %v1268, %v1271
      %v1273 = vmul.f32 %v1272, %v927
      %v1274 = vmul.f32 %v1272, %v928
      %v1275 = vmul.f32 %v1272, %v929
      %v1276 = vmul.f32 %v1272, %v930
      %v1277 = vadd.f32 %v1225, %v1273
      %v1278 = vadd.f32 %v1226, %v1274
      %v1279 = vadd.f32 %v1227, %v1275
      %v1280 = vadd.f32 %v1228, %v1276
      %v1281 = vld [vmem:[%s377 + $0xd] sm:$0x1]
      %v1282 = vlaneseq
      %v1283 = vshrl.u32 %v1282, 7
      %v1284 = vsub.s32 0, %v1283
      %v1285 = vrot.slane %v1281, %v1284
      %v1286 = vmul.f32 %v1285, %v927
      %v1287 = vmul.f32 %v1285, %v928
      %v1288 = vmul.f32 %v1285, %v929
      %v1289 = vmul.f32 %v1285, %v930
      %v1290 = vadd.f32 %v1238, %v1286
      %v1291 = vadd.f32 %v1239, %v1287
      %v1292 = vadd.f32 %v1240, %v1288
      %v1293 = vadd.f32 %v1241, %v1289
      %v1294 = vld [vmem:[%s391 + $0xd] sm:$0x1]
      %v1295 = vlaneseq
      %v1296 = vshrl.u32 %v1295, 7
      %v1297 = vsub.s32 0, %v1296
      %v1298 = vrot.slane %v1294, %v1297
      %v1299 = vmul.f32 %v1298, %v927
      %v1300 = vmul.f32 %v1298, %v928
      %v1301 = vmul.f32 %v1298, %v929
      %v1302 = vmul.f32 %v1298, %v930
      %v1303 = vadd.f32 %v1251, %v1299
      %v1304 = vadd.f32 %v1252, %v1300
      %v1305 = vadd.f32 %v1253, %v1301
      %v1306 = vadd.f32 %v1254, %v1302
      %1307 = vrot.lane.b32.xlu0 %v927, 127
      %v1308 = vpop.permute.xlu0 %1307
      %1309 = vrot.lane.b32.xlu0 %v928, 127
      %v1310 = vpop.permute.xlu0 %1309
      %1311 = vrot.lane.b32.xlu0 %v929, 127
      %v1312 = vpop.permute.xlu0 %1311
      %1313 = vrot.lane.b32.xlu0 %v930, 127
      %v1314 = vpop.permute.xlu0 %1313
      %v1319 = vsel %vm469, %v1308, 0.0
      %v1320 = vsel %vm469, %v1310, 0.0
      %v1321 = vsel %vm469, %v1312, 0.0
      %v1322 = vsel %vm469, %v1314, 0.0
      %v1323 = vsel %vm246, 0.0, %v1319
      %v1324 = vsel %vm246, 0.0, %v1320
      %v1325 = vsel %vm246, 0.0, %v1321
      %v1326 = vsel %vm246, 0.0, %v1322
      %v1327 = vld [vmem:[%s221 + $0xe] sm:$0x1]
      %v1328 = vlaneseq
      %v1329 = vshrl.u32 %v1328, 7
      %v1330 = vsub.s32 0, %v1329
      %v1331 = vrot.slane %v1327, %v1330
      %v1332 = vmul.f32 %v1331, %v1323
      %v1333 = vmul.f32 %v1331, %v1324
      %v1334 = vmul.f32 %v1331, %v1325
      %v1335 = vmul.f32 %v1331, %v1326
      %v1336 = vadd.f32 %v1264, %v1332
      %v1337 = vadd.f32 %v1265, %v1333
      %v1338 = vadd.f32 %v1266, %v1334
      %v1339 = vadd.f32 %v1267, %v1335
      %v1340 = vld [vmem:[%s363 + $0xe] sm:$0x1]
      %v1341 = vlaneseq
      %v1342 = vshrl.u32 %v1341, 7
      %v1343 = vsub.s32 0, %v1342
      %v1344 = vrot.slane %v1340, %v1343
      %v1345 = vmul.f32 %v1344, %v1323
      %v1346 = vmul.f32 %v1344, %v1324
      %v1347 = vmul.f32 %v1344, %v1325
      %v1348 = vmul.f32 %v1344, %v1326
      %v1349 = vadd.f32 %v1277, %v1345
      %v1350 = vadd.f32 %v1278, %v1346
      %v1351 = vadd.f32 %v1279, %v1347
      %v1352 = vadd.f32 %v1280, %v1348
      %v1353 = vld [vmem:[%s377 + $0xe] sm:$0x1]
      %v1354 = vlaneseq
      %v1355 = vshrl.u32 %v1354, 7
      %v1356 = vsub.s32 0, %v1355
      %v1357 = vrot.slane %v1353, %v1356
      %v1358 = vmul.f32 %v1357, %v1323
      %v1359 = vmul.f32 %v1357, %v1324
      %v1360 = vmul.f32 %v1357, %v1325
      %v1361 = vmul.f32 %v1357, %v1326
      %v1362 = vadd.f32 %v1290, %v1358
      %v1363 = vadd.f32 %v1291, %v1359
      %v1364 = vadd.f32 %v1292, %v1360
      %v1365 = vadd.f32 %v1293, %v1361
      %v1366 = vld [vmem:[%s391 + $0xe] sm:$0x1]
      %v1367 = vlaneseq
      %v1368 = vshrl.u32 %v1367, 7
      %v1369 = vsub.s32 0, %v1368
      %v1370 = vrot.slane %v1366, %v1369
      %v1371 = vmul.f32 %v1370, %v1323
      %v1372 = vmul.f32 %v1370, %v1324
      %v1373 = vmul.f32 %v1370, %v1325
      %v1374 = vmul.f32 %v1370, %v1326
      %v1375 = vadd.f32 %v1303, %v1371
      %v1376 = vadd.f32 %v1304, %v1372
      %v1377 = vadd.f32 %v1305, %v1373
      %v1378 = vadd.f32 %v1306, %v1374
      %1383 = vrot.lane.b32.xlu0 %v979, 1
      %v1384 = vpop.permute.xlu0 %1383
      %1385 = vrot.lane.b32.xlu0 %v980, 1
      %v1386 = vpop.permute.xlu0 %1385
      %1387 = vrot.lane.b32.xlu0 %v981, 1
      %v1388 = vpop.permute.xlu0 %1387
      %1389 = vrot.lane.b32.xlu0 %v982, 1
      %v1390 = vpop.permute.xlu0 %1389
      %v1395 = vsel %vm341, 0.0, %v1384
      %v1396 = vsel %vm341, 0.0, %v1386
      %v1397 = vsel %vm341, 0.0, %v1388
      %v1398 = vsel %vm341, 0.0, %v1390
      %v1399 = vsel %vm243, 0.0, %v1395
      %v1400 = vsel %vm243, 0.0, %v1396
      %v1401 = vsel %vm243, 0.0, %v1397
      %v1402 = vsel %vm243, 0.0, %v1398
      %v1403 = vld [vmem:[%s221 + $0xf] sm:$0x1]
      %v1404 = vlaneseq
      %v1405 = vshrl.u32 %v1404, 7
      %v1406 = vsub.s32 0, %v1405
      %v1407 = vrot.slane %v1403, %v1406
      %v1408 = vmul.f32 %v1407, %v1399
      %v1409 = vmul.f32 %v1407, %v1400
      %v1410 = vmul.f32 %v1407, %v1401
      %v1411 = vmul.f32 %v1407, %v1402
      %v1412 = vadd.f32 %v1336, %v1408
      %v1413 = vadd.f32 %v1337, %v1409
      %v1414 = vadd.f32 %v1338, %v1410
      %v1415 = vadd.f32 %v1339, %v1411
      %v1416 = vld [vmem:[%s363 + $0xf] sm:$0x1]
      %v1417 = vlaneseq
      %v1418 = vshrl.u32 %v1417, 7
      %v1419 = vsub.s32 0, %v1418
      %v1420 = vrot.slane %v1416, %v1419
      %v1421 = vmul.f32 %v1420, %v1399
      %v1422 = vmul.f32 %v1420, %v1400
      %v1423 = vmul.f32 %v1420, %v1401
      %v1424 = vmul.f32 %v1420, %v1402
      %v1425 = vadd.f32 %v1349, %v1421
      %v1426 = vadd.f32 %v1350, %v1422
      %v1427 = vadd.f32 %v1351, %v1423
      %v1428 = vadd.f32 %v1352, %v1424
      %v1429 = vld [vmem:[%s377 + $0xf] sm:$0x1]
      %v1430 = vlaneseq
      %v1431 = vshrl.u32 %v1430, 7
      %v1432 = vsub.s32 0, %v1431
      %v1433 = vrot.slane %v1429, %v1432
      %v1434 = vmul.f32 %v1433, %v1399
      %v1435 = vmul.f32 %v1433, %v1400
      %v1436 = vmul.f32 %v1433, %v1401
      %v1437 = vmul.f32 %v1433, %v1402
      %v1438 = vadd.f32 %v1362, %v1434
      %v1439 = vadd.f32 %v1363, %v1435
      %v1440 = vadd.f32 %v1364, %v1436
      %v1441 = vadd.f32 %v1365, %v1437
      %v1442 = vld [vmem:[%s391 + $0xf] sm:$0x1]
      %v1443 = vlaneseq
      %v1444 = vshrl.u32 %v1443, 7
      %v1445 = vsub.s32 0, %v1444
      %v1446 = vrot.slane %v1442, %v1445
      %v1447 = vmul.f32 %v1446, %v1399
      %v1448 = vmul.f32 %v1446, %v1400
      %v1449 = vmul.f32 %v1446, %v1401
      %v1450 = vmul.f32 %v1446, %v1402
      %v1451 = vadd.f32 %v1375, %v1447
      %v1452 = vadd.f32 %v1376, %v1448
      %v1453 = vadd.f32 %v1377, %v1449
      %v1454 = vadd.f32 %v1378, %v1450
      %v1455 = vld [vmem:[%s221 + $0x10] sm:$0x1]
      %v1456 = vlaneseq
      %v1457 = vshrl.u32 %v1456, 7
      %v1458 = vsub.s32 0, %v1457
      %v1459 = vrot.slane %v1455, %v1458
      %v1460 = vmul.f32 %v1459, %v979
      %v1461 = vmul.f32 %v1459, %v980
      %v1462 = vmul.f32 %v1459, %v981
      %v1463 = vmul.f32 %v1459, %v982
      %v1464 = vadd.f32 %v1412, %v1460
      %v1465 = vadd.f32 %v1413, %v1461
      %v1466 = vadd.f32 %v1414, %v1462
      %v1467 = vadd.f32 %v1415, %v1463
      %v1468 = vld [vmem:[%s363 + $0x10] sm:$0x1]
      %v1469 = vlaneseq
      %v1470 = vshrl.u32 %v1469, 7
      %v1471 = vsub.s32 0, %v1470
      %v1472 = vrot.slane %v1468, %v1471
      %v1473 = vmul.f32 %v1472, %v979
      %v1474 = vmul.f32 %v1472, %v980
      %v1475 = vmul.f32 %v1472, %v981
      %v1476 = vmul.f32 %v1472, %v982
      %v1477 = vadd.f32 %v1425, %v1473
      %v1478 = vadd.f32 %v1426, %v1474
      %v1479 = vadd.f32 %v1427, %v1475
      %v1480 = vadd.f32 %v1428, %v1476
      %v1481 = vld [vmem:[%s377 + $0x10] sm:$0x1]
      %v1482 = vlaneseq
      %v1483 = vshrl.u32 %v1482, 7
      %v1484 = vsub.s32 0, %v1483
      %v1485 = vrot.slane %v1481, %v1484
      %v1486 = vmul.f32 %v1485, %v979
      %v1487 = vmul.f32 %v1485, %v980
      %v1488 = vmul.f32 %v1485, %v981
      %v1489 = vmul.f32 %v1485, %v982
      %v1490 = vadd.f32 %v1438, %v1486
      %v1491 = vadd.f32 %v1439, %v1487
      %v1492 = vadd.f32 %v1440, %v1488
      %v1493 = vadd.f32 %v1441, %v1489
      %v1494 = vld [vmem:[%s391 + $0x10] sm:$0x1]
      %v1495 = vlaneseq
      %v1496 = vshrl.u32 %v1495, 7
      %v1497 = vsub.s32 0, %v1496
      %v1498 = vrot.slane %v1494, %v1497
      %v1499 = vmul.f32 %v1498, %v979
      %v1500 = vmul.f32 %v1498, %v980
      %v1501 = vmul.f32 %v1498, %v981
      %v1502 = vmul.f32 %v1498, %v982
      %v1503 = vadd.f32 %v1451, %v1499
      %v1504 = vadd.f32 %v1452, %v1500
      %v1505 = vadd.f32 %v1453, %v1501
      %v1506 = vadd.f32 %v1454, %v1502
      %1507 = vrot.lane.b32.xlu0 %v979, 127
      %v1508 = vpop.permute.xlu0 %1507
      %1509 = vrot.lane.b32.xlu0 %v980, 127
      %v1510 = vpop.permute.xlu0 %1509
      %1511 = vrot.lane.b32.xlu0 %v981, 127
      %v1512 = vpop.permute.xlu0 %1511
      %1513 = vrot.lane.b32.xlu0 %v982, 127
      %v1514 = vpop.permute.xlu0 %1513
      %v1519 = vsel %vm469, %v1508, 0.0
      %v1520 = vsel %vm469, %v1510, 0.0
      %v1521 = vsel %vm469, %v1512, 0.0
      %v1522 = vsel %vm469, %v1514, 0.0
      %v1523 = vsel %vm246, 0.0, %v1519
      %v1524 = vsel %vm246, 0.0, %v1520
      %v1525 = vsel %vm246, 0.0, %v1521
      %v1526 = vsel %vm246, 0.0, %v1522
      %v1527 = vld [vmem:[%s221 + $0x11] sm:$0x1]
      %v1528 = vlaneseq
      %v1529 = vshrl.u32 %v1528, 7
      %v1530 = vsub.s32 0, %v1529
      %v1531 = vrot.slane %v1527, %v1530
      %v1532 = vmul.f32 %v1531, %v1523
      %v1533 = vmul.f32 %v1531, %v1524
      %v1534 = vmul.f32 %v1531, %v1525
      %v1535 = vmul.f32 %v1531, %v1526
      %v1536 = vadd.f32 %v1464, %v1532
      %v1537 = vadd.f32 %v1465, %v1533
      %v1538 = vadd.f32 %v1466, %v1534
      %v1539 = vadd.f32 %v1467, %v1535
      %v1540 = vld [vmem:[%s363 + $0x11] sm:$0x1]
      %v1541 = vlaneseq
      %v1542 = vshrl.u32 %v1541, 7
      %v1543 = vsub.s32 0, %v1542
      %v1544 = vrot.slane %v1540, %v1543
      %v1545 = vmul.f32 %v1544, %v1523
      %v1546 = vmul.f32 %v1544, %v1524
      %v1547 = vmul.f32 %v1544, %v1525
      %v1548 = vmul.f32 %v1544, %v1526
      %v1549 = vadd.f32 %v1477, %v1545
      %v1550 = vadd.f32 %v1478, %v1546
      %v1551 = vadd.f32 %v1479, %v1547
      %v1552 = vadd.f32 %v1480, %v1548
      %v1553 = vld [vmem:[%s377 + $0x11] sm:$0x1]
      %v1554 = vlaneseq
      %v1555 = vshrl.u32 %v1554, 7
      %v1556 = vsub.s32 0, %v1555
      %v1557 = vrot.slane %v1553, %v1556
      %v1558 = vmul.f32 %v1557, %v1523
      %v1559 = vmul.f32 %v1557, %v1524
      %v1560 = vmul.f32 %v1557, %v1525
      %v1561 = vmul.f32 %v1557, %v1526
      %v1562 = vadd.f32 %v1490, %v1558
      %v1563 = vadd.f32 %v1491, %v1559
      %v1564 = vadd.f32 %v1492, %v1560
      %v1565 = vadd.f32 %v1493, %v1561
      %v1566 = vld [vmem:[%s391 + $0x11] sm:$0x1]
      %v1567 = vlaneseq
      %v1568 = vshrl.u32 %v1567, 7
      %v1569 = vsub.s32 0, %v1568
      %v1570 = vrot.slane %v1566, %v1569
      %v1571 = vmul.f32 %v1570, %v1523
      %v1572 = vmul.f32 %v1570, %v1524
      %v1573 = vmul.f32 %v1570, %v1525
      %v1574 = vmul.f32 %v1570, %v1526
      %v1575 = vadd.f32 %v1503, %v1571
      %v1576 = vadd.f32 %v1504, %v1572
      %v1577 = vadd.f32 %v1505, %v1573
      %v1578 = vadd.f32 %v1506, %v1574
      %s1579 = scalar_lea.vmem %s215, 64
      %v1580 = vld [vmem:[%s1579] sm:$0xff]
      %v1581 = vld [vmem:[%s1579 + $0x8] sm:$0xff]
      %v1582 = vld [vmem:[%s1579 + $0x10] sm:$0xff]
      %v1583 = vld [vmem:[%s1579 + $0x18] sm:$0xff]
      %1588 = vrot.lane.b32.xlu0 %v1580, 64
      %v1589 = vpop.permute.xlu0 %1588
      %1590 = vrot.lane.b32.xlu0 %v1581, 64
      %v1591 = vpop.permute.xlu0 %1590
      %1592 = vrot.lane.b32.xlu0 %v1582, 64
      %v1593 = vpop.permute.xlu0 %1592
      %1594 = vrot.lane.b32.xlu0 %v1583, 64
      %v1595 = vpop.permute.xlu0 %1594
      %v1604 = vrot.slane %v1589, 1
      %v1605 = vrot.slane %v1591, 1
      %v1606 = vsel %vm291, %v1604, %v1605
      %v1607 = vrot.slane %v1593, 1
      %v1608 = vsel %vm291, %v1605, %v1607
      %v1609 = vrot.slane %v1595, 1
      %v1610 = vsel %vm291, %v1607, %v1609
      %v1615 = vsel %vm291, %v1609, 0.0
      %v1616 = vrot.slane %v1589, 7
      %v1617 = vrot.slane %v1591, 7
      %v1618 = vsel %vm304, %v1616, %v1617
      %v1619 = vrot.slane %v1593, 7
      %v1620 = vsel %vm304, %v1617, %v1619
      %v1621 = vrot.slane %v1595, 7
      %v1622 = vsel %vm304, %v1619, %v1621
      %v1627 = vsel %vm304, 0.0, %v1616
      %v1628 = vsel %vm240, %v1627, %v1589
      %v1629 = vsel %vm240, %v1618, %v1591
      %v1630 = vsel %vm240, %v1620, %v1593
      %v1631 = vsel %vm240, %v1622, %v1595
      %v1632 = vsel %vm240, %v1589, %v1606
      %v1633 = vsel %vm240, %v1591, %v1608
      %v1634 = vsel %vm240, %v1593, %v1610
      %v1635 = vsel %vm240, %v1595, %v1615
      %1640 = vrot.lane.b32.xlu0 %v1628, 1
      %v1641 = vpop.permute.xlu0 %1640
      %1642 = vrot.lane.b32.xlu0 %v1629, 1
      %v1643 = vpop.permute.xlu0 %1642
      %1644 = vrot.lane.b32.xlu0 %v1630, 1
      %v1645 = vpop.permute.xlu0 %1644
      %1646 = vrot.lane.b32.xlu0 %v1631, 1
      %v1647 = vpop.permute.xlu0 %1646
      %v1652 = vsel %vm341, 0.0, %v1641
      %v1653 = vsel %vm341, 0.0, %v1643
      %v1654 = vsel %vm341, 0.0, %v1645
      %v1655 = vsel %vm341, 0.0, %v1647
      %v1656 = vsel %vm243, 0.0, %v1652
      %v1657 = vsel %vm243, 0.0, %v1653
      %v1658 = vsel %vm243, 0.0, %v1654
      %v1659 = vsel %vm243, 0.0, %v1655
      %v1660 = vld [vmem:[%s221 + $0x12] sm:$0x1]
      %v1661 = vlaneseq
      %v1662 = vshrl.u32 %v1661, 7
      %v1663 = vsub.s32 0, %v1662
      %v1664 = vrot.slane %v1660, %v1663
      %v1665 = vmul.f32 %v1664, %v1656
      %v1666 = vmul.f32 %v1664, %v1657
      %v1667 = vmul.f32 %v1664, %v1658
      %v1668 = vmul.f32 %v1664, %v1659
      %v1669 = vadd.f32 %v1536, %v1665
      %v1670 = vadd.f32 %v1537, %v1666
      %v1671 = vadd.f32 %v1538, %v1667
      %v1672 = vadd.f32 %v1539, %v1668
      %v1673 = vld [vmem:[%s363 + $0x12] sm:$0x1]
      %v1674 = vlaneseq
      %v1675 = vshrl.u32 %v1674, 7
      %v1676 = vsub.s32 0, %v1675
      %v1677 = vrot.slane %v1673, %v1676
      %v1678 = vmul.f32 %v1677, %v1656
      %v1679 = vmul.f32 %v1677, %v1657
      %v1680 = vmul.f32 %v1677, %v1658
      %v1681 = vmul.f32 %v1677, %v1659
      %v1682 = vadd.f32 %v1549, %v1678
      %v1683 = vadd.f32 %v1550, %v1679
      %v1684 = vadd.f32 %v1551, %v1680
      %v1685 = vadd.f32 %v1552, %v1681
      %v1686 = vld [vmem:[%s377 + $0x12] sm:$0x1]
      %v1687 = vlaneseq
      %v1688 = vshrl.u32 %v1687, 7
      %v1689 = vsub.s32 0, %v1688
      %v1690 = vrot.slane %v1686, %v1689
      %v1691 = vmul.f32 %v1690, %v1656
      %v1692 = vmul.f32 %v1690, %v1657
      %v1693 = vmul.f32 %v1690, %v1658
      %v1694 = vmul.f32 %v1690, %v1659
      %v1695 = vadd.f32 %v1562, %v1691
      %v1696 = vadd.f32 %v1563, %v1692
      %v1697 = vadd.f32 %v1564, %v1693
      %v1698 = vadd.f32 %v1565, %v1694
      %v1699 = vld [vmem:[%s391 + $0x12] sm:$0x1]
      %v1700 = vlaneseq
      %v1701 = vshrl.u32 %v1700, 7
      %v1702 = vsub.s32 0, %v1701
      %v1703 = vrot.slane %v1699, %v1702
      %v1704 = vmul.f32 %v1703, %v1656
      %v1705 = vmul.f32 %v1703, %v1657
      %v1706 = vmul.f32 %v1703, %v1658
      %v1707 = vmul.f32 %v1703, %v1659
      %v1708 = vadd.f32 %v1575, %v1704
      %v1709 = vadd.f32 %v1576, %v1705
      %v1710 = vadd.f32 %v1577, %v1706
      %v1711 = vadd.f32 %v1578, %v1707
      %v1712 = vld [vmem:[%s221 + $0x13] sm:$0x1]
      %v1713 = vlaneseq
      %v1714 = vshrl.u32 %v1713, 7
      %v1715 = vsub.s32 0, %v1714
      %v1716 = vrot.slane %v1712, %v1715
      %v1717 = vmul.f32 %v1716, %v1628
      %v1718 = vmul.f32 %v1716, %v1629
      %v1719 = vmul.f32 %v1716, %v1630
      %v1720 = vmul.f32 %v1716, %v1631
      %v1721 = vadd.f32 %v1669, %v1717
      %v1722 = vadd.f32 %v1670, %v1718
      %v1723 = vadd.f32 %v1671, %v1719
      %v1724 = vadd.f32 %v1672, %v1720
      %v1725 = vld [vmem:[%s363 + $0x13] sm:$0x1]
      %v1726 = vlaneseq
      %v1727 = vshrl.u32 %v1726, 7
      %v1728 = vsub.s32 0, %v1727
      %v1729 = vrot.slane %v1725, %v1728
      %v1730 = vmul.f32 %v1729, %v1628
      %v1731 = vmul.f32 %v1729, %v1629
      %v1732 = vmul.f32 %v1729, %v1630
      %v1733 = vmul.f32 %v1729, %v1631
      %v1734 = vadd.f32 %v1682, %v1730
      %v1735 = vadd.f32 %v1683, %v1731
      %v1736 = vadd.f32 %v1684, %v1732
      %v1737 = vadd.f32 %v1685, %v1733
      %v1738 = vld [vmem:[%s377 + $0x13] sm:$0x1]
      %v1739 = vlaneseq
      %v1740 = vshrl.u32 %v1739, 7
      %v1741 = vsub.s32 0, %v1740
      %v1742 = vrot.slane %v1738, %v1741
      %v1743 = vmul.f32 %v1742, %v1628
      %v1744 = vmul.f32 %v1742, %v1629
      %v1745 = vmul.f32 %v1742, %v1630
      %v1746 = vmul.f32 %v1742, %v1631
      %v1747 = vadd.f32 %v1695, %v1743
      %v1748 = vadd.f32 %v1696, %v1744
      %v1749 = vadd.f32 %v1697, %v1745
      %v1750 = vadd.f32 %v1698, %v1746
      %v1751 = vld [vmem:[%s391 + $0x13] sm:$0x1]
      %v1752 = vlaneseq
      %v1753 = vshrl.u32 %v1752, 7
      %v1754 = vsub.s32 0, %v1753
      %v1755 = vrot.slane %v1751, %v1754
      %v1756 = vmul.f32 %v1755, %v1628
      %v1757 = vmul.f32 %v1755, %v1629
      %v1758 = vmul.f32 %v1755, %v1630
      %v1759 = vmul.f32 %v1755, %v1631
      %v1760 = vadd.f32 %v1708, %v1756
      %v1761 = vadd.f32 %v1709, %v1757
      %v1762 = vadd.f32 %v1710, %v1758
      %v1763 = vadd.f32 %v1711, %v1759
      %1764 = vrot.lane.b32.xlu0 %v1628, 127
      %v1765 = vpop.permute.xlu0 %1764
      %1766 = vrot.lane.b32.xlu0 %v1629, 127
      %v1767 = vpop.permute.xlu0 %1766
      %1768 = vrot.lane.b32.xlu0 %v1630, 127
      %v1769 = vpop.permute.xlu0 %1768
      %1770 = vrot.lane.b32.xlu0 %v1631, 127
      %v1771 = vpop.permute.xlu0 %1770
      %v1776 = vsel %vm469, %v1765, 0.0
      %v1777 = vsel %vm469, %v1767, 0.0
      %v1778 = vsel %vm469, %v1769, 0.0
      %v1779 = vsel %vm469, %v1771, 0.0
      %v1780 = vsel %vm246, 0.0, %v1776
      %v1781 = vsel %vm246, 0.0, %v1777
      %v1782 = vsel %vm246, 0.0, %v1778
      %v1783 = vsel %vm246, 0.0, %v1779
      %v1784 = vld [vmem:[%s221 + $0x14] sm:$0x1]
      %v1785 = vlaneseq
      %v1786 = vshrl.u32 %v1785, 7
      %v1787 = vsub.s32 0, %v1786
      %v1788 = vrot.slane %v1784, %v1787
      %v1789 = vmul.f32 %v1788, %v1780
      %v1790 = vmul.f32 %v1788, %v1781
      %v1791 = vmul.f32 %v1788, %v1782
      %v1792 = vmul.f32 %v1788, %v1783
      %v1793 = vadd.f32 %v1721, %v1789
      %v1794 = vadd.f32 %v1722, %v1790
      %v1795 = vadd.f32 %v1723, %v1791
      %v1796 = vadd.f32 %v1724, %v1792
      %v1797 = vld [vmem:[%s363 + $0x14] sm:$0x1]
      %v1798 = vlaneseq
      %v1799 = vshrl.u32 %v1798, 7
      %v1800 = vsub.s32 0, %v1799
      %v1801 = vrot.slane %v1797, %v1800
      %v1802 = vmul.f32 %v1801, %v1780
      %v1803 = vmul.f32 %v1801, %v1781
      %v1804 = vmul.f32 %v1801, %v1782
      %v1805 = vmul.f32 %v1801, %v1783
      %v1806 = vadd.f32 %v1734, %v1802
      %v1807 = vadd.f32 %v1735, %v1803
      %v1808 = vadd.f32 %v1736, %v1804
      %v1809 = vadd.f32 %v1737, %v1805
      %v1810 = vld [vmem:[%s377 + $0x14] sm:$0x1]
      %v1811 = vlaneseq
      %v1812 = vshrl.u32 %v1811, 7
      %v1813 = vsub.s32 0, %v1812
      %v1814 = vrot.slane %v1810, %v1813
      %v1815 = vmul.f32 %v1814, %v1780
      %v1816 = vmul.f32 %v1814, %v1781
      %v1817 = vmul.f32 %v1814, %v1782
      %v1818 = vmul.f32 %v1814, %v1783
      %v1819 = vadd.f32 %v1747, %v1815
      %v1820 = vadd.f32 %v1748, %v1816
      %v1821 = vadd.f32 %v1749, %v1817
      %v1822 = vadd.f32 %v1750, %v1818
      %v1823 = vld [vmem:[%s391 + $0x14] sm:$0x1]
      %v1824 = vlaneseq
      %v1825 = vshrl.u32 %v1824, 7
      %v1826 = vsub.s32 0, %v1825
      %v1827 = vrot.slane %v1823, %v1826
      %v1828 = vmul.f32 %v1827, %v1780
      %v1829 = vmul.f32 %v1827, %v1781
      %v1830 = vmul.f32 %v1827, %v1782
      %v1831 = vmul.f32 %v1827, %v1783
      %v1832 = vadd.f32 %v1760, %v1828
      %v1833 = vadd.f32 %v1761, %v1829
      %v1834 = vadd.f32 %v1762, %v1830
      %v1835 = vadd.f32 %v1763, %v1831
      %1836 = vrot.lane.b32.xlu0 %v1580, 1
      %v1837 = vpop.permute.xlu0 %1836
      %1838 = vrot.lane.b32.xlu0 %v1581, 1
      %v1839 = vpop.permute.xlu0 %1838
      %1840 = vrot.lane.b32.xlu0 %v1582, 1
      %v1841 = vpop.permute.xlu0 %1840
      %1842 = vrot.lane.b32.xlu0 %v1583, 1
      %v1843 = vpop.permute.xlu0 %1842
      %v1848 = vsel %vm341, 0.0, %v1837
      %v1849 = vsel %vm341, 0.0, %v1839
      %v1850 = vsel %vm341, 0.0, %v1841
      %v1851 = vsel %vm341, 0.0, %v1843
      %v1852 = vsel %vm243, 0.0, %v1848
      %v1853 = vsel %vm243, 0.0, %v1849
      %v1854 = vsel %vm243, 0.0, %v1850
      %v1855 = vsel %vm243, 0.0, %v1851
      %v1856 = vld [vmem:[%s221 + $0x15] sm:$0x1]
      %v1857 = vlaneseq
      %v1858 = vshrl.u32 %v1857, 7
      %v1859 = vsub.s32 0, %v1858
      %v1860 = vrot.slane %v1856, %v1859
      %v1861 = vmul.f32 %v1860, %v1852
      %v1862 = vmul.f32 %v1860, %v1853
      %v1863 = vmul.f32 %v1860, %v1854
      %v1864 = vmul.f32 %v1860, %v1855
      %v1865 = vadd.f32 %v1793, %v1861
      %v1866 = vadd.f32 %v1794, %v1862
      %v1867 = vadd.f32 %v1795, %v1863
      %v1868 = vadd.f32 %v1796, %v1864
      %v1869 = vld [vmem:[%s363 + $0x15] sm:$0x1]
      %v1870 = vlaneseq
      %v1871 = vshrl.u32 %v1870, 7
      %v1872 = vsub.s32 0, %v1871
      %v1873 = vrot.slane %v1869, %v1872
      %v1874 = vmul.f32 %v1873, %v1852
      %v1875 = vmul.f32 %v1873, %v1853
      %v1876 = vmul.f32 %v1873, %v1854
      %v1877 = vmul.f32 %v1873, %v1855
      %v1878 = vadd.f32 %v1806, %v1874
      %v1879 = vadd.f32 %v1807, %v1875
      %v1880 = vadd.f32 %v1808, %v1876
      %v1881 = vadd.f32 %v1809, %v1877
      %v1882 = vld [vmem:[%s377 + $0x15] sm:$0x1]
      %v1883 = vlaneseq
      %v1884 = vshrl.u32 %v1883, 7
      %v1885 = vsub.s32 0, %v1884
      %v1886 = vrot.slane %v1882, %v1885
      %v1887 = vmul.f32 %v1886, %v1852
      %v1888 = vmul.f32 %v1886, %v1853
      %v1889 = vmul.f32 %v1886, %v1854
      %v1890 = vmul.f32 %v1886, %v1855
      %v1891 = vadd.f32 %v1819, %v1887
      %v1892 = vadd.f32 %v1820, %v1888
      %v1893 = vadd.f32 %v1821, %v1889
      %v1894 = vadd.f32 %v1822, %v1890
      %v1895 = vld [vmem:[%s391 + $0x15] sm:$0x1]
      %v1896 = vlaneseq
      %v1897 = vshrl.u32 %v1896, 7
      %v1898 = vsub.s32 0, %v1897
      %v1899 = vrot.slane %v1895, %v1898
      %v1900 = vmul.f32 %v1899, %v1852
      %v1901 = vmul.f32 %v1899, %v1853
      %v1902 = vmul.f32 %v1899, %v1854
      %v1903 = vmul.f32 %v1899, %v1855
      %v1904 = vadd.f32 %v1832, %v1900
      %v1905 = vadd.f32 %v1833, %v1901
      %v1906 = vadd.f32 %v1834, %v1902
      %v1907 = vadd.f32 %v1835, %v1903
      %v1908 = vld [vmem:[%s221 + $0x16] sm:$0x1]
      %v1909 = vlaneseq
      %v1910 = vshrl.u32 %v1909, 7
      %v1911 = vsub.s32 0, %v1910
      %v1912 = vrot.slane %v1908, %v1911
      %v1913 = vmul.f32 %v1912, %v1580
      %v1914 = vmul.f32 %v1912, %v1581
      %v1915 = vmul.f32 %v1912, %v1582
      %v1916 = vmul.f32 %v1912, %v1583
      %v1917 = vadd.f32 %v1865, %v1913
      %v1918 = vadd.f32 %v1866, %v1914
      %v1919 = vadd.f32 %v1867, %v1915
      %v1920 = vadd.f32 %v1868, %v1916
      %v1921 = vld [vmem:[%s363 + $0x16] sm:$0x1]
      %v1922 = vlaneseq
      %v1923 = vshrl.u32 %v1922, 7
      %v1924 = vsub.s32 0, %v1923
      %v1925 = vrot.slane %v1921, %v1924
      %v1926 = vmul.f32 %v1925, %v1580
      %v1927 = vmul.f32 %v1925, %v1581
      %v1928 = vmul.f32 %v1925, %v1582
      %v1929 = vmul.f32 %v1925, %v1583
      %v1930 = vadd.f32 %v1878, %v1926
      %v1931 = vadd.f32 %v1879, %v1927
      %v1932 = vadd.f32 %v1880, %v1928
      %v1933 = vadd.f32 %v1881, %v1929
      %v1934 = vld [vmem:[%s377 + $0x16] sm:$0x1]
      %v1935 = vlaneseq
      %v1936 = vshrl.u32 %v1935, 7
      %v1937 = vsub.s32 0, %v1936
      %v1938 = vrot.slane %v1934, %v1937
      %v1939 = vmul.f32 %v1938, %v1580
      %v1940 = vmul.f32 %v1938, %v1581
      %v1941 = vmul.f32 %v1938, %v1582
      %v1942 = vmul.f32 %v1938, %v1583
      %v1943 = vadd.f32 %v1891, %v1939
      %v1944 = vadd.f32 %v1892, %v1940
      %v1945 = vadd.f32 %v1893, %v1941
      %v1946 = vadd.f32 %v1894, %v1942
      %v1947 = vld [vmem:[%s391 + $0x16] sm:$0x1]
      %v1948 = vlaneseq
      %v1949 = vshrl.u32 %v1948, 7
      %v1950 = vsub.s32 0, %v1949
      %v1951 = vrot.slane %v1947, %v1950
      %v1952 = vmul.f32 %v1951, %v1580
      %v1953 = vmul.f32 %v1951, %v1581
      %v1954 = vmul.f32 %v1951, %v1582
      %v1955 = vmul.f32 %v1951, %v1583
      %v1956 = vadd.f32 %v1904, %v1952
      %v1957 = vadd.f32 %v1905, %v1953
      %v1958 = vadd.f32 %v1906, %v1954
      %v1959 = vadd.f32 %v1907, %v1955
      %1960 = vrot.lane.b32.xlu0 %v1580, 127
      %v1961 = vpop.permute.xlu0 %1960
      %1962 = vrot.lane.b32.xlu0 %v1581, 127
      %v1963 = vpop.permute.xlu0 %1962
      %1964 = vrot.lane.b32.xlu0 %v1582, 127
      %v1965 = vpop.permute.xlu0 %1964
      %1966 = vrot.lane.b32.xlu0 %v1583, 127
      %v1967 = vpop.permute.xlu0 %1966
      %v1972 = vsel %vm469, %v1961, 0.0
      %v1973 = vsel %vm469, %v1963, 0.0
      %v1974 = vsel %vm469, %v1965, 0.0
      %v1975 = vsel %vm469, %v1967, 0.0
      %v1976 = vsel %vm246, 0.0, %v1972
      %v1977 = vsel %vm246, 0.0, %v1973
      %v1978 = vsel %vm246, 0.0, %v1974
      %v1979 = vsel %vm246, 0.0, %v1975
      %v1980 = vld [vmem:[%s221 + $0x17] sm:$0x1]
      %v1981 = vlaneseq
      %v1982 = vshrl.u32 %v1981, 7
      %v1983 = vsub.s32 0, %v1982
      %v1984 = vrot.slane %v1980, %v1983
      %v1985 = vmul.f32 %v1984, %v1976
      %v1986 = vmul.f32 %v1984, %v1977
      %v1987 = vmul.f32 %v1984, %v1978
      %v1988 = vmul.f32 %v1984, %v1979
      %v1989 = vadd.f32 %v1917, %v1985
      %v1990 = vadd.f32 %v1918, %v1986
      %v1991 = vadd.f32 %v1919, %v1987
      %v1992 = vadd.f32 %v1920, %v1988
      %v1993 = vld [vmem:[%s363 + $0x17] sm:$0x1]
      %v1994 = vlaneseq
      %v1995 = vshrl.u32 %v1994, 7
      %v1996 = vsub.s32 0, %v1995
      %v1997 = vrot.slane %v1993, %v1996
      %v1998 = vmul.f32 %v1997, %v1976
      %v1999 = vmul.f32 %v1997, %v1977
      %v2000 = vmul.f32 %v1997, %v1978
      %v2001 = vmul.f32 %v1997, %v1979
      %v2002 = vadd.f32 %v1930, %v1998
      %v2003 = vadd.f32 %v1931, %v1999
      %v2004 = vadd.f32 %v1932, %v2000
      %v2005 = vadd.f32 %v1933, %v2001
      %v2006 = vld [vmem:[%s377 + $0x17] sm:$0x1]
      %v2007 = vlaneseq
      %v2008 = vshrl.u32 %v2007, 7
      %v2009 = vsub.s32 0, %v2008
      %v2010 = vrot.slane %v2006, %v2009
      %v2011 = vmul.f32 %v2010, %v1976
      %v2012 = vmul.f32 %v2010, %v1977
      %v2013 = vmul.f32 %v2010, %v1978
      %v2014 = vmul.f32 %v2010, %v1979
      %v2015 = vadd.f32 %v1943, %v2011
      %v2016 = vadd.f32 %v1944, %v2012
      %v2017 = vadd.f32 %v1945, %v2013
      %v2018 = vadd.f32 %v1946, %v2014
      %v2019 = vld [vmem:[%s391 + $0x17] sm:$0x1]
      %v2020 = vlaneseq
      %v2021 = vshrl.u32 %v2020, 7
      %v2022 = vsub.s32 0, %v2021
      %v2023 = vrot.slane %v2019, %v2022
      %v2024 = vmul.f32 %v2023, %v1976
      %v2025 = vmul.f32 %v2023, %v1977
      %v2026 = vmul.f32 %v2023, %v1978
      %v2027 = vmul.f32 %v2023, %v1979
      %v2028 = vadd.f32 %v1956, %v2024
      %v2029 = vadd.f32 %v1957, %v2025
      %v2030 = vadd.f32 %v1958, %v2026
      %v2031 = vadd.f32 %v1959, %v2027
      %2036 = vrot.lane.b32.xlu0 %v1632, 1
      %v2037 = vpop.permute.xlu0 %2036
      %2038 = vrot.lane.b32.xlu0 %v1633, 1
      %v2039 = vpop.permute.xlu0 %2038
      %2040 = vrot.lane.b32.xlu0 %v1634, 1
      %v2041 = vpop.permute.xlu0 %2040
      %2042 = vrot.lane.b32.xlu0 %v1635, 1
      %v2043 = vpop.permute.xlu0 %2042
      %v2048 = vsel %vm341, 0.0, %v2037
      %v2049 = vsel %vm341, 0.0, %v2039
      %v2050 = vsel %vm341, 0.0, %v2041
      %v2051 = vsel %vm341, 0.0, %v2043
      %v2052 = vsel %vm243, 0.0, %v2048
      %v2053 = vsel %vm243, 0.0, %v2049
      %v2054 = vsel %vm243, 0.0, %v2050
      %v2055 = vsel %vm243, 0.0, %v2051
      %v2056 = vld [vmem:[%s221 + $0x18] sm:$0x1]
      %v2057 = vlaneseq
      %v2058 = vshrl.u32 %v2057, 7
      %v2059 = vsub.s32 0, %v2058
      %v2060 = vrot.slane %v2056, %v2059
      %v2061 = vmul.f32 %v2060, %v2052
      %v2062 = vmul.f32 %v2060, %v2053
      %v2063 = vmul.f32 %v2060, %v2054
      %v2064 = vmul.f32 %v2060, %v2055
      %v2065 = vadd.f32 %v1989, %v2061
      %v2066 = vadd.f32 %v1990, %v2062
      %v2067 = vadd.f32 %v1991, %v2063
      %v2068 = vadd.f32 %v1992, %v2064
      %v2069 = vld [vmem:[%s363 + $0x18] sm:$0x1]
      %v2070 = vlaneseq
      %v2071 = vshrl.u32 %v2070, 7
      %v2072 = vsub.s32 0, %v2071
      %v2073 = vrot.slane %v2069, %v2072
      %v2074 = vmul.f32 %v2073, %v2052
      %v2075 = vmul.f32 %v2073, %v2053
      %v2076 = vmul.f32 %v2073, %v2054
      %v2077 = vmul.f32 %v2073, %v2055
      %v2078 = vadd.f32 %v2002, %v2074
      %v2079 = vadd.f32 %v2003, %v2075
      %v2080 = vadd.f32 %v2004, %v2076
      %v2081 = vadd.f32 %v2005, %v2077
      %v2082 = vld [vmem:[%s377 + $0x18] sm:$0x1]
      %v2083 = vlaneseq
      %v2084 = vshrl.u32 %v2083, 7
      %v2085 = vsub.s32 0, %v2084
      %v2086 = vrot.slane %v2082, %v2085
      %v2087 = vmul.f32 %v2086, %v2052
      %v2088 = vmul.f32 %v2086, %v2053
      %v2089 = vmul.f32 %v2086, %v2054
      %v2090 = vmul.f32 %v2086, %v2055
      %v2091 = vadd.f32 %v2015, %v2087
      %v2092 = vadd.f32 %v2016, %v2088
      %v2093 = vadd.f32 %v2017, %v2089
      %v2094 = vadd.f32 %v2018, %v2090
      %v2095 = vld [vmem:[%s391 + $0x18] sm:$0x1]
      %v2096 = vlaneseq
      %v2097 = vshrl.u32 %v2096, 7
      %v2098 = vsub.s32 0, %v2097
      %v2099 = vrot.slane %v2095, %v2098
      %v2100 = vmul.f32 %v2099, %v2052
      %v2101 = vmul.f32 %v2099, %v2053
      %v2102 = vmul.f32 %v2099, %v2054
      %v2103 = vmul.f32 %v2099, %v2055
      %v2104 = vadd.f32 %v2028, %v2100
      %v2105 = vadd.f32 %v2029, %v2101
      %v2106 = vadd.f32 %v2030, %v2102
      %v2107 = vadd.f32 %v2031, %v2103
      %v2108 = vld [vmem:[%s221 + $0x19] sm:$0x1]
      %v2109 = vlaneseq
      %v2110 = vshrl.u32 %v2109, 7
      %v2111 = vsub.s32 0, %v2110
      %v2112 = vrot.slane %v2108, %v2111
      %v2113 = vmul.f32 %v2112, %v1632
      %v2114 = vmul.f32 %v2112, %v1633
      %v2115 = vmul.f32 %v2112, %v1634
      %v2116 = vmul.f32 %v2112, %v1635
      %v2117 = vadd.f32 %v2065, %v2113
      %v2118 = vadd.f32 %v2066, %v2114
      %v2119 = vadd.f32 %v2067, %v2115
      %v2120 = vadd.f32 %v2068, %v2116
      %v2121 = vld [vmem:[%s363 + $0x19] sm:$0x1]
      %v2122 = vlaneseq
      %v2123 = vshrl.u32 %v2122, 7
      %v2124 = vsub.s32 0, %v2123
      %v2125 = vrot.slane %v2121, %v2124
      %v2126 = vmul.f32 %v2125, %v1632
      %v2127 = vmul.f32 %v2125, %v1633
      %v2128 = vmul.f32 %v2125, %v1634
      %v2129 = vmul.f32 %v2125, %v1635
      %v2130 = vadd.f32 %v2078, %v2126
      %v2131 = vadd.f32 %v2079, %v2127
      %v2132 = vadd.f32 %v2080, %v2128
      %v2133 = vadd.f32 %v2081, %v2129
      %v2134 = vld [vmem:[%s377 + $0x19] sm:$0x1]
      %v2135 = vlaneseq
      %v2136 = vshrl.u32 %v2135, 7
      %v2137 = vsub.s32 0, %v2136
      %v2138 = vrot.slane %v2134, %v2137
      %v2139 = vmul.f32 %v2138, %v1632
      %v2140 = vmul.f32 %v2138, %v1633
      %v2141 = vmul.f32 %v2138, %v1634
      %v2142 = vmul.f32 %v2138, %v1635
      %v2143 = vadd.f32 %v2091, %v2139
      %v2144 = vadd.f32 %v2092, %v2140
      %v2145 = vadd.f32 %v2093, %v2141
      %v2146 = vadd.f32 %v2094, %v2142
      %v2147 = vld [vmem:[%s391 + $0x19] sm:$0x1]
      %v2148 = vlaneseq
      %v2149 = vshrl.u32 %v2148, 7
      %v2150 = vsub.s32 0, %v2149
      %v2151 = vrot.slane %v2147, %v2150
      %v2152 = vmul.f32 %v2151, %v1632
      %v2153 = vmul.f32 %v2151, %v1633
      %v2154 = vmul.f32 %v2151, %v1634
      %v2155 = vmul.f32 %v2151, %v1635
      %v2156 = vadd.f32 %v2104, %v2152
      %v2157 = vadd.f32 %v2105, %v2153
      %v2158 = vadd.f32 %v2106, %v2154
      %v2159 = vadd.f32 %v2107, %v2155
      %2160 = vrot.lane.b32.xlu0 %v1632, 127
      %v2161 = vpop.permute.xlu0 %2160
      %2162 = vrot.lane.b32.xlu0 %v1633, 127
      %v2163 = vpop.permute.xlu0 %2162
      %2164 = vrot.lane.b32.xlu0 %v1634, 127
      %v2165 = vpop.permute.xlu0 %2164
      %2166 = vrot.lane.b32.xlu0 %v1635, 127
      %v2167 = vpop.permute.xlu0 %2166
      %v2172 = vsel %vm469, %v2161, 0.0
      %v2173 = vsel %vm469, %v2163, 0.0
      %v2174 = vsel %vm469, %v2165, 0.0
      %v2175 = vsel %vm469, %v2167, 0.0
      %v2176 = vsel %vm246, 0.0, %v2172
      %v2177 = vsel %vm246, 0.0, %v2173
      %v2178 = vsel %vm246, 0.0, %v2174
      %v2179 = vsel %vm246, 0.0, %v2175
      %v2180 = vld [vmem:[%s221 + $0x1a] sm:$0x1]
      %v2181 = vlaneseq
      %v2182 = vshrl.u32 %v2181, 7
      %v2183 = vsub.s32 0, %v2182
      %v2184 = vrot.slane %v2180, %v2183
      %v2185 = vmul.f32 %v2184, %v2176
      %v2186 = vmul.f32 %v2184, %v2177
      %v2187 = vmul.f32 %v2184, %v2178
      %v2188 = vmul.f32 %v2184, %v2179
      %v2189 = vadd.f32 %v2117, %v2185
      %v2190 = vadd.f32 %v2118, %v2186
      %v2191 = vadd.f32 %v2119, %v2187
      %v2192 = vadd.f32 %v2120, %v2188
      %v2193 = vld [vmem:[%s363 + $0x1a] sm:$0x1]
      %v2194 = vlaneseq
      %v2195 = vshrl.u32 %v2194, 7
      %v2196 = vsub.s32 0, %v2195
      %v2197 = vrot.slane %v2193, %v2196
      %v2198 = vmul.f32 %v2197, %v2176
      %v2199 = vmul.f32 %v2197, %v2177
      %v2200 = vmul.f32 %v2197, %v2178
      %v2201 = vmul.f32 %v2197, %v2179
      %v2202 = vadd.f32 %v2130, %v2198
      %v2203 = vadd.f32 %v2131, %v2199
      %v2204 = vadd.f32 %v2132, %v2200
      %v2205 = vadd.f32 %v2133, %v2201
      %v2206 = vld [vmem:[%s377 + $0x1a] sm:$0x1]
      %v2207 = vlaneseq
      %v2208 = vshrl.u32 %v2207, 7
      %v2209 = vsub.s32 0, %v2208
      %v2210 = vrot.slane %v2206, %v2209
      %v2211 = vmul.f32 %v2210, %v2176
      %v2212 = vmul.f32 %v2210, %v2177
      %v2213 = vmul.f32 %v2210, %v2178
      %v2214 = vmul.f32 %v2210, %v2179
      %v2215 = vadd.f32 %v2143, %v2211
      %v2216 = vadd.f32 %v2144, %v2212
      %v2217 = vadd.f32 %v2145, %v2213
      %v2218 = vadd.f32 %v2146, %v2214
      %v2219 = vld [vmem:[%s391 + $0x1a] sm:$0x1]
      %v2220 = vlaneseq
      %v2221 = vshrl.u32 %v2220, 7
      %v2222 = vsub.s32 0, %v2221
      %v2223 = vrot.slane %v2219, %v2222
      %v2224 = vmul.f32 %v2223, %v2176
      %v2225 = vmul.f32 %v2223, %v2177
      %v2226 = vmul.f32 %v2223, %v2178
      %v2227 = vmul.f32 %v2223, %v2179
      %v2228 = vadd.f32 %v2156, %v2224
      %v2229 = vadd.f32 %v2157, %v2225
      %v2230 = vadd.f32 %v2158, %v2226
      %v2231 = vadd.f32 %v2159, %v2227
      %2232 = vst [vmem:[%s236] sm:$0xff] %v2189
      %2233 = vst [vmem:[%s236 + $0x8] sm:$0xff] %v2190
      %2234 = vst [vmem:[%s236 + $0x10] sm:$0xff] %v2191
      %2235 = vst [vmem:[%s236 + $0x18] sm:$0xff] %v2192
      %s2236 = scalar_lea.vmem %s236, 32
      %2237 = vst [vmem:[%s2236] sm:$0xff] %v2202
      %2238 = vst [vmem:[%s2236 + $0x8] sm:$0xff] %v2203
      %2239 = vst [vmem:[%s2236 + $0x10] sm:$0xff] %v2204
      %2240 = vst [vmem:[%s2236 + $0x18] sm:$0xff] %v2205
      %s2241 = scalar_lea.vmem %s236, 64
      %2242 = vst [vmem:[%s2241] sm:$0xff] %v2215
      %2243 = vst [vmem:[%s2241 + $0x8] sm:$0xff] %v2216
      %2244 = vst [vmem:[%s2241 + $0x10] sm:$0xff] %v2217
      %2245 = vst [vmem:[%s2241 + $0x18] sm:$0xff] %v2218
      %s2246 = scalar_lea.vmem %s236, 96
      %2247 = vst [vmem:[%s2246] sm:$0xff] %v2228
      %2248 = vst [vmem:[%s2246 + $0x8] sm:$0xff] %v2229
      %2249 = vst [vmem:[%s2246 + $0x10] sm:$0xff] %v2230
      %2250 = vst [vmem:[%s2246 + $0x18] sm:$0xff] %v2231
      %s2251 = smul.u32 4, %s19
      %p2252 = scmp.lt.s32.totalorder %s18, 1
      %s2253 = scalar_select %p2252, %s18, 1
      %p2254 = scmp.lt.s32.totalorder %s2251, 7
      %s2255 = scalar_select %p2254, %s2251, 7
      %s2256 = smul.addr %s2255, 4
      %s2257 = smul.addr %s2253, 32
      %s2258 = sadd.s32 %s2256, %s2257
      %s2259 = smul.addr %s2258, 8
      %s2260 = scalar_lea.vmem %s3, %s2259
      // Predicated region
      $region33: #{convt_leaky_where.1} parent=31 // pred_check
        %p2261 = pneg %p124
      $region34: #{convt_leaky_where.1} parent=31 // pred_check_branch
        %2263 = sbr.rel (%p2261) target = $region36
      $region35: #{convt_leaky_where.1} parent=31 // pred_region
        %s2264 = smul.u32 4, %s19
      $region36: #{convt_leaky_where.1} parent=31 // pred_fallthru
        _
    $region32: #{convt_leaky_where.1} parent=5 // pred_fallthru
      _
    %p2265 = scmp.le.s32.totalorder 2, %s9
    // Predicated region
    $region37: #{convt_leaky_where.1} parent=5 // pred_check
      %p2266 = pneg %p2265
    $region38: #{convt_leaky_where.1} parent=5 // pred_check_branch
      %2268 = sbr.rel (%p2266) target = $region40
    $region39: #{convt_leaky_where.1} parent=5 // pred_region
      %s2269 = ssub.s32 %s9, 2
      // Predicated region
      $region41: #{convt_leaky_where.1} parent=39 // pred_check
        %p2270 = pneg %p130
      $region42: #{convt_leaky_where.1} parent=39 // pred_check_branch
        %2272 = sbr.rel (%p2270) target = $region44
      $region43: #{convt_leaky_where.1} parent=39 // pred_region
        %s2273 = smul.u32 4, %s21
        %p2274 = scmp.lt.s32.totalorder %s20, 1
        %s2275 = scalar_select %p2274, %s20, 1
        %p2276 = scmp.lt.s32.totalorder %s2273, 7
        %s2277 = scalar_select %p2276, %s2273, 7
        %s2278 = smul.addr %s2277, 4
        %s2279 = smul.addr %s2275, 32
        %s2280 = sadd.s32 %s2278, %s2279
        %s2281 = smul.addr %s2280, 8
        %s2282 = scalar_lea.vmem %s3, %s2281
      $region44: #{convt_leaky_where.1} parent=39 // pred_fallthru
        _
    $region40: #{convt_leaky_where.1} parent=5 // pred_fallthru
      _
  $region6: #{convt_leaky_where.1} parent=0 // loop_footer
    %s13 = sadd.s32 1, %s9
  $region7: #{convt_leaky_where.1} parent=0 // loop_footer_branch
    %8 = sbr.rel target = $region3
  $region8: #{convt_leaky_where.1} parent=0 // loop_exit
    _

</llo_original>
